<compile_context>
chip_gen: v5e
topology: v5e:2x2
jax: 0.10.0
libtpu: 0.0.40
codegen_flags: <defaults>
</compile_context>

<pallas_src>
import numpy as np
import jax
import jax.numpy as jnp
from jax.experimental import pallas as pl
from jax.experimental.pallas import tpu as pltpu

# ---- toy dims (stand-ins for feature_size=768, hidden_size=256, ...) --------
B = 16            # graphs in the batch
BT = 8            # graphs per grid step -> M = BT*N = 128 MXU rows per matmul
N = 16            # nodes per graph
F = 96            # feature_size
H = 32            # hidden_size
C = F + H         # concat_dim = 128
NC = 2            # num_classes
NUM_GNN_LAYERS = 2
M = BT * N        # flattened rows per grid step

# MXU operand dtype: bf16 operands + f32 accumulation; elementwise stays f32.
MATMUL_DTYPE = jnp.bfloat16

# Static pooling geometry over the node axis:
#   Conv1d(3) -> MaxPool1d(3, s=2) -> Conv1d(1) -> MaxPool1d(2, s=2)
L1 = N - 2                    # conv3 output length
P1 = (L1 - 3) // 2 + 1        # after MaxPool1d(3, stride=2)
P2 = (P1 - 2) // 2 + 1        # after MaxPool1d(2, stride=2)
assert P2 >= 1, "N must be >= 7 for the Devign conv/pool readout chain"
# Deferred pooling uses rolls over the flattened (BT*N) node axis; the deepest
# row read by any SELECTED pooled output is 4*P2 + 2, which must stay inside
# the graph so wrapped / cross-graph rows are never selected.
assert 4 * P2 + 2 <= N - 1, "roll-based pooling would read wrapped rows"
assert B % BT == 0
assert N % 8 == 0             # keeps (BT*N, .) <-> (BT, N, .) reshapes layout-free


def mm(a, b):
    """Matmul with MATMUL_DTYPE operands and f32 accumulation.
    Shared by the kernel and the pure-JAX reference so the correctness check
    compares identical math (only fusion / accumulation order differs)."""
    return jnp.matmul(a.astype(MATMUL_DTYPE), b.astype(MATMUL_DTYPE),
                      preferred_element_type=jnp.float32)


# -----------------------------------------------------------------------------
# Fused Pallas kernel: gated GNN + conv/pool/MLP readout, BT graphs per step
# -----------------------------------------------------------------------------
def devign_kernel(f_ref, adj_ref, m_ref,
                  wenc_ref, benc_ref,
                  wgax_ref, bgax_ref, wgh_ref, bgh_ref,
                  w1y_ref, b1y_ref, w2y_ref, b2y_ref,
                  w1zt_ref, w1zb_ref, b1z_ref, w2z_ref, b2z_ref,
                  wy_ref, by_ref, wz_ref, bz_ref,
                  out_ref):
    feat = f_ref[...].reshape(M, F)           # (BT*N, F) bf16 - graphs stacked into MXU rows
    adj = adj_ref[...]                        # (BT, N, N) bf16
    mask = m_ref[...].reshape(M, 1)           # (BT*N, 1) f32
    mask_h = jnp.broadcast_to(mask, (M, H))   # hoisted once; reused every layer

    # ----------------------------- Gated GNN ---------------------------------
    x = mm(feat, wenc_ref[...]) + benc_ref[...]           # (M, H) f32
    x = x * mask_h
    bgax = bgax_ref[...]                                   # (1, 3H) hoisted
    bgh = bgh_ref[...]                                     # (1, H)  hoisted
    for _ in range(NUM_GNN_LAYERS):
        # per-graph propagation: batched dot_general over BT graphs
        a = mm(adj, x.reshape(BT, N, H)).reshape(M, H)
        # single fused gate matmul: [a | x] @ [[Wz_a|Wr_a|Wh_a],[Wz_x|Wr_x|0]]
        g = mm(jnp.concatenate([a, x], axis=-1), wgax_ref[...]) + bgax   # (M, 3H)
        # NOTE: at toy H=32 these lane slices sit at offsets 32/64 inside one
        # vreg (cheap shuffles); at real H=256 they are 128-aligned and free.
        z = jax.nn.sigmoid(g[:, 0:H])
        r = jax.nn.sigmoid(g[:, H:2 * H])
        h = jnp.tanh(g[:, 2 * H:3 * H] + mm(r * x, wgh_ref[...]) + bgh)
        x = h * z + x * (1.0 - z)
        x = x * mask_h

    # --------------- Readout: conv / pool at full node resolution ------------
    def shift_rows(v, s):
        # shifted[i] = v[(i + s) % M]; selected rows never read rows rolled in
        # from a neighbouring graph (asserted: 4*P2 + 2 <= N - 1).
        return pltpu.roll(v, M - s, axis=0)

    def conv3_relu(bands, b_ref, cdim):
        # `bands` is ONE fused Conv1d(k=3) matmul output (M, 3*cdim); the three
        # tap bands are realigned with XLU rolls (no unaligned sublane slices).
        y = (bands[:, 0:cdim]
             + shift_rows(bands[:, cdim:2 * cdim], 1)
             + shift_rows(bands[:, 2 * cdim:3 * cdim], 2)
             + b_ref[...])
        return jnp.maximum(y, 0.0)

    def pool_head(y, w2_ref, b2_ref, wm_ref, bm_ref):
        # MaxPool1d(3,2) -> Conv1d(1)+ReLU -> MaxPool1d(2,2) -> Linear, all at
        # full node resolution; stride-2 selection deferred to the masked mean.
        p1 = jnp.maximum(jnp.maximum(y, shift_rows(y, 1)), shift_rows(y, 2))
        r1 = jnp.maximum(mm(p1, w2_ref[...]) + b2_ref[...], 0.0)
        p2 = jnp.maximum(r1, shift_rows(r1, 2))
        return mm(p2, wm_ref[...]) + bm_ref[...]

    # Y path: fused tap weights w1y = [W0|W1|W2]  (H, 3H) -> one dot.
    ly = pool_head(conv3_relu(mm(x, w1y_ref[...]), b1y_ref, H),
                   w2y_ref, b2y_ref, wy_ref, by_ref)
    # Z path: concat([x, feat]) eliminated -> x @ top(H,3C) + feat @ bot(F,3C).
    zbands = mm(x, w1zt_ref[...]) + mm(feat, w1zb_ref[...])
    lz = pool_head(conv3_relu(zbands, b1z_ref, C),
                   w2z_ref, b2z_ref, wz_ref, bz_ref)

    # Real pooled outputs live at per-graph node rows 4*j, j in [0, P2).
    logit = (ly * lz).reshape(BT, N, NC)
    node = jax.lax.broadcasted_iota(jnp.int32, (BT, N, NC), 1)
    sel = jnp.logical_and(node % 4 == 0, node < 4 * P2)
    pooled = jnp.sum(jnp.where(sel, logit, 0.0), axis=1)            # (BT, NC)
    out_ref[...] = jax.nn.sigmoid(pooled * (1.0 / P2))


# -----------------------------------------------------------------------------
# pallas_call wrapper + host-side weight packing
# -----------------------------------------------------------------------------
def _weight_spec(arr):
    nd = arr.ndim
    # Grid-invariant weights: constant index map -> single-buffer them so the
    # VMEM footprint is not doubled for nothing (matters at real dims on v7x).
    return pl.BlockSpec(arr.shape, lambda i, _nd=nd: (0,) * _nd,
                        pipeline_mode=pl.Buffered(1))


def pack_params(p):
    """Host-side weight fusion + MXU-operand dtype cast (biases stay f32)."""
    dt = MATMUL_DTYPE
    wg, bg = p['wg'], p['bg']
    # Stacked gate weight for the single fused gate matmul.
    w_a = jnp.concatenate([wg[0], wg[2], wg[4]], axis=1)                         # (H, 3H)
    w_x = jnp.concatenate([wg[1], wg[3], jnp.zeros((H, H), jnp.float32)], axis=1)
    wgax = jnp.concatenate([w_a, w_x], axis=0).astype(dt)                        # (2H, 3H)
    bgax = jnp.concatenate([bg[0] + bg[1], bg[2] + bg[3], bg[4]], axis=1)        # (1, 3H)
    # Conv1d(k=3) taps fused column-wise (one lane-wide dot per path).
    w1y = jnp.concatenate([p['w1y'][0], p['w1y'][1], p['w1y'][2]], axis=1).astype(dt)   # (H, 3H)
    w1zt = jnp.concatenate([p['w1z'][k][:H] for k in range(3)], axis=1).astype(dt)      # (H, 3C)
    w1zb = jnp.concatenate([p['w1z'][k][H:] for k in range(3)], axis=1).astype(dt)      # (F, 3C)
    return [
        p['wenc'].astype(dt), p['benc'],
        wgax, bgax, wg[5].astype(dt), bg[5],
        w1y, p['b1y'], p['w2y'].astype(dt), p['b2y'],
        w1zt, w1zb, p['b1z'], p['w2z'].astype(dt), p['b2z'],
        p['wy'].astype(dt), p['by'], p['wz'].astype(dt), p['bz'],
    ]


def devign_forward(feat, adj, mask, p):
    b, n, fdim = feat.shape
    assert (b, n, fdim) == (B, N, F)
    weights = pack_params(p)
    feat_in = feat.astype(MATMUL_DTYPE)       # only used as a matmul operand
    adj_in = adj.astype(MATMUL_DTYPE)         # only used as a matmul operand

    flops = 2 * b * n * (
        fdim * H                                    # encoder
        + NUM_GNN_LAYERS * (n * H + 7 * H * H)      # adj@x + fused gates + h
        + 3 * H * H + H * H + H * NC                # Y path conv3/conv1/head
        + 3 * C * C + C * C + C * NC)               # Z path conv3/conv1/head
    inputs = [feat_in, adj_in, mask] + weights
    cost = pl.CostEstimate(
        flops=int(flops),
        transcendentals=int(b * n * 3 * H * NUM_GNN_LAYERS + b * NC),
        bytes_accessed=int(sum(int(np.prod(a.shape)) * a.dtype.itemsize
                               for a in inputs) + b * NC * 4),
    )

    out = pl.pallas_call(
        devign_kernel,
        out_shape=jax.ShapeDtypeStruct((b, NC), jnp.float32),
        grid=(b // BT,),
        in_specs=[
            pl.BlockSpec((BT, n, fdim), lambda i: (i, 0, 0)),
            pl.BlockSpec((BT, n, n), lambda i: (i, 0, 0)),
            pl.BlockSpec((BT, n, 1), lambda i: (i, 0, 0)),
        ] + [_weight_spec(w) for w in weights],
        out_specs=pl.BlockSpec((BT, NC), lambda i: (i, 0)),
        compiler_params=pltpu.CompilerParams(
            dimension_semantics=("parallel",),        # 2 TensorCores on v7x
            vmem_limit_bytes=32 * 1024 * 1024),
        cost_estimate=cost,
    )(feat_in, adj_in, mask, *weights)
    return out


# -----------------------------------------------------------------------------
# Pure-JAX reference (unfused) -- same bf16-operand / f32-accumulate math
# -----------------------------------------------------------------------------
def _gnn_ref(feat, adj, mask, p):
    x = mm(feat, p['wenc']) + p['benc']
    x = x * mask
    for _ in range(NUM_GNN_LAYERS):
        a = mm(adj, x)
        z = jax.nn.sigmoid(mm(a, p['wg'][0]) + p['bg'][0] + mm(x, p['wg'][1]) + p['bg'][1])
        r = jax.nn.sigmoid(mm(a, p['wg'][2]) + p['bg'][2] + mm(x, p['wg'][3]) + p['bg'][3])
        h = jnp.tanh(mm(a, p['wg'][4]) + p['bg'][4] + mm(r * x, p['wg'][5]) + p['bg'][5])
        x = h * z + x * (1.0 - z)
        x = x * mask
    return x


def _conv_relu_ref(x, w, b):
    k = w.shape[0]
    L = x.shape[1] - k + 1
    y = b
    for i in range(k):
        y = y + mm(x[:, i:i + L, :], w[i])
    return jnp.maximum(y, 0.0)


def _maxpool_ref(x, k, s):
    lout = (x.shape[1] - k) // s + 1
    return jnp.stack([x[:, i * s:i * s + k, :].max(axis=1) for i in range(lout)], axis=1)


def devign_ref(feat, adj, mask, p):
    x = _gnn_ref(feat, adj, mask, p)
    y = _maxpool_ref(_conv_relu_ref(x, p['w1y'], p['b1y']), 3, 2)
    y = _maxpool_ref(jnp.maximum(mm(y, p['w2y']) + p['b2y'], 0.0), 2, 2)
    ly = mm(y, p['wy']) + p['by']
    c = jnp.concatenate([x, feat], axis=-1)
    z = _maxpool_ref(_conv_relu_ref(c, p['w1z'], p['b1z']), 3, 2)
    z = _maxpool_ref(jnp.maximum(mm(z, p['w2z']) + p['b2z'], 0.0), 2, 2)
    lz = mm(z, p['wz']) + p['bz']
    return jax.nn.sigmoid((ly * lz).mean(axis=1))


# -----------------------------------------------------------------------------
# Deterministic parameter init
# -----------------------------------------------------------------------------
def init_params(key):
    ks = jax.random.split(key, 16)
    rnd = lambda k, shape, s: jax.random.normal(k, shape, jnp.float32) * s
    return {
        'wenc': rnd(ks[0], (F, H), 1.0 / np.sqrt(F)),
        'benc': rnd(ks[1], (1, H), 0.01),
        'wg':   rnd(ks[2], (6, H, H), 1.0 / np.sqrt(H)),
        'bg':   rnd(ks[3], (6, 1, H), 0.01),
        'w1y':  rnd(ks[4], (3, H, H), 1.0 / np.sqrt(3 * H)),
        'b1y':  rnd(ks[5], (1, H), 0.01),
        'w2y':  rnd(ks[6], (H, H), 1.0 / np.sqrt(H)),
        'b2y':  rnd(ks[7], (1, H), 0.01),
        'w1z':  rnd(ks[8], (3, C, C), 1.0 / np.sqrt(3 * C)),
        'b1z':  rnd(ks[9], (1, C), 0.01),
        'w2z':  rnd(ks[10], (C, C), 1.0 / np.sqrt(C)),
        'b2z':  rnd(ks[11], (1, C), 0.01),
        'wy':   rnd(ks[12], (H, NC), 1.0 / np.sqrt(H)),
        'by':   rnd(ks[13], (1, NC), 0.01),
        'wz':   rnd(ks[14], (C, NC), 1.0 / np.sqrt(C)),
        'bz':   rnd(ks[15], (1, NC), 0.01),
    }


if __name__ == "__main__":
    key = jax.random.PRNGKey(0)
    k_feat, k_adj, k_par = jax.random.split(key, 3)

    # Synthetic graph batch (stands in for build_graph + preprocess_*):
    feat = jax.random.normal(k_feat, (B, N, F), jnp.float32) * 0.5
    adj = jax.random.uniform(k_adj, (B, N, N), jnp.float32)
    adj = 0.5 * (adj + jnp.swapaxes(adj, 1, 2))
    adj = adj / (adj.sum(axis=-1, keepdims=True) + 1e-6)
    node_counts = N - (jnp.arange(B) % 5)                       # variable-size graphs
    mask = (jnp.arange(N)[None, :] < node_counts[:, None]).astype(jnp.float32)[..., None]
    adj = adj * mask * jnp.swapaxes(mask, 1, 2)
    feat = feat * mask

    params = init_params(k_par)

    prob = devign_forward(feat, adj, mask, params)
    jax.block_until_ready(prob)

    prob_ref = devign_ref(feat, adj, mask, params)
    assert prob.shape == (B, NC), prob.shape
    # Kernel and reference both use bf16 MXU operands with f32 accumulation;
    # residual differences come only from fusion / accumulation-order.
    assert jnp.allclose(prob, prob_ref, atol=5e-3, rtol=5e-3), (prob, prob_ref)
    print("KERNEL_OK")
</pallas_src>

<mosaic_0001>
module attributes {stable_mosaic.version = 11 : i64} {
  func.func @devign_kernel(%arg0: i32, %arg1: memref<8x16x96xbf16, #tpu.memory_space<vmem>>, %arg2: memref<8x16x16xbf16, #tpu.memory_space<vmem>>, %arg3: memref<8x16x1xf32, #tpu.memory_space<vmem>>, %arg4: memref<96x32xbf16, #tpu.memory_space<vmem>>, %arg5: memref<1x32xf32, #tpu.memory_space<vmem>>, %arg6: memref<64x96xbf16, #tpu.memory_space<vmem>>, %arg7: memref<1x96xf32, #tpu.memory_space<vmem>>, %arg8: memref<32x32xbf16, #tpu.memory_space<vmem>>, %arg9: memref<1x32xf32, #tpu.memory_space<vmem>>, %arg10: memref<32x96xbf16, #tpu.memory_space<vmem>>, %arg11: memref<1x32xf32, #tpu.memory_space<vmem>>, %arg12: memref<32x32xbf16, #tpu.memory_space<vmem>>, %arg13: memref<1x32xf32, #tpu.memory_space<vmem>>, %arg14: memref<32x384xbf16, #tpu.memory_space<vmem>>, %arg15: memref<96x384xbf16, #tpu.memory_space<vmem>>, %arg16: memref<1x128xf32, #tpu.memory_space<vmem>>, %arg17: memref<128x128xbf16, #tpu.memory_space<vmem>>, %arg18: memref<1x128xf32, #tpu.memory_space<vmem>>, %arg19: memref<32x2xbf16, #tpu.memory_space<vmem>>, %arg20: memref<1x2xf32, #tpu.memory_space<vmem>>, %arg21: memref<128x2xbf16, #tpu.memory_space<vmem>>, %arg22: memref<1x2xf32, #tpu.memory_space<vmem>>, %arg23: memref<8x2xf32, #tpu.memory_space<vmem>>) attributes {dimension_semantics = [#tpu.dimension_semantics<parallel>], iteration_bounds = array<i64: 2>, scalar_prefetch = 0 : i64, scratch_operands = 0 : i64, tpu.core_type = #tpu.core_type<tc>, window_params = [{transform_indices = @transform_0, window_bounds = array<i64: 8, 16, 96>}, {transform_indices = @transform_1, window_bounds = array<i64: 8, 16, 16>}, {transform_indices = @transform_2, window_bounds = array<i64: 8, 16, 1>}, {pipeline_mode = #tpu.pipeline_mode<synchronous>, transform_indices = @transform_3, window_bounds = array<i64: 96, 32>}, {pipeline_mode = #tpu.pipeline_mode<synchronous>, transform_indices = @transform_4, window_bounds = array<i64: 1, 32>}, {pipeline_mode = #tpu.pipeline_mode<synchronous>, transform_indices = @transform_5, window_bounds = array<i64: 64, 96>}, {pipeline_mode = #tpu.pipeline_mode<synchronous>, transform_indices = @transform_6, window_bounds = array<i64: 1, 96>}, {pipeline_mode = #tpu.pipeline_mode<synchronous>, transform_indices = @transform_7, window_bounds = array<i64: 32, 32>}, {pipeline_mode = #tpu.pipeline_mode<synchronous>, transform_indices = @transform_8, window_bounds = array<i64: 1, 32>}, {pipeline_mode = #tpu.pipeline_mode<synchronous>, transform_indices = @transform_9, window_bounds = array<i64: 32, 96>}, {pipeline_mode = #tpu.pipeline_mode<synchronous>, transform_indices = @transform_10, window_bounds = array<i64: 1, 32>}, {pipeline_mode = #tpu.pipeline_mode<synchronous>, transform_indices = @transform_11, window_bounds = array<i64: 32, 32>}, {pipeline_mode = #tpu.pipeline_mode<synchronous>, transform_indices = @transform_12, window_bounds = array<i64: 1, 32>}, {pipeline_mode = #tpu.pipeline_mode<synchronous>, transform_indices = @transform_13, window_bounds = array<i64: 32, 384>}, {pipeline_mode = #tpu.pipeline_mode<synchronous>, transform_indices = @transform_14, window_bounds = array<i64: 96, 384>}, {pipeline_mode = #tpu.pipeline_mode<synchronous>, transform_indices = @transform_15, window_bounds = array<i64: 1, 128>}, {pipeline_mode = #tpu.pipeline_mode<synchronous>, transform_indices = @transform_16, window_bounds = array<i64: 128, 128>}, {pipeline_mode = #tpu.pipeline_mode<synchronous>, transform_indices = @transform_17, window_bounds = array<i64: 1, 128>}, {pipeline_mode = #tpu.pipeline_mode<synchronous>, transform_indices = @transform_18, window_bounds = array<i64: 32, 2>}, {pipeline_mode = #tpu.pipeline_mode<synchronous>, transform_indices = @transform_19, window_bounds = array<i64: 1, 2>}, {pipeline_mode = #tpu.pipeline_mode<synchronous>, transform_indices = @transform_20, window_bounds = array<i64: 128, 2>}, {pipeline_mode = #tpu.pipeline_mode<synchronous>, transform_indices = @transform_21, window_bounds = array<i64: 1, 2>}, {transform_indices = @transform_22, window_bounds = array<i64: 8, 2>}]} {
    %c0 = arith.constant 0 : index
    %c0_0 = arith.constant 0 : index
    %c0_1 = arith.constant 0 : index
    %0 = vector.load %arg1[%c0, %c0_0, %c0_1] : memref<8x16x96xbf16, #tpu.memory_space<vmem>>, vector<8x16x96xbf16>
    %1 = vector.shape_cast %0 : vector<8x16x96xbf16> to vector<128x96xbf16>
    %c0_2 = arith.constant 0 : index
    %c0_3 = arith.constant 0 : index
    %c0_4 = arith.constant 0 : index
    %2 = vector.load %arg2[%c0_2, %c0_3, %c0_4] : memref<8x16x16xbf16, #tpu.memory_space<vmem>>, vector<8x16x16xbf16>
    %c0_5 = arith.constant 0 : index
    %c0_6 = arith.constant 0 : index
    %c0_7 = arith.constant 0 : index
    %3 = vector.load %arg3[%c0_5, %c0_6, %c0_7] : memref<8x16x1xf32, #tpu.memory_space<vmem>>, vector<8x16x1xf32>
    %4 = vector.shape_cast %3 : vector<8x16x1xf32> to vector<128x1xf32>
    %5 = vector.shape_cast %4 : vector<128x1xf32> to vector<128x1xf32>
    %6 = vector.broadcast %5 : vector<128x1xf32> to vector<128x32xf32>
    %c0_8 = arith.constant 0 : index
    %c0_9 = arith.constant 0 : index
    %7 = vector.load %arg4[%c0_8, %c0_9] : memref<96x32xbf16, #tpu.memory_space<vmem>>, vector<96x32xbf16>
    %cst = arith.constant dense<0.000000e+00> : vector<128x32xf32>
    %8 = tpu.matmul %1, %7, %cst {dimension_numbers = #tpu.dot_dimension_numbers<[1], [0], [0], [1], [0, 0, 1, 1], [], []>} : vector<128x96xbf16>, vector<96x32xbf16>, vector<128x32xf32> -> vector<128x32xf32>
    %c0_10 = arith.constant 0 : index
    %c0_11 = arith.constant 0 : index
    %9 = vector.load %arg5[%c0_10, %c0_11] : memref<1x32xf32, #tpu.memory_space<vmem>>, vector<1x32xf32>
    %10 = vector.broadcast %9 : vector<1x32xf32> to vector<128x32xf32>
    %11 = arith.addf %8, %10 : vector<128x32xf32>
    %12 = arith.mulf %11, %6 : vector<128x32xf32>
    %c0_12 = arith.constant 0 : index
    %c0_13 = arith.constant 0 : index
    %13 = vector.load %arg7[%c0_12, %c0_13] : memref<1x96xf32, #tpu.memory_space<vmem>>, vector<1x96xf32>
    %c0_14 = arith.constant 0 : index
    %c0_15 = arith.constant 0 : index
    %14 = vector.load %arg9[%c0_14, %c0_15] : memref<1x32xf32, #tpu.memory_space<vmem>>, vector<1x32xf32>
    %15 = vector.shape_cast %12 : vector<128x32xf32> to vector<8x16x32xf32>
    %16 = arith.truncf %15 : vector<8x16x32xf32> to vector<8x16x32xbf16>
    %cst_16 = arith.constant dense<0.000000e+00> : vector<8x16x32xf32>
    %17 = tpu.matmul %2, %16, %cst_16 {dimension_numbers = #tpu.dot_dimension_numbers<[2], [1], [1], [2], [0, 0, 0, 1, 1, 2], [0], [0]>} : vector<8x16x16xbf16>, vector<8x16x32xbf16>, vector<8x16x32xf32> -> vector<8x16x32xf32>
    %18 = vector.shape_cast %17 : vector<8x16x32xf32> to vector<128x32xf32>
    %19 = tpu.concatenate %18, %12 in 1 : vector<128x32xf32>, vector<128x32xf32> -> vector<128x64xf32>
    %c0_17 = arith.constant 0 : index
    %c0_18 = arith.constant 0 : index
    %20 = vector.load %arg6[%c0_17, %c0_18] : memref<64x96xbf16, #tpu.memory_space<vmem>>, vector<64x96xbf16>
    %21 = arith.truncf %19 : vector<128x64xf32> to vector<128x64xbf16>
    %cst_19 = arith.constant dense<0.000000e+00> : vector<128x96xf32>
    %22 = tpu.matmul %21, %20, %cst_19 {dimension_numbers = #tpu.dot_dimension_numbers<[1], [0], [0], [1], [0, 0, 1, 1], [], []>} : vector<128x64xbf16>, vector<64x96xbf16>, vector<128x96xf32> -> vector<128x96xf32>
    %23 = vector.broadcast %13 : vector<1x96xf32> to vector<128x96xf32>
    %24 = arith.addf %22, %23 : vector<128x96xf32>
    %25 = vector.extract_strided_slice %24 {offsets = [0, 0], sizes = [128, 32], strides = [1, 1]} : vector<128x96xf32> to vector<128x32xf32>
    %26 = arith.negf %25 : vector<128x32xf32>
    %27 = math.exp %26 : vector<128x32xf32>
    %cst_20 = arith.constant 1.000000e+00 : f32
    %28 = vector.broadcast %cst_20 : f32 to vector<128x32xf32>
    %29 = arith.addf %28, %27 : vector<128x32xf32>
    %30 = arith.divf %28, %29 : vector<128x32xf32>
    %31 = vector.extract_strided_slice %24 {offsets = [0, 32], sizes = [128, 32], strides = [1, 1]} : vector<128x96xf32> to vector<128x32xf32>
    %32 = arith.negf %31 : vector<128x32xf32>
    %33 = math.exp %32 : vector<128x32xf32>
    %cst_21 = arith.constant 1.000000e+00 : f32
    %34 = vector.broadcast %cst_21 : f32 to vector<128x32xf32>
    %35 = arith.addf %34, %33 : vector<128x32xf32>
    %36 = arith.divf %34, %35 : vector<128x32xf32>
    %37 = vector.extract_strided_slice %24 {offsets = [0, 64], sizes = [128, 32], strides = [1, 1]} : vector<128x96xf32> to vector<128x32xf32>
    %38 = arith.mulf %36, %12 : vector<128x32xf32>
    %c0_22 = arith.constant 0 : index
    %c0_23 = arith.constant 0 : index
    %39 = vector.load %arg8[%c0_22, %c0_23] : memref<32x32xbf16, #tpu.memory_space<vmem>>, vector<32x32xbf16>
    %40 = arith.truncf %38 : vector<128x32xf32> to vector<128x32xbf16>
    %cst_24 = arith.constant dense<0.000000e+00> : vector<128x32xf32>
    %41 = tpu.matmul %40, %39, %cst_24 {dimension_numbers = #tpu.dot_dimension_numbers<[1], [0], [0], [1], [0, 0, 1, 1], [], []>} : vector<128x32xbf16>, vector<32x32xbf16>, vector<128x32xf32> -> vector<128x32xf32>
    %42 = arith.addf %37, %41 : vector<128x32xf32>
    %43 = vector.broadcast %14 : vector<1x32xf32> to vector<128x32xf32>
    %44 = arith.addf %42, %43 : vector<128x32xf32>
    %45 = math.tanh %44 : vector<128x32xf32>
    %46 = arith.mulf %45, %30 : vector<128x32xf32>
    %cst_25 = arith.constant 1.000000e+00 : f32
    %47 = vector.broadcast %cst_25 : f32 to vector<128x32xf32>
    %48 = arith.subf %47, %30 : vector<128x32xf32>
    %49 = arith.mulf %12, %48 : vector<128x32xf32>
    %50 = arith.addf %46, %49 : vector<128x32xf32>
    %51 = arith.mulf %50, %6 : vector<128x32xf32>
    %52 = vector.shape_cast %51 : vector<128x32xf32> to vector<8x16x32xf32>
    %53 = arith.truncf %52 : vector<8x16x32xf32> to vector<8x16x32xbf16>
    %cst_26 = arith.constant dense<0.000000e+00> : vector<8x16x32xf32>
    %54 = tpu.matmul %2, %53, %cst_26 {dimension_numbers = #tpu.dot_dimension_numbers<[2], [1], [1], [2], [0, 0, 0, 1, 1, 2], [0], [0]>} : vector<8x16x16xbf16>, vector<8x16x32xbf16>, vector<8x16x32xf32> -> vector<8x16x32xf32>
    %55 = vector.shape_cast %54 : vector<8x16x32xf32> to vector<128x32xf32>
    %56 = tpu.concatenate %55, %51 in 1 : vector<128x32xf32>, vector<128x32xf32> -> vector<128x64xf32>
    %c0_27 = arith.constant 0 : index
    %c0_28 = arith.constant 0 : index
    %57 = vector.load %arg6[%c0_27, %c0_28] : memref<64x96xbf16, #tpu.memory_space<vmem>>, vector<64x96xbf16>
    %58 = arith.truncf %56 : vector<128x64xf32> to vector<128x64xbf16>
    %cst_29 = arith.constant dense<0.000000e+00> : vector<128x96xf32>
    %59 = tpu.matmul %58, %57, %cst_29 {dimension_numbers = #tpu.dot_dimension_numbers<[1], [0], [0], [1], [0, 0, 1, 1], [], []>} : vector<128x64xbf16>, vector<64x96xbf16>, vector<128x96xf32> -> vector<128x96xf32>
    %60 = vector.broadcast %13 : vector<1x96xf32> to vector<128x96xf32>
    %61 = arith.addf %59, %60 : vector<128x96xf32>
    %62 = vector.extract_strided_slice %61 {offsets = [0, 0], sizes = [128, 32], strides = [1, 1]} : vector<128x96xf32> to vector<128x32xf32>
    %63 = arith.negf %62 : vector<128x32xf32>
    %64 = math.exp %63 : vector<128x32xf32>
    %cst_30 = arith.constant 1.000000e+00 : f32
    %65 = vector.broadcast %cst_30 : f32 to vector<128x32xf32>
    %66 = arith.addf %65, %64 : vector<128x32xf32>
    %67 = arith.divf %65, %66 : vector<128x32xf32>
    %68 = vector.extract_strided_slice %61 {offsets = [0, 32], sizes = [128, 32], strides = [1, 1]} : vector<128x96xf32> to vector<128x32xf32>
    %69 = arith.negf %68 : vector<128x32xf32>
    %70 = math.exp %69 : vector<128x32xf32>
    %cst_31 = arith.constant 1.000000e+00 : f32
    %71 = vector.broadcast %cst_31 : f32 to vector<128x32xf32>
    %72 = arith.addf %71, %70 : vector<128x32xf32>
    %73 = arith.divf %71, %72 : vector<128x32xf32>
    %74 = vector.extract_strided_slice %61 {offsets = [0, 64], sizes = [128, 32], strides = [1, 1]} : vector<128x96xf32> to vector<128x32xf32>
    %75 = arith.mulf %73, %51 : vector<128x32xf32>
    %c0_32 = arith.constant 0 : index
    %c0_33 = arith.constant 0 : index
    %76 = vector.load %arg8[%c0_32, %c0_33] : memref<32x32xbf16, #tpu.memory_space<vmem>>, vector<32x32xbf16>
    %77 = arith.truncf %75 : vector<128x32xf32> to vector<128x32xbf16>
    %cst_34 = arith.constant dense<0.000000e+00> : vector<128x32xf32>
    %78 = tpu.matmul %77, %76, %cst_34 {dimension_numbers = #tpu.dot_dimension_numbers<[1], [0], [0], [1], [0, 0, 1, 1], [], []>} : vector<128x32xbf16>, vector<32x32xbf16>, vector<128x32xf32> -> vector<128x32xf32>
    %79 = arith.addf %74, %78 : vector<128x32xf32>
    %80 = vector.broadcast %14 : vector<1x32xf32> to vector<128x32xf32>
    %81 = arith.addf %79, %80 : vector<128x32xf32>
    %82 = math.tanh %81 : vector<128x32xf32>
    %83 = arith.mulf %82, %67 : vector<128x32xf32>
    %cst_35 = arith.constant 1.000000e+00 : f32
    %84 = vector.broadcast %cst_35 : f32 to vector<128x32xf32>
    %85 = arith.subf %84, %67 : vector<128x32xf32>
    %86 = arith.mulf %51, %85 : vector<128x32xf32>
    %87 = arith.addf %83, %86 : vector<128x32xf32>
    %88 = arith.mulf %87, %6 : vector<128x32xf32>
    %c0_36 = arith.constant 0 : index
    %c0_37 = arith.constant 0 : index
    %89 = vector.load %arg10[%c0_36, %c0_37] : memref<32x96xbf16, #tpu.memory_space<vmem>>, vector<32x96xbf16>
    %90 = arith.truncf %88 : vector<128x32xf32> to vector<128x32xbf16>
    %cst_38 = arith.constant dense<0.000000e+00> : vector<128x96xf32>
    %91 = tpu.matmul %90, %89, %cst_38 {dimension_numbers = #tpu.dot_dimension_numbers<[1], [0], [0], [1], [0, 0, 1, 1], [], []>} : vector<128x32xbf16>, vector<32x96xbf16>, vector<128x96xf32> -> vector<128x96xf32>
    %92 = vector.extract_strided_slice %91 {offsets = [0, 0], sizes = [128, 32], strides = [1, 1]} : vector<128x96xf32> to vector<128x32xf32>
    %93 = vector.extract_strided_slice %91 {offsets = [0, 32], sizes = [128, 32], strides = [1, 1]} : vector<128x96xf32> to vector<128x32xf32>
    %c127_i32 = arith.constant 127 : i32
    %94 = tpu.dynamic_rotate %93 by %c127_i32 dim 0 : vector<128x32xf32>, i32 -> vector<128x32xf32>
    %95 = arith.addf %92, %94 : vector<128x32xf32>
    %96 = vector.extract_strided_slice %91 {offsets = [0, 64], sizes = [128, 32], strides = [1, 1]} : vector<128x96xf32> to vector<128x32xf32>
    %c126_i32 = arith.constant 126 : i32
    %97 = tpu.dynamic_rotate %96 by %c126_i32 dim 0 : vector<128x32xf32>, i32 -> vector<128x32xf32>
    %98 = arith.addf %95, %97 : vector<128x32xf32>
    %c0_39 = arith.constant 0 : index
    %c0_40 = arith.constant 0 : index
    %99 = vector.load %arg11[%c0_39, %c0_40] : memref<1x32xf32, #tpu.memory_space<vmem>>, vector<1x32xf32>
    %100 = vector.broadcast %99 : vector<1x32xf32> to vector<128x32xf32>
    %101 = arith.addf %98, %100 : vector<128x32xf32>
    %cst_41 = arith.constant 0.000000e+00 : f32
    %102 = vector.broadcast %cst_41 : f32 to vector<128x32xf32>
    %103 = arith.maximumf %101, %102 : vector<128x32xf32>
    %c127_i32_42 = arith.constant 127 : i32
    %104 = tpu.dynamic_rotate %103 by %c127_i32_42 dim 0 : vector<128x32xf32>, i32 -> vector<128x32xf32>
    %105 = arith.maximumf %103, %104 : vector<128x32xf32>
    %c126_i32_43 = arith.constant 126 : i32
    %106 = tpu.dynamic_rotate %103 by %c126_i32_43 dim 0 : vector<128x32xf32>, i32 -> vector<128x32xf32>
    %107 = arith.maximumf %105, %106 : vector<128x32xf32>
    %c0_44 = arith.constant 0 : index
    %c0_45 = arith.constant 0 : index
    %108 = vector.load %arg12[%c0_44, %c0_45] : memref<32x32xbf16, #tpu.memory_space<vmem>>, vector<32x32xbf16>
    %109 = arith.truncf %107 : vector<128x32xf32> to vector<128x32xbf16>
    %cst_46 = arith.constant dense<0.000000e+00> : vector<128x32xf32>
    %110 = tpu.matmul %109, %108, %cst_46 {dimension_numbers = #tpu.dot_dimension_numbers<[1], [0], [0], [1], [0, 0, 1, 1], [], []>} : vector<128x32xbf16>, vector<32x32xbf16>, vector<128x32xf32> -> vector<128x32xf32>
    %c0_47 = arith.constant 0 : index
    %c0_48 = arith.constant 0 : index
    %111 = vector.load %arg13[%c0_47, %c0_48] : memref<1x32xf32, #tpu.memory_space<vmem>>, vector<1x32xf32>
    %112 = vector.broadcast %111 : vector<1x32xf32> to vector<128x32xf32>
    %113 = arith.addf %110, %112 : vector<128x32xf32>
    %cst_49 = arith.constant 0.000000e+00 : f32
    %114 = vector.broadcast %cst_49 : f32 to vector<128x32xf32>
    %115 = arith.maximumf %113, %114 : vector<128x32xf32>
    %c126_i32_50 = arith.constant 126 : i32
    %116 = tpu.dynamic_rotate %115 by %c126_i32_50 dim 0 : vector<128x32xf32>, i32 -> vector<128x32xf32>
    %117 = arith.maximumf %115, %116 : vector<128x32xf32>
    %c0_51 = arith.constant 0 : index
    %c0_52 = arith.constant 0 : index
    %118 = vector.load %arg19[%c0_51, %c0_52] : memref<32x2xbf16, #tpu.memory_space<vmem>>, vector<32x2xbf16>
    %119 = arith.truncf %117 : vector<128x32xf32> to vector<128x32xbf16>
    %cst_53 = arith.constant dense<0.000000e+00> : vector<128x2xf32>
    %120 = tpu.matmul %119, %118, %cst_53 {dimension_numbers = #tpu.dot_dimension_numbers<[1], [0], [0], [1], [0, 0, 1, 1], [], []>} : vector<128x32xbf16>, vector<32x2xbf16>, vector<128x2xf32> -> vector<128x2xf32>
    %c0_54 = arith.constant 0 : index
    %c0_55 = arith.constant 0 : index
    %121 = vector.load %arg20[%c0_54, %c0_55] : memref<1x2xf32, #tpu.memory_space<vmem>>, vector<1x2xf32>
    %122 = vector.broadcast %121 : vector<1x2xf32> to vector<128x2xf32>
    %123 = arith.addf %120, %122 : vector<128x2xf32>
    %c0_56 = arith.constant 0 : index
    %c0_57 = arith.constant 0 : index
    %124 = vector.load %arg14[%c0_56, %c0_57] : memref<32x384xbf16, #tpu.memory_space<vmem>>, vector<32x384xbf16>
    %125 = arith.truncf %88 : vector<128x32xf32> to vector<128x32xbf16>
    %cst_58 = arith.constant dense<0.000000e+00> : vector<128x384xf32>
    %126 = tpu.matmul %125, %124, %cst_58 {dimension_numbers = #tpu.dot_dimension_numbers<[1], [0], [0], [1], [0, 0, 1, 1], [], []>} : vector<128x32xbf16>, vector<32x384xbf16>, vector<128x384xf32> -> vector<128x384xf32>
    %c0_59 = arith.constant 0 : index
    %c0_60 = arith.constant 0 : index
    %127 = vector.load %arg15[%c0_59, %c0_60] : memref<96x384xbf16, #tpu.memory_space<vmem>>, vector<96x384xbf16>
    %cst_61 = arith.constant dense<0.000000e+00> : vector<128x384xf32>
    %128 = tpu.matmul %1, %127, %cst_61 {dimension_numbers = #tpu.dot_dimension_numbers<[1], [0], [0], [1], [0, 0, 1, 1], [], []>} : vector<128x96xbf16>, vector<96x384xbf16>, vector<128x384xf32> -> vector<128x384xf32>
    %129 = arith.addf %126, %128 : vector<128x384xf32>
    %130 = vector.extract_strided_slice %129 {offsets = [0, 0], sizes = [128, 128], strides = [1, 1]} : vector<128x384xf32> to vector<128x128xf32>
    %131 = vector.extract_strided_slice %129 {offsets = [0, 128], sizes = [128, 128], strides = [1, 1]} : vector<128x384xf32> to vector<128x128xf32>
    %c127_i32_62 = arith.constant 127 : i32
    %132 = tpu.dynamic_rotate %131 by %c127_i32_62 dim 0 : vector<128x128xf32>, i32 -> vector<128x128xf32>
    %133 = arith.addf %130, %132 : vector<128x128xf32>
    %134 = vector.extract_strided_slice %129 {offsets = [0, 256], sizes = [128, 128], strides = [1, 1]} : vector<128x384xf32> to vector<128x128xf32>
    %c126_i32_63 = arith.constant 126 : i32
    %135 = tpu.dynamic_rotate %134 by %c126_i32_63 dim 0 : vector<128x128xf32>, i32 -> vector<128x128xf32>
    %136 = arith.addf %133, %135 : vector<128x128xf32>
    %c0_64 = arith.constant 0 : index
    %c0_65 = arith.constant 0 : index
    %137 = vector.load %arg16[%c0_64, %c0_65] : memref<1x128xf32, #tpu.memory_space<vmem>>, vector<1x128xf32>
    %138 = vector.broadcast %137 : vector<1x128xf32> to vector<128x128xf32>
    %139 = arith.addf %136, %138 : vector<128x128xf32>
    %cst_66 = arith.constant 0.000000e+00 : f32
    %140 = vector.broadcast %cst_66 : f32 to vector<128x128xf32>
    %141 = arith.maximumf %139, %140 : vector<128x128xf32>
    %c127_i32_67 = arith.constant 127 : i32
    %142 = tpu.dynamic_rotate %141 by %c127_i32_67 dim 0 : vector<128x128xf32>, i32 -> vector<128x128xf32>
    %143 = arith.maximumf %141, %142 : vector<128x128xf32>
    %c126_i32_68 = arith.constant 126 : i32
    %144 = tpu.dynamic_rotate %141 by %c126_i32_68 dim 0 : vector<128x128xf32>, i32 -> vector<128x128xf32>
    %145 = arith.maximumf %143, %144 : vector<128x128xf32>
    %c0_69 = arith.constant 0 : index
    %c0_70 = arith.constant 0 : index
    %146 = vector.load %arg17[%c0_69, %c0_70] : memref<128x128xbf16, #tpu.memory_space<vmem>>, vector<128x128xbf16>
    %147 = arith.truncf %145 : vector<128x128xf32> to vector<128x128xbf16>
    %cst_71 = arith.constant dense<0.000000e+00> : vector<128x128xf32>
    %148 = tpu.matmul %147, %146, %cst_71 {dimension_numbers = #tpu.dot_dimension_numbers<[1], [0], [0], [1], [0, 0, 1, 1], [], []>} : vector<128x128xbf16>, vector<128x128xbf16>, vector<128x128xf32> -> vector<128x128xf32>
    %c0_72 = arith.constant 0 : index
    %c0_73 = arith.constant 0 : index
    %149 = vector.load %arg18[%c0_72, %c0_73] : memref<1x128xf32, #tpu.memory_space<vmem>>, vector<1x128xf32>
    %150 = vector.broadcast %149 : vector<1x128xf32> to vector<128x128xf32>
    %151 = arith.addf %148, %150 : vector<128x128xf32>
    %cst_74 = arith.constant 0.000000e+00 : f32
    %152 = vector.broadcast %cst_74 : f32 to vector<128x128xf32>
    %153 = arith.maximumf %151, %152 : vector<128x128xf32>
    %c126_i32_75 = arith.constant 126 : i32
    %154 = tpu.dynamic_rotate %153 by %c126_i32_75 dim 0 : vector<128x128xf32>, i32 -> vector<128x128xf32>
    %155 = arith.maximumf %153, %154 : vector<128x128xf32>
    %c0_76 = arith.constant 0 : index
    %c0_77 = arith.constant 0 : index
    %156 = vector.load %arg21[%c0_76, %c0_77] : memref<128x2xbf16, #tpu.memory_space<vmem>>, vector<128x2xbf16>
    %157 = arith.truncf %155 : vector<128x128xf32> to vector<128x128xbf16>
    %cst_78 = arith.constant dense<0.000000e+00> : vector<128x2xf32>
    %158 = tpu.matmul %157, %156, %cst_78 {dimension_numbers = #tpu.dot_dimension_numbers<[1], [0], [0], [1], [0, 0, 1, 1], [], []>} : vector<128x128xbf16>, vector<128x2xbf16>, vector<128x2xf32> -> vector<128x2xf32>
    %c0_79 = arith.constant 0 : index
    %c0_80 = arith.constant 0 : index
    %159 = vector.load %arg22[%c0_79, %c0_80] : memref<1x2xf32, #tpu.memory_space<vmem>>, vector<1x2xf32>
    %160 = vector.broadcast %159 : vector<1x2xf32> to vector<128x2xf32>
    %161 = arith.addf %158, %160 : vector<128x2xf32>
    %162 = arith.mulf %123, %161 : vector<128x2xf32>
    %163 = vector.shape_cast %162 : vector<128x2xf32> to vector<8x16x2xf32>
    %164 = tpu.iota {dimensions = array<i32: 1>} : vector<8x16x2xi32>
    %c4_i32 = arith.constant 4 : i32
    %c0_i32 = arith.constant 0 : i32
    %165 = arith.cmpi eq, %c4_i32, %c0_i32 : i32
    %c1_i32 = arith.constant 1 : i32
    %166 = arith.select %165, %c1_i32, %c4_i32 : i32
    %167 = vector.broadcast %166 : i32 to vector<8x16x2xi32>
    %168 = arith.remsi %164, %167 : vector<8x16x2xi32>
    %c0_i32_81 = arith.constant 0 : i32
    %169 = vector.broadcast %c0_i32_81 : i32 to vector<8x16x2xi32>
    %170 = arith.cmpi ne, %168, %169 : vector<8x16x2xi32>
    %c0_i32_82 = arith.constant 0 : i32
    %171 = vector.broadcast %c0_i32_82 : i32 to vector<8x16x2xi32>
    %172 = arith.cmpi slt, %168, %171 : vector<8x16x2xi32>
    %c0_i32_83 = arith.constant 0 : i32
    %173 = arith.cmpi slt, %166, %c0_i32_83 : i32
    %174 = vector.broadcast %173 : i1 to vector<8x16x2xi1>
    %175 = vector.broadcast %174 : vector<8x16x2xi1> to vector<8x16x2xi1>
    %176 = arith.xori %172, %175 : vector<8x16x2xi1>
    %177 = arith.andi %176, %170 : vector<8x16x2xi1>
    %178 = vector.broadcast %166 : i32 to vector<8x16x2xi32>
    %179 = arith.addi %168, %178 : vector<8x16x2xi32>
    %180 = arith.select %177, %179, %168 : vector<8x16x2xi1>, vector<8x16x2xi32>
    %c0_i32_84 = arith.constant 0 : i32
    %181 = vector.broadcast %c0_i32_84 : i32 to vector<8x16x2xi32>
    %182 = arith.cmpi eq, %180, %181 : vector<8x16x2xi32>
    %c12_i32 = arith.constant 12 : i32
    %183 = vector.broadcast %c12_i32 : i32 to vector<8x16x2xi32>
    %184 = arith.cmpi slt, %164, %183 : vector<8x16x2xi32>
    %185 = arith.andi %182, %184 : vector<8x16x2xi1>
    %cst_85 = arith.constant 0.000000e+00 : f32
    %186 = vector.broadcast %cst_85 : f32 to vector<8x16x2xf32>
    %187 = arith.select %185, %163, %186 : vector<8x16x2xi1>, vector<8x16x2xf32>
    %cst_86 = arith.constant dense<0.000000e+00> : vector<8x2xf32>
    %188 = vector.multi_reduction <add>, %187, %cst_86 [1] : vector<8x16x2xf32> to vector<8x2xf32>
    %cst_87 = arith.constant 0.333333343 : f32
    %189 = vector.broadcast %cst_87 : f32 to vector<8x2xf32>
    %190 = arith.mulf %188, %189 : vector<8x2xf32>
    %191 = arith.negf %190 : vector<8x2xf32>
    %192 = math.exp %191 : vector<8x2xf32>
    %cst_88 = arith.constant 1.000000e+00 : f32
    %193 = vector.broadcast %cst_88 : f32 to vector<8x2xf32>
    %194 = arith.addf %193, %192 : vector<8x2xf32>
    %195 = arith.divf %193, %194 : vector<8x2xf32>
    %c0_89 = arith.constant 0 : index
    %c0_90 = arith.constant 0 : index
    %196 = vector.load %arg23[%c0_89, %c0_90] : memref<8x2xf32, #tpu.memory_space<vmem>>, vector<8x2xf32>
    tpu.vector_store %arg23[%c0_89, %c0_90], %195 {strides = array<i32>} : memref<8x2xf32, #tpu.memory_space<vmem>>, vector<8x2xf32>,
    return
  }
  func.func @transform_0(%arg0: i32) -> (i32, i32, i32) {
    %c0_i32 = arith.constant 0 : i32
    %c0_i32_0 = arith.constant 0 : i32
    %c0_i32_1 = arith.constant 0 : i32
    return %arg0, %c0_i32, %c0_i32_0 : i32, i32, i32
  }
  func.func @transform_1(%arg0: i32) -> (i32, i32, i32) {
    %c0_i32 = arith.constant 0 : i32
    %c0_i32_0 = arith.constant 0 : i32
    %c0_i32_1 = arith.constant 0 : i32
    return %arg0, %c0_i32, %c0_i32_0 : i32, i32, i32
  }
  func.func @transform_2(%arg0: i32) -> (i32, i32, i32) {
    %c0_i32 = arith.constant 0 : i32
    %c0_i32_0 = arith.constant 0 : i32
    %c0_i32_1 = arith.constant 0 : i32
    return %arg0, %c0_i32, %c0_i32_0 : i32, i32, i32
  }
  func.func @transform_3(%arg0: i32) -> (i32, i32) {
    %c0_i32 = arith.constant 0 : i32
    %c0_i32_0 = arith.constant 0 : i32
    %c0_i32_1 = arith.constant 0 : i32
    return %c0_i32, %c0_i32_0 : i32, i32
  }
  func.func @transform_4(%arg0: i32) -> (i32, i32) {
    %c0_i32 = arith.constant 0 : i32
    %c0_i32_0 = arith.constant 0 : i32
    %c0_i32_1 = arith.constant 0 : i32
    return %c0_i32, %c0_i32_0 : i32, i32
  }
  func.func @transform_5(%arg0: i32) -> (i32, i32) {
    %c0_i32 = arith.constant 0 : i32
    %c0_i32_0 = arith.constant 0 : i32
    %c0_i32_1 = arith.constant 0 : i32
    return %c0_i32, %c0_i32_0 : i32, i32
  }
  func.func @transform_6(%arg0: i32) -> (i32, i32) {
    %c0_i32 = arith.constant 0 : i32
    %c0_i32_0 = arith.constant 0 : i32
    %c0_i32_1 = arith.constant 0 : i32
    return %c0_i32, %c0_i32_0 : i32, i32
  }
  func.func @transform_7(%arg0: i32) -> (i32, i32) {
    %c0_i32 = arith.constant 0 : i32
    %c0_i32_0 = arith.constant 0 : i32
    %c0_i32_1 = arith.constant 0 : i32
    return %c0_i32, %c0_i32_0 : i32, i32
  }
  func.func @transform_8(%arg0: i32) -> (i32, i32) {
    %c0_i32 = arith.constant 0 : i32
    %c0_i32_0 = arith.constant 0 : i32
    %c0_i32_1 = arith.constant 0 : i32
    return %c0_i32, %c0_i32_0 : i32, i32
  }
  func.func @transform_9(%arg0: i32) -> (i32, i32) {
    %c0_i32 = arith.constant 0 : i32
    %c0_i32_0 = arith.constant 0 : i32
    %c0_i32_1 = arith.constant 0 : i32
    return %c0_i32, %c0_i32_0 : i32, i32
  }
  func.func @transform_10(%arg0: i32) -> (i32, i32) {
    %c0_i32 = arith.constant 0 : i32
    %c0_i32_0 = arith.constant 0 : i32
    %c0_i32_1 = arith.constant 0 : i32
    return %c0_i32, %c0_i32_0 : i32, i32
  }
  func.func @transform_11(%arg0: i32) -> (i32, i32) {
    %c0_i32 = arith.constant 0 : i32
    %c0_i32_0 = arith.constant 0 : i32
    %c0_i32_1 = arith.constant 0 : i32
    return %c0_i32, %c0_i32_0 : i32, i32
  }
  func.func @transform_12(%arg0: i32) -> (i32, i32) {
    %c0_i32 = arith.constant 0 : i32
    %c0_i32_0 = arith.constant 0 : i32
    %c0_i32_1 = arith.constant 0 : i32
    return %c0_i32, %c0_i32_0 : i32, i32
  }
  func.func @transform_13(%arg0: i32) -> (i32, i32) {
    %c0_i32 = arith.constant 0 : i32
    %c0_i32_0 = arith.constant 0 : i32
    %c0_i32_1 = arith.constant 0 : i32
    return %c0_i32, %c0_i32_0 : i32, i32
  }
  func.func @transform_14(%arg0: i32) -> (i32, i32) {
    %c0_i32 = arith.constant 0 : i32
    %c0_i32_0 = arith.constant 0 : i32
    %c0_i32_1 = arith.constant 0 : i32
    return %c0_i32, %c0_i32_0 : i32, i32
  }
  func.func @transform_15(%arg0: i32) -> (i32, i32) {
    %c0_i32 = arith.constant 0 : i32
    %c0_i32_0 = arith.constant 0 : i32
    %c0_i32_1 = arith.constant 0 : i32
    return %c0_i32, %c0_i32_0 : i32, i32
  }
  func.func @transform_16(%arg0: i32) -> (i32, i32) {
    %c0_i32 = arith.constant 0 : i32
    %c0_i32_0 = arith.constant 0 : i32
    %c0_i32_1 = arith.constant 0 : i32
    return %c0_i32, %c0_i32_0 : i32, i32
  }
  func.func @transform_17(%arg0: i32) -> (i32, i32) {
    %c0_i32 = arith.constant 0 : i32
    %c0_i32_0 = arith.constant 0 : i32
    %c0_i32_1 = arith.constant 0 : i32
    return %c0_i32, %c0_i32_0 : i32, i32
  }
  func.func @transform_18(%arg0: i32) -> (i32, i32) {
    %c0_i32 = arith.constant 0 : i32
    %c0_i32_0 = arith.constant 0 : i32
    %c0_i32_1 = arith.constant 0 : i32
    return %c0_i32, %c0_i32_0 : i32, i32
  }
  func.func @transform_19(%arg0: i32) -> (i32, i32) {
    %c0_i32 = arith.constant 0 : i32
    %c0_i32_0 = arith.constant 0 : i32
    %c0_i32_1 = arith.constant 0 : i32
    return %c0_i32, %c0_i32_0 : i32, i32
  }
  func.func @transform_20(%arg0: i32) -> (i32, i32) {
    %c0_i32 = arith.constant 0 : i32
    %c0_i32_0 = arith.constant 0 : i32
    %c0_i32_1 = arith.constant 0 : i32
    return %c0_i32, %c0_i32_0 : i32, i32
  }
  func.func @transform_21(%arg0: i32) -> (i32, i32) {
    %c0_i32 = arith.constant 0 : i32
    %c0_i32_0 = arith.constant 0 : i32
    %c0_i32_1 = arith.constant 0 : i32
    return %c0_i32, %c0_i32_0 : i32, i32
  }
  func.func @transform_22(%arg0: i32) -> (i32, i32) {
    %c0_i32 = arith.constant 0 : i32
    %c0_i32_0 = arith.constant 0 : i32
    return %arg0, %c0_i32 : i32, i32
  }
}

</mosaic_0001>

<llo_original>
// kernel: tpu_custom_call.1
$region0: #{tpu_custom_call.1}
  #allocation0 [shape = 'u32[]', space=smem, size = 0x4, offset = 0x4, fixed_abs, tag = 'smem constant byte address 0x4 - core index']
  #allocation1 [shape = 'u32[72,128]{1,0:T(1,128)}', space=vmem, size = 0x9000, scoped, tag = 'internal scratch']
  %s0 = inlined_call_operand.vmem [shape: bf16[16,16,96], index: 0, kind: input, shape index: {}]
  %s1 = inlined_call_operand.vmem [shape: bf16[16,16,16], index: 1, kind: input, shape index: {}]
  %s2 = inlined_call_operand.vmem [shape: f32[16,16,1], index: 2, kind: input, shape index: {}]
  %s3 = inlined_call_operand.vmem [shape: bf16[96,32], index: 3, kind: input, shape index: {}]
  %s4 = inlined_call_operand.vmem [shape: f32[1,32], index: 4, kind: input, shape index: {}]
  %s5 = inlined_call_operand.hbm [shape: bf16[64,96], index: 5, kind: input, shape index: {}]
  %s6 = inlined_call_operand.vmem [shape: f32[1,96], index: 6, kind: input, shape index: {}]
  %s7 = inlined_call_operand.vmem [shape: bf16[32,32], index: 7, kind: input, shape index: {}]
  %s8 = inlined_call_operand.vmem [shape: f32[1,32], index: 8, kind: input, shape index: {}]
  %s9 = inlined_call_operand.hbm [shape: bf16[32,96], index: 9, kind: input, shape index: {}]
  %s10 = inlined_call_operand.vmem [shape: f32[1,32], index: 10, kind: input, shape index: {}]
  %s11 = inlined_call_operand.hbm [shape: bf16[32,32], index: 11, kind: input, shape index: {}]
  %s12 = inlined_call_operand.vmem [shape: f32[1,32], index: 12, kind: input, shape index: {}]
  %s13 = inlined_call_operand.hbm [shape: bf16[32,384], index: 13, kind: input, shape index: {}]
  %s14 = inlined_call_operand.vmem [shape: bf16[96,384], index: 14, kind: input, shape index: {}]
  %s15 = inlined_call_operand.vmem [shape: f32[1,128], index: 15, kind: input, shape index: {}]
  %s16 = inlined_call_operand.hbm [shape: bf16[128,128], index: 16, kind: input, shape index: {}]
  %s17 = inlined_call_operand.vmem [shape: f32[1,128], index: 17, kind: input, shape index: {}]
  %s18 = inlined_call_operand.vmem [shape: bf16[32,2], index: 18, kind: input, shape index: {}]
  %s19 = inlined_call_operand.vmem [shape: f32[1,2], index: 19, kind: input, shape index: {}]
  %s20 = inlined_call_operand.vmem [shape: bf16[128,2], index: 20, kind: input, shape index: {}]
  %s21 = inlined_call_operand.vmem [shape: f32[1,2], index: 21, kind: input, shape index: {}]
  %s22 = inlined_call_operand.vmem [shape: f32[16,2], index: 22, kind: output, shape index: {}]
  %s23 = sld [smem:[#allocation0]]
  $region141: #{tpu_custom_call.1} parent=0
    _
  %s25 = ssub.s32 1, %s23
  %s26 = scalar_select 0, %s25, %s23
  $region1: #{tpu_custom_call.1} parent=0
    #allocation2 [shape = 'u8[16384]{0}', space=vmem, size = 0x4000, scoped, tag = 'input window, operand 5, single buffered']
    #allocation3 [shape = 's32[2]{0}', space=sflag, size = 0x8, scoped, tag = 'scoped memory for tpu_custom_call.1']
    #allocation4 [shape = 'u8[8192]{0}', space=vmem, size = 0x2000, scoped, tag = 'input window, operand 9, single buffered']
    #allocation5 [shape = 's32[1]{0}', space=sflag, size = 0x4, scoped, tag = 'scoped memory for tpu_custom_call.1']
    #allocation6 [shape = 'u8[8192]{0}', space=vmem, size = 0x2000, scoped, tag = 'input window, operand 11, single buffered']
    #allocation7 [shape = 'u8[24576]{0}', space=vmem, size = 0x6000, scoped, tag = 'input window, operand 13, single buffered']
    #allocation8 [shape = 's32[1]{0}', space=sflag, size = 0x4, scoped, tag = 'scoped memory for tpu_custom_call.1']
    #allocation9 [shape = 'u8[32768]{0}', space=vmem, size = 0x8000, scoped, tag = 'input window, operand 16, single buffered']
    %27 = vsyncpa [#allocation3], 0
    %28 = vsyncpa [#allocation5], 0
    %29 = vsyncpa [#allocation8], 0
    loop: start=0, step=1, limit=4
    $region2: #{tpu_custom_call.1} parent=1 // loop_pre_header
      _
    $region3: #{tpu_custom_call.1} parent=1 // loop_header
      %s31 = sphi 0, %s35
      %p32 = scmp.ge.s32.totalorder %s31, 4
      %s41 = sphi 0, %s43
      %s44 = sphi 0, %s41
      %s45 = sphi 0, %s44
      %s61 = sphi 0, %s45
      %s67 = sphi 0, %s69
      %s70 = sphi 0, %s67
      %s71 = sphi 0, %s70
      %s87 = sphi 0, %s71
      %s93 = sphi 0, %s95
      %s96 = sphi 0, %s93
      %s97 = sphi 0, %s96
      %s113 = sphi 0, %s97
      %s117 = sphi 0, %s117
      %s119 = sphi 0, %s117
      %s120 = sphi 0, %s119
      %s134 = sphi 0, %s120
      %s138 = sphi 0, %s138
      %s140 = sphi 0, %s138
      %s141 = sphi 0, %s140
      %s155 = sphi 0, %s141
      %s159 = sphi 0, %s159
      %s161 = sphi 0, %s159
      %s162 = sphi 0, %s161
      %s176 = sphi 0, %s162
      %s180 = sphi 0, %s180
      %s182 = sphi 0, %s180
      %s183 = sphi 0, %s182
      %s197 = sphi 0, %s183
      %s201 = sphi 0, %s201
      %s203 = sphi 0, %s201
      %s204 = sphi 0, %s203
      %s218 = sphi 0, %s204
      %s222 = sphi 0, %s222
      %s224 = sphi 0, %s222
      %s225 = sphi 0, %s224
      %s239 = sphi 0, %s225
      %s243 = sphi 0, %s243
      %s245 = sphi 0, %s243
      %s246 = sphi 0, %s245
      %s260 = sphi 0, %s246
      %s264 = sphi 0, %s264
      %s266 = sphi 0, %s264
      %s267 = sphi 0, %s266
      %s281 = sphi 0, %s267
      %s285 = sphi 0, %s285
      %s287 = sphi 0, %s285
      %s288 = sphi 0, %s287
      %s302 = sphi 0, %s288
      %s306 = sphi 0, %s306
      %s308 = sphi 0, %s306
      %s309 = sphi 0, %s308
      %s323 = sphi 0, %s309
      %s327 = sphi 0, %s327
      %s329 = sphi 0, %s327
      %s330 = sphi 0, %s329
      %s344 = sphi 0, %s330
      %s348 = sphi 0, %s348
      %s350 = sphi 0, %s348
      %s351 = sphi 0, %s350
      %s365 = sphi 0, %s351
      %s369 = sphi 0, %s369
      %s371 = sphi 0, %s369
      %s372 = sphi 0, %s371
      %s386 = sphi 0, %s372
      %s390 = sphi 0, %s390
      %s392 = sphi 0, %s390
      %s393 = sphi 0, %s392
      %s407 = sphi 0, %s393
      %s411 = sphi 0, %s411
      %s413 = sphi 0, %s411
      %s414 = sphi 0, %s413
      %s428 = sphi 0, %s414
      %s432 = sphi 0, %s432
      %s434 = sphi 0, %s432
      %s435 = sphi 0, %s434
      %s449 = sphi 0, %s435
      %s453 = sphi 0, %s453
      %s455 = sphi 0, %s453
      %s456 = sphi 0, %s455
      %s470 = sphi 0, %s456
      %s474 = sphi 0, %s474
      %s476 = sphi 0, %s474
      %s477 = sphi 0, %s476
      %s491 = sphi 0, %s477
      %s495 = sphi 0, %s495
      %s497 = sphi 0, %s495
      %s498 = sphi 0, %s497
      %s512 = sphi 0, %s498
      %s518 = sphi 0, %s520
      %s521 = sphi 0, %s518
      %s522 = sphi 0, %s521
      %s538 = sphi 0, %s522
    $region4: #{tpu_custom_call.1} parent=1 // loop_header_branch
      %34 = sbr.rel (%p32) target = $region8
    $region5: #{tpu_custom_call.1} parent=1 // loop_body
      %s36 = ssub.s32 %s31, 1
      %s37 = ssub.s32 %s31, 2
      %s38 = sadd.s32 %s31, 1
      %s39 = ssub.s32 %s31, %s38
      %p40 = scmp.eq.s32.totalorder %s39, 0
      %s42 = sadd.s32 %s41, 1
      %s43 = scalar_select %p40, %s41, %s42
      %p46 = pneg %p40
      %p47 = scmp.eq.s32.totalorder %s31, 1
      %p48 = por %p46, %p47
      %p49 = scmp.ne.s32.totalorder %s41, %s44
      %p50 = scmp.eq.s32.totalorder %s31, 0
      %p51 = por %p49, %p50
      %p52 = scmp.ne.s32.totalorder %s41, %s44
      %p53 = scmp.eq.s32.totalorder %s36, 1
      %p54 = por %p52, %p53
      %p55 = scmp.ne.s32.totalorder %s44, %s45
      %p56 = scmp.eq.s32.totalorder %s36, 0
      %p57 = por %p55, %p56
      %p58 = scmp.ne.s32.totalorder %s44, %s45
      %p59 = scmp.eq.s32.totalorder %s37, 1
      %p60 = por %p58, %p59
      %p62 = scmp.ne.s32.totalorder %s45, %s61
      %p63 = scmp.eq.s32.totalorder %s37, 0
      %p64 = por %p62, %p63
      %s65 = ssub.s32 %s31, %s38
      %p66 = scmp.eq.s32.totalorder %s65, 0
      %s68 = sadd.s32 %s67, 1
      %s69 = scalar_select %p66, %s67, %s68
      %p72 = pneg %p66
      %p73 = scmp.eq.s32.totalorder %s31, 1
      %p74 = por %p72, %p73
      %p75 = scmp.ne.s32.totalorder %s67, %s70
      %p76 = scmp.eq.s32.totalorder %s31, 0
      %p77 = por %p75, %p76
      %p78 = scmp.ne.s32.totalorder %s67, %s70
      %p79 = scmp.eq.s32.totalorder %s36, 1
      %p80 = por %p78, %p79
      %p81 = scmp.ne.s32.totalorder %s70, %s71
      %p82 = scmp.eq.s32.totalorder %s36, 0
      %p83 = por %p81, %p82
      %p84 = scmp.ne.s32.totalorder %s70, %s71
      %p85 = scmp.eq.s32.totalorder %s37, 1
      %p86 = por %p84, %p85
      %p88 = scmp.ne.s32.totalorder %s71, %s87
      %p89 = scmp.eq.s32.totalorder %s37, 0
      %p90 = por %p88, %p89
      %s91 = ssub.s32 %s31, %s38
      %p92 = scmp.eq.s32.totalorder %s91, 0
      %s94 = sadd.s32 %s93, 1
      %s95 = scalar_select %p92, %s93, %s94
      %p98 = pneg %p92
      %p99 = scmp.eq.s32.totalorder %s31, 1
      %p100 = por %p98, %p99
      %p101 = scmp.ne.s32.totalorder %s93, %s96
      %p102 = scmp.eq.s32.totalorder %s31, 0
      %p103 = por %p101, %p102
      %p104 = scmp.ne.s32.totalorder %s93, %s96
      %p105 = scmp.eq.s32.totalorder %s36, 1
      %p106 = por %p104, %p105
      %p107 = scmp.ne.s32.totalorder %s96, %s97
      %p108 = scmp.eq.s32.totalorder %s36, 0
      %p109 = por %p107, %p108
      %p110 = scmp.ne.s32.totalorder %s96, %s97
      %p111 = scmp.eq.s32.totalorder %s37, 1
      %p112 = por %p110, %p111
      %p114 = scmp.ne.s32.totalorder %s97, %s113
      %p115 = scmp.eq.s32.totalorder %s37, 0
      %p116 = por %p114, %p115
      %s118 = sadd.s32 %s117, 1
      %p121 = scmp.eq.s32.totalorder %s31, 1
      %p122 = scmp.ne.s32.totalorder %s117, %s119
      %p123 = scmp.eq.s32.totalorder %s31, 0
      %p124 = por %p122, %p123
      %p125 = scmp.ne.s32.totalorder %s117, %s119
      %p126 = scmp.eq.s32.totalorder %s36, 1
      %p127 = por %p125, %p126
      %p128 = scmp.ne.s32.totalorder %s119, %s120
      %p129 = scmp.eq.s32.totalorder %s36, 0
      %p130 = por %p128, %p129
      %p131 = scmp.ne.s32.totalorder %s119, %s120
      %p132 = scmp.eq.s32.totalorder %s37, 1
      %p133 = por %p131, %p132
      %p135 = scmp.ne.s32.totalorder %s120, %s134
      %p136 = scmp.eq.s32.totalorder %s37, 0
      %p137 = por %p135, %p136
      %s139 = sadd.s32 %s138, 1
      %p142 = scmp.eq.s32.totalorder %s31, 1
      %p143 = scmp.ne.s32.totalorder %s138, %s140
      %p144 = scmp.eq.s32.totalorder %s31, 0
      %p145 = por %p143, %p144
      %p146 = scmp.ne.s32.totalorder %s138, %s140
      %p147 = scmp.eq.s32.totalorder %s36, 1
      %p148 = por %p146, %p147
      %p149 = scmp.ne.s32.totalorder %s140, %s141
      %p150 = scmp.eq.s32.totalorder %s36, 0
      %p151 = por %p149, %p150
      %p152 = scmp.ne.s32.totalorder %s140, %s141
      %p153 = scmp.eq.s32.totalorder %s37, 1
      %p154 = por %p152, %p153
      %p156 = scmp.ne.s32.totalorder %s141, %s155
      %p157 = scmp.eq.s32.totalorder %s37, 0
      %p158 = por %p156, %p157
      %s160 = sadd.s32 %s159, 1
      %p163 = scmp.eq.s32.totalorder %s31, 1
      %p164 = scmp.ne.s32.totalorder %s159, %s161
      %p165 = scmp.eq.s32.totalorder %s31, 0
      %p166 = por %p164, %p165
      %p167 = scmp.ne.s32.totalorder %s159, %s161
      %p168 = scmp.eq.s32.totalorder %s36, 1
      %p169 = por %p167, %p168
      %p170 = scmp.ne.s32.totalorder %s161, %s162
      %p171 = scmp.eq.s32.totalorder %s36, 0
      %p172 = por %p170, %p171
      %p173 = scmp.ne.s32.totalorder %s161, %s162
      %p174 = scmp.eq.s32.totalorder %s37, 1
      %p175 = por %p173, %p174
      %p177 = scmp.ne.s32.totalorder %s162, %s176
      %p178 = scmp.eq.s32.totalorder %s37, 0
      %p179 = por %p177, %p178
      %s181 = sadd.s32 %s180, 1
      %p184 = scmp.eq.s32.totalorder %s31, 1
      %p185 = scmp.ne.s32.totalorder %s180, %s182
      %p186 = scmp.eq.s32.totalorder %s31, 0
      %p187 = por %p185, %p186
      %p188 = scmp.ne.s32.totalorder %s180, %s182
      %p189 = scmp.eq.s32.totalorder %s36, 1
      %p190 = por %p188, %p189
      %p191 = scmp.ne.s32.totalorder %s182, %s183
      %p192 = scmp.eq.s32.totalorder %s36, 0
      %p193 = por %p191, %p192
      %p194 = scmp.ne.s32.totalorder %s182, %s183
      %p195 = scmp.eq.s32.totalorder %s37, 1
      %p196 = por %p194, %p195
      %p198 = scmp.ne.s32.totalorder %s183, %s197
      %p199 = scmp.eq.s32.totalorder %s37, 0
      %p200 = por %p198, %p199
      %s202 = sadd.s32 %s201, 1
      %p205 = scmp.eq.s32.totalorder %s31, 1
      %p206 = scmp.ne.s32.totalorder %s201, %s203
      %p207 = scmp.eq.s32.totalorder %s31, 0
      %p208 = por %p206, %p207
      %p209 = scmp.ne.s32.totalorder %s201, %s203
      %p210 = scmp.eq.s32.totalorder %s36, 1
      %p211 = por %p209, %p210
      %p212 = scmp.ne.s32.totalorder %s203, %s204
      %p213 = scmp.eq.s32.totalorder %s36, 0
      %p214 = por %p212, %p213
      %p215 = scmp.ne.s32.totalorder %s203, %s204
      %p216 = scmp.eq.s32.totalorder %s37, 1
      %p217 = por %p215, %p216
      %p219 = scmp.ne.s32.totalorder %s204, %s218
      %p220 = scmp.eq.s32.totalorder %s37, 0
      %p221 = por %p219, %p220
      %s223 = sadd.s32 %s222, 1
      %p226 = scmp.eq.s32.totalorder %s31, 1
      %p227 = scmp.ne.s32.totalorder %s222, %s224
      %p228 = scmp.eq.s32.totalorder %s31, 0
      %p229 = por %p227, %p228
      %p230 = scmp.ne.s32.totalorder %s222, %s224
      %p231 = scmp.eq.s32.totalorder %s36, 1
      %p232 = por %p230, %p231
      %p233 = scmp.ne.s32.totalorder %s224, %s225
      %p234 = scmp.eq.s32.totalorder %s36, 0
      %p235 = por %p233, %p234
      %p236 = scmp.ne.s32.totalorder %s224, %s225
      %p237 = scmp.eq.s32.totalorder %s37, 1
      %p238 = por %p236, %p237
      %p240 = scmp.ne.s32.totalorder %s225, %s239
      %p241 = scmp.eq.s32.totalorder %s37, 0
      %p242 = por %p240, %p241
      %s244 = sadd.s32 %s243, 1
      %p247 = scmp.eq.s32.totalorder %s31, 1
      %p248 = scmp.ne.s32.totalorder %s243, %s245
      %p249 = scmp.eq.s32.totalorder %s31, 0
      %p250 = por %p248, %p249
      %p251 = scmp.ne.s32.totalorder %s243, %s245
      %p252 = scmp.eq.s32.totalorder %s36, 1
      %p253 = por %p251, %p252
      %p254 = scmp.ne.s32.totalorder %s245, %s246
      %p255 = scmp.eq.s32.totalorder %s36, 0
      %p256 = por %p254, %p255
      %p257 = scmp.ne.s32.totalorder %s245, %s246
      %p258 = scmp.eq.s32.totalorder %s37, 1
      %p259 = por %p257, %p258
      %p261 = scmp.ne.s32.totalorder %s246, %s260
      %p262 = scmp.eq.s32.totalorder %s37, 0
      %p263 = por %p261, %p262
      %s265 = sadd.s32 %s264, 1
      %p268 = scmp.eq.s32.totalorder %s31, 1
      %p269 = scmp.ne.s32.totalorder %s264, %s266
      %p270 = scmp.eq.s32.totalorder %s31, 0
      %p271 = por %p269, %p270
      %p272 = scmp.ne.s32.totalorder %s264, %s266
      %p273 = scmp.eq.s32.totalorder %s36, 1
      %p274 = por %p272, %p273
      %p275 = scmp.ne.s32.totalorder %s266, %s267
      %p276 = scmp.eq.s32.totalorder %s36, 0
      %p277 = por %p275, %p276
      %p278 = scmp.ne.s32.totalorder %s266, %s267
      %p279 = scmp.eq.s32.totalorder %s37, 1
      %p280 = por %p278, %p279
      %p282 = scmp.ne.s32.totalorder %s267, %s281
      %p283 = scmp.eq.s32.totalorder %s37, 0
      %p284 = por %p282, %p283
      %s286 = sadd.s32 %s285, 1
      %p289 = scmp.eq.s32.totalorder %s31, 1
      %p290 = scmp.ne.s32.totalorder %s285, %s287
      %p291 = scmp.eq.s32.totalorder %s31, 0
      %p292 = por %p290, %p291
      %p293 = scmp.ne.s32.totalorder %s285, %s287
      %p294 = scmp.eq.s32.totalorder %s36, 1
      %p295 = por %p293, %p294
      %p296 = scmp.ne.s32.totalorder %s287, %s288
      %p297 = scmp.eq.s32.totalorder %s36, 0
      %p298 = por %p296, %p297
      %p299 = scmp.ne.s32.totalorder %s287, %s288
      %p300 = scmp.eq.s32.totalorder %s37, 1
      %p301 = por %p299, %p300
      %p303 = scmp.ne.s32.totalorder %s288, %s302
      %p304 = scmp.eq.s32.totalorder %s37, 0
      %p305 = por %p303, %p304
      %s307 = sadd.s32 %s306, 1
      %p310 = scmp.eq.s32.totalorder %s31, 1
      %p311 = scmp.ne.s32.totalorder %s306, %s308
      %p312 = scmp.eq.s32.totalorder %s31, 0
      %p313 = por %p311, %p312
      %p314 = scmp.ne.s32.totalorder %s306, %s308
      %p315 = scmp.eq.s32.totalorder %s36, 1
      %p316 = por %p314, %p315
      %p317 = scmp.ne.s32.totalorder %s308, %s309
      %p318 = scmp.eq.s32.totalorder %s36, 0
      %p319 = por %p317, %p318
      %p320 = scmp.ne.s32.totalorder %s308, %s309
      %p321 = scmp.eq.s32.totalorder %s37, 1
      %p322 = por %p320, %p321
      %p324 = scmp.ne.s32.totalorder %s309, %s323
      %p325 = scmp.eq.s32.totalorder %s37, 0
      %p326 = por %p324, %p325
      %s328 = sadd.s32 %s327, 1
      %p331 = scmp.eq.s32.totalorder %s31, 1
      %p332 = scmp.ne.s32.totalorder %s327, %s329
      %p333 = scmp.eq.s32.totalorder %s31, 0
      %p334 = por %p332, %p333
      %p335 = scmp.ne.s32.totalorder %s327, %s329
      %p336 = scmp.eq.s32.totalorder %s36, 1
      %p337 = por %p335, %p336
      %p338 = scmp.ne.s32.totalorder %s329, %s330
      %p339 = scmp.eq.s32.totalorder %s36, 0
      %p340 = por %p338, %p339
      %p341 = scmp.ne.s32.totalorder %s329, %s330
      %p342 = scmp.eq.s32.totalorder %s37, 1
      %p343 = por %p341, %p342
      %p345 = scmp.ne.s32.totalorder %s330, %s344
      %p346 = scmp.eq.s32.totalorder %s37, 0
      %p347 = por %p345, %p346
      %s349 = sadd.s32 %s348, 1
      %p352 = scmp.eq.s32.totalorder %s31, 1
      %p353 = scmp.ne.s32.totalorder %s348, %s350
      %p354 = scmp.eq.s32.totalorder %s31, 0
      %p355 = por %p353, %p354
      %p356 = scmp.ne.s32.totalorder %s348, %s350
      %p357 = scmp.eq.s32.totalorder %s36, 1
      %p358 = por %p356, %p357
      %p359 = scmp.ne.s32.totalorder %s350, %s351
      %p360 = scmp.eq.s32.totalorder %s36, 0
      %p361 = por %p359, %p360
      %p362 = scmp.ne.s32.totalorder %s350, %s351
      %p363 = scmp.eq.s32.totalorder %s37, 1
      %p364 = por %p362, %p363
      %p366 = scmp.ne.s32.totalorder %s351, %s365
      %p367 = scmp.eq.s32.totalorder %s37, 0
      %p368 = por %p366, %p367
      %s370 = sadd.s32 %s369, 1
      %p373 = scmp.eq.s32.totalorder %s31, 1
      %p374 = scmp.ne.s32.totalorder %s369, %s371
      %p375 = scmp.eq.s32.totalorder %s31, 0
      %p376 = por %p374, %p375
      %p377 = scmp.ne.s32.totalorder %s369, %s371
      %p378 = scmp.eq.s32.totalorder %s36, 1
      %p379 = por %p377, %p378
      %p380 = scmp.ne.s32.totalorder %s371, %s372
      %p381 = scmp.eq.s32.totalorder %s36, 0
      %p382 = por %p380, %p381
      %p383 = scmp.ne.s32.totalorder %s371, %s372
      %p384 = scmp.eq.s32.totalorder %s37, 1
      %p385 = por %p383, %p384
      %p387 = scmp.ne.s32.totalorder %s372, %s386
      %p388 = scmp.eq.s32.totalorder %s37, 0
      %p389 = por %p387, %p388
      %s391 = sadd.s32 %s390, 1
      %p394 = scmp.eq.s32.totalorder %s31, 1
      %p395 = scmp.ne.s32.totalorder %s390, %s392
      %p396 = scmp.eq.s32.totalorder %s31, 0
      %p397 = por %p395, %p396
      %p398 = scmp.ne.s32.totalorder %s390, %s392
      %p399 = scmp.eq.s32.totalorder %s36, 1
      %p400 = por %p398, %p399
      %p401 = scmp.ne.s32.totalorder %s392, %s393
      %p402 = scmp.eq.s32.totalorder %s36, 0
      %p403 = por %p401, %p402
      %p404 = scmp.ne.s32.totalorder %s392, %s393
      %p405 = scmp.eq.s32.totalorder %s37, 1
      %p406 = por %p404, %p405
      %p408 = scmp.ne.s32.totalorder %s393, %s407
      %p409 = scmp.eq.s32.totalorder %s37, 0
      %p410 = por %p408, %p409
      %s412 = sadd.s32 %s411, 1
      %p415 = scmp.eq.s32.totalorder %s31, 1
      %p416 = scmp.ne.s32.totalorder %s411, %s413
      %p417 = scmp.eq.s32.totalorder %s31, 0
      %p418 = por %p416, %p417
      %p419 = scmp.ne.s32.totalorder %s411, %s413
      %p420 = scmp.eq.s32.totalorder %s36, 1
      %p421 = por %p419, %p420
      %p422 = scmp.ne.s32.totalorder %s413, %s414
      %p423 = scmp.eq.s32.totalorder %s36, 0
      %p424 = por %p422, %p423
      %p425 = scmp.ne.s32.totalorder %s413, %s414
      %p426 = scmp.eq.s32.totalorder %s37, 1
      %p427 = por %p425, %p426
      %p429 = scmp.ne.s32.totalorder %s414, %s428
      %p430 = scmp.eq.s32.totalorder %s37, 0
      %p431 = por %p429, %p430
      %s433 = sadd.s32 %s432, 1
      %p436 = scmp.eq.s32.totalorder %s31, 1
      %p437 = scmp.ne.s32.totalorder %s432, %s434
      %p438 = scmp.eq.s32.totalorder %s31, 0
      %p439 = por %p437, %p438
      %p440 = scmp.ne.s32.totalorder %s432, %s434
      %p441 = scmp.eq.s32.totalorder %s36, 1
      %p442 = por %p440, %p441
      %p443 = scmp.ne.s32.totalorder %s434, %s435
      %p444 = scmp.eq.s32.totalorder %s36, 0
      %p445 = por %p443, %p444
      %p446 = scmp.ne.s32.totalorder %s434, %s435
      %p447 = scmp.eq.s32.totalorder %s37, 1
      %p448 = por %p446, %p447
      %p450 = scmp.ne.s32.totalorder %s435, %s449
      %p451 = scmp.eq.s32.totalorder %s37, 0
      %p452 = por %p450, %p451
      %s454 = sadd.s32 %s453, 1
      %p457 = scmp.eq.s32.totalorder %s31, 1
      %p458 = scmp.ne.s32.totalorder %s453, %s455
      %p459 = scmp.eq.s32.totalorder %s31, 0
      %p460 = por %p458, %p459
      %p461 = scmp.ne.s32.totalorder %s453, %s455
      %p462 = scmp.eq.s32.totalorder %s36, 1
      %p463 = por %p461, %p462
      %p464 = scmp.ne.s32.totalorder %s455, %s456
      %p465 = scmp.eq.s32.totalorder %s36, 0
      %p466 = por %p464, %p465
      %p467 = scmp.ne.s32.totalorder %s455, %s456
      %p468 = scmp.eq.s32.totalorder %s37, 1
      %p469 = por %p467, %p468
      %p471 = scmp.ne.s32.totalorder %s456, %s470
      %p472 = scmp.eq.s32.totalorder %s37, 0
      %p473 = por %p471, %p472
      %s475 = sadd.s32 %s474, 1
      %p478 = scmp.eq.s32.totalorder %s31, 1
      %p479 = scmp.ne.s32.totalorder %s474, %s476
      %p480 = scmp.eq.s32.totalorder %s31, 0
      %p481 = por %p479, %p480
      %p482 = scmp.ne.s32.totalorder %s474, %s476
      %p483 = scmp.eq.s32.totalorder %s36, 1
      %p484 = por %p482, %p483
      %p485 = scmp.ne.s32.totalorder %s476, %s477
      %p486 = scmp.eq.s32.totalorder %s36, 0
      %p487 = por %p485, %p486
      %p488 = scmp.ne.s32.totalorder %s476, %s477
      %p489 = scmp.eq.s32.totalorder %s37, 1
      %p490 = por %p488, %p489
      %p492 = scmp.ne.s32.totalorder %s477, %s491
      %p493 = scmp.eq.s32.totalorder %s37, 0
      %p494 = por %p492, %p493
      %s496 = sadd.s32 %s495, 1
      %p499 = scmp.eq.s32.totalorder %s31, 1
      %p500 = scmp.ne.s32.totalorder %s495, %s497
      %p501 = scmp.eq.s32.totalorder %s31, 0
      %p502 = por %p500, %p501
      %p503 = scmp.ne.s32.totalorder %s495, %s497
      %p504 = scmp.eq.s32.totalorder %s36, 1
      %p505 = por %p503, %p504
      %p506 = scmp.ne.s32.totalorder %s497, %s498
      %p507 = scmp.eq.s32.totalorder %s36, 0
      %p508 = por %p506, %p507
      %p509 = scmp.ne.s32.totalorder %s497, %s498
      %p510 = scmp.eq.s32.totalorder %s37, 1
      %p511 = por %p509, %p510
      %p513 = scmp.ne.s32.totalorder %s498, %s512
      %p514 = scmp.eq.s32.totalorder %s37, 0
      %p515 = por %p513, %p514
      %s516 = ssub.s32 %s31, %s38
      %p517 = scmp.eq.s32.totalorder %s516, 0
      %s519 = sadd.s32 %s518, 1
      %s520 = scalar_select %p517, %s518, %s519
      %p523 = pneg %p517
      %p524 = scmp.eq.s32.totalorder %s31, 1
      %p525 = por %p523, %p524
      %p526 = scmp.ne.s32.totalorder %s518, %s521
      %p527 = scmp.eq.s32.totalorder %s31, 0
      %p528 = por %p526, %p527
      %p529 = scmp.ne.s32.totalorder %s518, %s521
      %p530 = scmp.eq.s32.totalorder %s36, 1
      %p531 = por %p529, %p530
      %p532 = scmp.ne.s32.totalorder %s521, %s522
      %p533 = scmp.eq.s32.totalorder %s36, 0
      %p534 = por %p532, %p533
      %p535 = scmp.ne.s32.totalorder %s521, %s522
      %p536 = scmp.eq.s32.totalorder %s37, 1
      %p537 = por %p535, %p536
      %p539 = scmp.ne.s32.totalorder %s522, %s538
      %p540 = scmp.eq.s32.totalorder %s37, 0
      %p541 = por %p539, %p540
      %p542 = scmp.le.s32.totalorder 1, %s31
      %p543 = scmp.lt.s32.totalorder %s31, 3
      %p544 = pnand %p542, %p543
      %p545 = pneg %p544
      // Predicated region
      $region9: #{tpu_custom_call.1} parent=5 // pred_check
        _
      $region10: #{tpu_custom_call.1} parent=5 // pred_check_branch
        %547 = sbr.rel (%p544) target = $region12
      $region11: #{tpu_custom_call.1} parent=5 // pred_region
        %s548 = ssub.s32 %s31, 1
        // Predicated region
        $region13: #{tpu_custom_call.1} parent=11 // pred_check
          %p549 = pneg %p130
        $region14: #{tpu_custom_call.1} parent=11 // pred_check_branch
          %551 = sbr.rel (%p549) target = $region16
        $region15: #{tpu_custom_call.1} parent=11 // pred_region
          _
        $region16: #{tpu_custom_call.1} parent=11 // pred_fallthru
          _
        // Predicated region
        $region17: #{tpu_custom_call.1} parent=11 // pred_check
          %p552 = pneg %p151
        $region18: #{tpu_custom_call.1} parent=11 // pred_check_branch
          %554 = sbr.rel (%p552) target = $region20
        $region19: #{tpu_custom_call.1} parent=11 // pred_region
          _
        $region20: #{tpu_custom_call.1} parent=11 // pred_fallthru
          _
        // Predicated region
        $region21: #{tpu_custom_call.1} parent=11 // pred_check
          %p555 = pneg %p172
        $region22: #{tpu_custom_call.1} parent=11 // pred_check_branch
          %557 = sbr.rel (%p555) target = $region24
        $region23: #{tpu_custom_call.1} parent=11 // pred_region
          %559 = vsyncadd [#allocation3], 0
          %s560 = sshll.u32 %s5, 4
          %s561 = int_to_ptr.hbm [resolvable:$true] %s560
          %s562 = sshll.u32 [#allocation2], 4
          %s563 = int_to_ptr.vmem [resolvable:$true] %s562
          %568 = dma.hbm_to_vmem [thread:$0]  %s561, 512, %s563, [#allocation3], 64, 64, 4
        $region24: #{tpu_custom_call.1} parent=11 // pred_fallthru
          _
        // Predicated region
        $region25: #{tpu_custom_call.1} parent=11 // pred_check
          %p569 = pneg %p193
        $region26: #{tpu_custom_call.1} parent=11 // pred_check_branch
          %571 = sbr.rel (%p569) target = $region28
        $region27: #{tpu_custom_call.1} parent=11 // pred_region
          _
        $region28: #{tpu_custom_call.1} parent=11 // pred_fallthru
          _
        // Predicated region
        $region29: #{tpu_custom_call.1} parent=11 // pred_check
          %p572 = pneg %p214
        $region30: #{tpu_custom_call.1} parent=11 // pred_check_branch
          %574 = sbr.rel (%p572) target = $region32
        $region31: #{tpu_custom_call.1} parent=11 // pred_region
          _
        $region32: #{tpu_custom_call.1} parent=11 // pred_fallthru
          _
        // Predicated region
        $region33: #{tpu_custom_call.1} parent=11 // pred_check
          %p575 = pneg %p235
        $region34: #{tpu_custom_call.1} parent=11 // pred_check_branch
          %577 = sbr.rel (%p575) target = $region36
        $region35: #{tpu_custom_call.1} parent=11 // pred_region
          _
        $region36: #{tpu_custom_call.1} parent=11 // pred_fallthru
          _
        // Predicated region
        $region37: #{tpu_custom_call.1} parent=11 // pred_check
          %p578 = pneg %p256
        $region38: #{tpu_custom_call.1} parent=11 // pred_check_branch
          %580 = sbr.rel (%p578) target = $region40
        $region39: #{tpu_custom_call.1} parent=11 // pred_region
          %582 = vsyncadd [#allocation5], 0
          %s583 = sshll.u32 %s9, 4
          %s584 = int_to_ptr.hbm [resolvable:$true] %s583
          %s585 = sshll.u32 [#allocation4], 4
          %s586 = int_to_ptr.vmem [resolvable:$true] %s585
          %591 = dma.hbm_to_vmem [thread:$0]  %s584, 256, %s586, [#allocation5], 64, 64, 4
        $region40: #{tpu_custom_call.1} parent=11 // pred_fallthru
          _
        // Predicated region
        $region41: #{tpu_custom_call.1} parent=11 // pred_check
          %p592 = pneg %p277
        $region42: #{tpu_custom_call.1} parent=11 // pred_check_branch
          %594 = sbr.rel (%p592) target = $region44
        $region43: #{tpu_custom_call.1} parent=11 // pred_region
          _
        $region44: #{tpu_custom_call.1} parent=11 // pred_fallthru
          _
        // Predicated region
        $region45: #{tpu_custom_call.1} parent=11 // pred_check
          %p595 = pneg %p298
        $region46: #{tpu_custom_call.1} parent=11 // pred_check_branch
          %597 = sbr.rel (%p595) target = $region48
        $region47: #{tpu_custom_call.1} parent=11 // pred_region
          %599 = vsyncadd [#allocation5], 0
          %s600 = sshll.u32 %s11, 4
          %s601 = int_to_ptr.hbm [resolvable:$true] %s600
          %s602 = sshll.u32 [#allocation6], 4
          %s603 = int_to_ptr.vmem [resolvable:$true] %s602
          %608 = dma.hbm_to_vmem [thread:$0]  %s601, 256, %s603, [#allocation5], 64, 64, 4
        $region48: #{tpu_custom_call.1} parent=11 // pred_fallthru
          _
        // Predicated region
        $region49: #{tpu_custom_call.1} parent=11 // pred_check
          %p609 = pneg %p319
        $region50: #{tpu_custom_call.1} parent=11 // pred_check_branch
          %611 = sbr.rel (%p609) target = $region52
        $region51: #{tpu_custom_call.1} parent=11 // pred_region
          _
        $region52: #{tpu_custom_call.1} parent=11 // pred_fallthru
          _
        // Predicated region
        $region53: #{tpu_custom_call.1} parent=11 // pred_check
          %p612 = pneg %p340
        $region54: #{tpu_custom_call.1} parent=11 // pred_check_branch
          %614 = sbr.rel (%p612) target = $region56
        $region55: #{tpu_custom_call.1} parent=11 // pred_region
          %616 = vsyncadd [#allocation8], 0
          %s617 = sshll.u32 %s13, 4
          %s618 = int_to_ptr.hbm [resolvable:$true] %s617
          %s619 = sshll.u32 [#allocation7], 4
          %s620 = int_to_ptr.vmem [resolvable:$true] %s619
          %625 = dma.hbm_to_vmem [thread:$0]  %s618, 768, %s620, [#allocation8], 192, 192, 12
        $region56: #{tpu_custom_call.1} parent=11 // pred_fallthru
          _
        // Predicated region
        $region57: #{tpu_custom_call.1} parent=11 // pred_check
          %p626 = pneg %p361
        $region58: #{tpu_custom_call.1} parent=11 // pred_check_branch
          %628 = sbr.rel (%p626) target = $region60
        $region59: #{tpu_custom_call.1} parent=11 // pred_region
          _
        $region60: #{tpu_custom_call.1} parent=11 // pred_fallthru
          _
        // Predicated region
        $region61: #{tpu_custom_call.1} parent=11 // pred_check
          %p629 = pneg %p382
        $region62: #{tpu_custom_call.1} parent=11 // pred_check_branch
          %631 = sbr.rel (%p629) target = $region64
        $region63: #{tpu_custom_call.1} parent=11 // pred_region
          _
        $region64: #{tpu_custom_call.1} parent=11 // pred_fallthru
          _
        // Predicated region
        $region65: #{tpu_custom_call.1} parent=11 // pred_check
          %p632 = pneg %p403
        $region66: #{tpu_custom_call.1} parent=11 // pred_check_branch
          %634 = sbr.rel (%p632) target = $region68
        $region67: #{tpu_custom_call.1} parent=11 // pred_region
          %636 = vsyncadd [#allocation8], 0
          %s637 = sshll.u32 %s16, 4
          %s638 = int_to_ptr.hbm [resolvable:$true] %s637
          %s639 = sshll.u32 [#allocation9], 4
          %s640 = int_to_ptr.vmem [resolvable:$true] %s639
          %645 = dma.hbm_to_vmem [thread:$0]  %s638, 1024, %s640, [#allocation8], 64, 64, 4
        $region68: #{tpu_custom_call.1} parent=11 // pred_fallthru
          _
        // Predicated region
        $region69: #{tpu_custom_call.1} parent=11 // pred_check
          %p646 = pneg %p424
        $region70: #{tpu_custom_call.1} parent=11 // pred_check_branch
          %648 = sbr.rel (%p646) target = $region72
        $region71: #{tpu_custom_call.1} parent=11 // pred_region
          _
        $region72: #{tpu_custom_call.1} parent=11 // pred_fallthru
          _
        // Predicated region
        $region73: #{tpu_custom_call.1} parent=11 // pred_check
          %p649 = pneg %p445
        $region74: #{tpu_custom_call.1} parent=11 // pred_check_branch
          %651 = sbr.rel (%p649) target = $region76
        $region75: #{tpu_custom_call.1} parent=11 // pred_region
          _
        $region76: #{tpu_custom_call.1} parent=11 // pred_fallthru
          _
        // Predicated region
        $region77: #{tpu_custom_call.1} parent=11 // pred_check
          %p652 = pneg %p466
        $region78: #{tpu_custom_call.1} parent=11 // pred_check_branch
          %654 = sbr.rel (%p652) target = $region80
        $region79: #{tpu_custom_call.1} parent=11 // pred_region
          _
        $region80: #{tpu_custom_call.1} parent=11 // pred_fallthru
          _
        // Predicated region
        $region81: #{tpu_custom_call.1} parent=11 // pred_check
          %p655 = pneg %p487
        $region82: #{tpu_custom_call.1} parent=11 // pred_check_branch
          %657 = sbr.rel (%p655) target = $region84
        $region83: #{tpu_custom_call.1} parent=11 // pred_region
          _
        $region84: #{tpu_custom_call.1} parent=11 // pred_fallthru
          _
        // Predicated region
        $region85: #{tpu_custom_call.1} parent=11 // pred_check
          %p658 = pneg %p508
        $region86: #{tpu_custom_call.1} parent=11 // pred_check_branch
          %660 = sbr.rel (%p658) target = $region88
        $region87: #{tpu_custom_call.1} parent=11 // pred_region
          _
        $region88: #{tpu_custom_call.1} parent=11 // pred_fallthru
          _
      $region12: #{tpu_custom_call.1} parent=5 // pred_fallthru
        _
      %p661 = scmp.lt.s32.totalorder %s31, 2
      // Predicated region
      $region89: #{tpu_custom_call.1} parent=5 // pred_check
        %p662 = pneg %p661
      $region90: #{tpu_custom_call.1} parent=5 // pred_check_branch
        %664 = sbr.rel (%p662) target = $region92
      $region91: #{tpu_custom_call.1} parent=5 // pred_region
        // Predicated region
        $region93: #{tpu_custom_call.1} parent=91 // pred_check
          %p665 = pneg %p51
        $region94: #{tpu_custom_call.1} parent=91 // pred_check_branch
          %667 = sbr.rel (%p665) target = $region96
        $region95: #{tpu_custom_call.1} parent=91 // pred_region
          %s668 = smul.u32 8, %s31
          %p669 = scmp.lt.s32.totalorder %s668, 15
          %s670 = scalar_select %p669, %s668, 15
          %s671 = smul.addr %s670, 2
          %s672 = smul.addr %s671, 4
          %s673 = scalar_lea.vmem %s0, %s672
          %s674 = smul.u32 8, %s31
        $region96: #{tpu_custom_call.1} parent=91 // pred_fallthru
          _
        // Predicated region
        $region97: #{tpu_custom_call.1} parent=91 // pred_check
          %p675 = pneg %p77
        $region98: #{tpu_custom_call.1} parent=91 // pred_check_branch
          %677 = sbr.rel (%p675) target = $region100
        $region99: #{tpu_custom_call.1} parent=91 // pred_region
          %s678 = smul.u32 8, %s31
          %p679 = scmp.lt.s32.totalorder %s678, 15
          %s680 = scalar_select %p679, %s678, 15
          %s681 = smul.addr %s680, 2
          %s682 = smul.addr %s681, 4
          %s683 = scalar_lea.vmem %s1, %s682
          %s684 = smul.u32 8, %s31
        $region100: #{tpu_custom_call.1} parent=91 // pred_fallthru
          _
        // Predicated region
        $region101: #{tpu_custom_call.1} parent=91 // pred_check
          %p685 = pneg %p103
        $region102: #{tpu_custom_call.1} parent=91 // pred_check_branch
          %687 = sbr.rel (%p685) target = $region104
        $region103: #{tpu_custom_call.1} parent=91 // pred_region
          %s688 = smul.u32 8, %s31
          %p689 = scmp.lt.s32.totalorder %s688, 15
          %s690 = scalar_select %p689, %s688, 15
          %s691 = smul.addr %s690, 2
          %s692 = smul.addr %s691, 8
          %s693 = scalar_lea.vmem %s2, %s692
          %s694 = smul.u32 8, %s31
        $region104: #{tpu_custom_call.1} parent=91 // pred_fallthru
          _
      $region92: #{tpu_custom_call.1} parent=5 // pred_fallthru
        _
      %p695 = scmp.le.s32.totalorder 1, %s31
      %p696 = scmp.lt.s32.totalorder %s31, 3
      %p697 = pnand %p695, %p696
      %p698 = pneg %p697
      // Predicated region
      $region105: #{tpu_custom_call.1} parent=5 // pred_check
        _
      $region106: #{tpu_custom_call.1} parent=5 // pred_check_branch
        %700 = sbr.rel (%p697) target = $region108
      $region107: #{tpu_custom_call.1} parent=5 // pred_region
        %s701 = ssub.s32 %s31, 1
        // Predicated region
        $region109: #{tpu_custom_call.1} parent=107 // pred_check
          %p702 = pneg %p172
        $region110: #{tpu_custom_call.1} parent=107 // pred_check_branch
          %704 = sbr.rel (%p702) target = $region112
        $region111: #{tpu_custom_call.1} parent=107 // pred_region
          %706 = dma.done [#allocation3], 512
        $region112: #{tpu_custom_call.1} parent=107 // pred_fallthru
          _
        // Predicated region
        $region113: #{tpu_custom_call.1} parent=107 // pred_check
          %p707 = pneg %p256
        $region114: #{tpu_custom_call.1} parent=107 // pred_check_branch
          %709 = sbr.rel (%p707) target = $region116
        $region115: #{tpu_custom_call.1} parent=107 // pred_region
          %711 = dma.done [#allocation5], 256
        $region116: #{tpu_custom_call.1} parent=107 // pred_fallthru
          _
        // Predicated region
        $region117: #{tpu_custom_call.1} parent=107 // pred_check
          %p712 = pneg %p298
        $region118: #{tpu_custom_call.1} parent=107 // pred_check_branch
          %714 = sbr.rel (%p712) target = $region120
        $region119: #{tpu_custom_call.1} parent=107 // pred_region
          %716 = dma.done [#allocation5], 256
        $region120: #{tpu_custom_call.1} parent=107 // pred_fallthru
          _
        // Predicated region
        $region121: #{tpu_custom_call.1} parent=107 // pred_check
          %p717 = pneg %p340
        $region122: #{tpu_custom_call.1} parent=107 // pred_check_branch
          %719 = sbr.rel (%p717) target = $region124
        $region123: #{tpu_custom_call.1} parent=107 // pred_region
          %721 = dma.done [#allocation8], 768
        $region124: #{tpu_custom_call.1} parent=107 // pred_fallthru
          _
        // Predicated region
        $region125: #{tpu_custom_call.1} parent=107 // pred_check
          %p722 = pneg %p403
        $region126: #{tpu_custom_call.1} parent=107 // pred_check_branch
          %724 = sbr.rel (%p722) target = $region128
        $region127: #{tpu_custom_call.1} parent=107 // pred_region
          %726 = dma.done [#allocation8], 1024
        $region128: #{tpu_custom_call.1} parent=107 // pred_fallthru
          _
        %s727 = smul.u32 8, %s36
        %p728 = scmp.lt.s32.totalorder %s727, 15
        %s729 = scalar_select %p728, %s727, 15
        %s730 = smul.addr %s729, 2
        %s731 = smul.addr %s730, 4
        %s732 = scalar_lea.vmem %s0, %s731
        %p733 = pneg %p57
        %p734 = pneg %p54
        %s735 = smul.u32 8, %s36
        %p736 = scmp.lt.s32.totalorder %s735, 15
        %s737 = scalar_select %p736, %s735, 15
        %s738 = smul.addr %s737, 2
        %s739 = smul.addr %s738, 4
        %s740 = scalar_lea.vmem %s1, %s739
        %p741 = pneg %p83
        %p742 = pneg %p80
        %s743 = smul.u32 8, %s36
        %p744 = scmp.lt.s32.totalorder %s743, 15
        %s745 = scalar_select %p744, %s743, 15
        %s746 = smul.addr %s745, 2
        %s747 = smul.addr %s746, 8
        %s748 = scalar_lea.vmem %s2, %s747
        %p749 = pneg %p109
        %p750 = pneg %p106
        %p751 = pneg %p130
        %p752 = pneg %p127
        %p753 = pneg %p151
        %p754 = pneg %p148
        %p755 = pneg %p172
        %p756 = pneg %p169
        %p757 = pneg %p193
        %p758 = pneg %p190
        %p759 = pneg %p214
        %p760 = pneg %p211
        %p761 = pneg %p235
        %p762 = pneg %p232
        %p763 = pneg %p256
        %p764 = pneg %p253
        %p765 = pneg %p277
        %p766 = pneg %p274
        %p767 = pneg %p298
        %p768 = pneg %p295
        %p769 = pneg %p319
        %p770 = pneg %p316
        %p771 = pneg %p340
        %p772 = pneg %p337
        %p773 = pneg %p361
        %p774 = pneg %p358
        %p775 = pneg %p382
        %p776 = pneg %p379
        %p777 = pneg %p403
        %p778 = pneg %p400
        %p779 = pneg %p424
        %p780 = pneg %p421
        %p781 = pneg %p445
        %p782 = pneg %p442
        %p783 = pneg %p466
        %p784 = pneg %p463
        %p785 = pneg %p487
        %p786 = pneg %p484
        %p787 = pneg %p508
        %p788 = pneg %p505
        %p789 = pneg %p534
        %p790 = pneg %p531
        %p791 = scmp.lt.s32.totalorder %s36, 1
        %s792 = scalar_select %p791, %s36, 1
        %s793 = smul.addr %s792, 8
        %s794 = scalar_lea.vmem %s22, %s793
        %s795 = smul.u32 8, %s36
        %p796 = scmp.lt.s32.totalorder %s795, 15
        %s797 = scalar_select %p796, %s795, 15
        %s798 = smul.addr %s797, 2
        %s799 = smul.addr %s798, 4
        %s800 = scalar_lea.vmem %s0, %s799
        %s801 = smul.u32 8, %s36
        %s802 = smul.u32 8, %s36
        %p803 = scmp.lt.s32.totalorder %s802, 15
        %s804 = scalar_select %p803, %s802, 15
        %s805 = smul.addr %s804, 2
        %s806 = smul.addr %s805, 4
        %s807 = scalar_lea.vmem %s1, %s806
        %s808 = smul.u32 8, %s36
        %s809 = smul.u32 8, %s36
        %p810 = scmp.lt.s32.totalorder %s809, 15
        %s811 = scalar_select %p810, %s809, 15
        %s812 = smul.addr %s811, 2
        %s813 = smul.addr %s812, 8
        %s814 = scalar_lea.vmem %s2, %s813
        %s815 = smul.u32 8, %s36
        %p816 = scmp.lt.s32.totalorder %s36, 1
        %s817 = scalar_select %p816, %s36, 1
        %s818 = smul.addr %s817, 8
        %s819 = scalar_lea.vmem %s22, %s818
        %v821 = vld [vmem:[%s800] sm:$0xf]
        %v822 = vld [vmem:[%s800 + $0x4] sm:$0xf]
        %v823 = vld [vmem:[%s800 + $0x8] sm:$0xf]
        %v824 = vld [vmem:[%s800 + $0xc] sm:$0xf]
        %v825 = vld [vmem:[%s800 + $0x10] sm:$0xf]
        %v826 = vld [vmem:[%s800 + $0x14] sm:$0xf]
        %v827 = vld [vmem:[%s800 + $0x18] sm:$0xf]
        %v828 = vld [vmem:[%s800 + $0x1c] sm:$0xf]
        %v829 = vld [vmem:[%s800 + $0x20] sm:$0xf]
        %v830 = vld [vmem:[%s800 + $0x24] sm:$0xf]
        %v831 = vld [vmem:[%s800 + $0x28] sm:$0xf]
        %v832 = vld [vmem:[%s800 + $0x2c] sm:$0xf]
        %v833 = vld [vmem:[%s800 + $0x30] sm:$0xf]
        %v834 = vld [vmem:[%s800 + $0x34] sm:$0xf]
        %v835 = vld [vmem:[%s800 + $0x38] sm:$0xf]
        %v836 = vld [vmem:[%s800 + $0x3c] sm:$0xf]
        %v837 = vld [vmem:[%s807] sm:$0xf]
        %v838 = vld [vmem:[%s807 + $0x4] sm:$0xf]
        %v839 = vld [vmem:[%s807 + $0x8] sm:$0xf]
        %v840 = vld [vmem:[%s807 + $0xc] sm:$0xf]
        %v841 = vld [vmem:[%s807 + $0x10] sm:$0xf]
        %v842 = vld [vmem:[%s807 + $0x14] sm:$0xf]
        %v843 = vld [vmem:[%s807 + $0x18] sm:$0xf]
        %v844 = vld [vmem:[%s807 + $0x1c] sm:$0xf]
        %v845 = vld [vmem:[%s807 + $0x20] sm:$0xf]
        %v846 = vld [vmem:[%s807 + $0x24] sm:$0xf]
        %v847 = vld [vmem:[%s807 + $0x28] sm:$0xf]
        %v848 = vld [vmem:[%s807 + $0x2c] sm:$0xf]
        %v849 = vld [vmem:[%s807 + $0x30] sm:$0xf]
        %v850 = vld [vmem:[%s807 + $0x34] sm:$0xf]
        %v851 = vld [vmem:[%s807 + $0x38] sm:$0xf]
        %v852 = vld [vmem:[%s807 + $0x3c] sm:$0xf]
        %v853 = vld [vmem:[%s814] sm:$0xff]
        %v854 = vld [vmem:[%s814 + $0x8] sm:$0xff]
        %v855 = vld [vmem:[%s814 + $0x10] sm:$0xff]
        %v856 = vld [vmem:[%s814 + $0x18] sm:$0xff]
        %v857 = vld [vmem:[%s814 + $0x20] sm:$0xff]
        %v858 = vld [vmem:[%s814 + $0x28] sm:$0xff]
        %v859 = vld [vmem:[%s814 + $0x30] sm:$0xff]
        %v860 = vld [vmem:[%s814 + $0x38] sm:$0xff]
        %v861 = vld [vmem:[%s814 + $0x40] sm:$0xff]
        %v862 = vld [vmem:[%s814 + $0x48] sm:$0xff]
        %v863 = vld [vmem:[%s814 + $0x50] sm:$0xff]
        %v864 = vld [vmem:[%s814 + $0x58] sm:$0xff]
        %v865 = vld [vmem:[%s814 + $0x60] sm:$0xff]
        %v866 = vld [vmem:[%s814 + $0x68] sm:$0xff]
        %v867 = vld [vmem:[%s814 + $0x70] sm:$0xff]
        %v868 = vld [vmem:[%s814 + $0x78] sm:$0xff]
        %870 = vset.pattern.permute.xlu0 0
        %871 = vperm.xlu0 %870, %v853
        %v872 = vpop.permute.xlu0 %871
        %875 = vset.pattern.permute.xlu0 0
        %876 = vperm.xlu0 %875, %v854
        %v877 = vpop.permute.xlu0 %876
        %880 = vset.pattern.permute.xlu0 0
        %881 = vperm.xlu0 %880, %v855
        %v882 = vpop.permute.xlu0 %881
        %885 = vset.pattern.permute.xlu0 0
        %886 = vperm.xlu0 %885, %v856
        %v887 = vpop.permute.xlu0 %886
        %890 = vset.pattern.permute.xlu0 0
        %891 = vperm.xlu0 %890, %v857
        %v892 = vpop.permute.xlu0 %891
        %895 = vset.pattern.permute.xlu0 0
        %896 = vperm.xlu0 %895, %v858
        %v897 = vpop.permute.xlu0 %896
        %900 = vset.pattern.permute.xlu0 0
        %901 = vperm.xlu0 %900, %v859
        %v902 = vpop.permute.xlu0 %901
        %905 = vset.pattern.permute.xlu0 0
        %906 = vperm.xlu0 %905, %v860
        %v907 = vpop.permute.xlu0 %906
        %910 = vset.pattern.permute.xlu0 0
        %911 = vperm.xlu0 %910, %v861
        %v912 = vpop.permute.xlu0 %911
        %915 = vset.pattern.permute.xlu0 0
        %916 = vperm.xlu0 %915, %v862
        %v917 = vpop.permute.xlu0 %916
        %920 = vset.pattern.permute.xlu0 0
        %921 = vperm.xlu0 %920, %v863
        %v922 = vpop.permute.xlu0 %921
        %925 = vset.pattern.permute.xlu0 0
        %926 = vperm.xlu0 %925, %v864
        %v927 = vpop.permute.xlu0 %926
        %930 = vset.pattern.permute.xlu0 0
        %931 = vperm.xlu0 %930, %v865
        %v932 = vpop.permute.xlu0 %931
        %935 = vset.pattern.permute.xlu0 0
        %936 = vperm.xlu0 %935, %v866
        %v937 = vpop.permute.xlu0 %936
        %940 = vset.pattern.permute.xlu0 0
        %941 = vperm.xlu0 %940, %v867
        %v942 = vpop.permute.xlu0 %941
        %945 = vset.pattern.permute.xlu0 0
        %946 = vperm.xlu0 %945, %v868
        %v947 = vpop.permute.xlu0 %946
        %v949 = vld [vmem:[%s3] sm:$0xf]
        %v950 = vld [vmem:[%s3 + $0x4] sm:$0xf]
        %v951 = vld [vmem:[%s3 + $0x8] sm:$0xf]
        %v952 = vld [vmem:[%s3 + $0xc] sm:$0xf]
        %v953 = vld [vmem:[%s3 + $0x10] sm:$0xf]
        %v954 = vld [vmem:[%s3 + $0x14] sm:$0xf]
        %v955 = vld [vmem:[%s3 + $0x18] sm:$0xf]
        %v956 = vld [vmem:[%s3 + $0x1c] sm:$0xf]
        %v957 = vld [vmem:[%s3 + $0x20] sm:$0xf]
        %v958 = vld [vmem:[%s3 + $0x24] sm:$0xf]
        %v959 = vld [vmem:[%s3 + $0x28] sm:$0xf]
        %v960 = vld [vmem:[%s3 + $0x2c] sm:$0xf]
        %v961 = vld [vmem:[%s4] sm:$0x1]
        %v963 = vperm.slane %v961, 0
        %v981 = vunpack.c.l.b16 %v821
        %v982 = vunpack.c.l.b16 %v822
        %v983 = vunpack.c.l.b16 %v823
        %v984 = vunpack.c.l.b16 %v824
        %v985 = vunpack.c.l.b16 %v825
        %v986 = vunpack.c.l.b16 %v826
        %v987 = vunpack.c.l.b16 %v827
        %v988 = vunpack.c.l.b16 %v828
        %v989 = vunpack.c.l.b16 %v829
        %v990 = vunpack.c.l.b16 %v830
        %v991 = vunpack.c.l.b16 %v831
        %v992 = vunpack.c.l.b16 %v832
        %v993 = vunpack.c.l.b16 %v833
        %v994 = vunpack.c.l.b16 %v834
        %v995 = vunpack.c.l.b16 %v835
        %v996 = vunpack.c.l.b16 %v836
        %v997 = vpack.c.b16 %v982, %v981
        %v998 = vpack.c.b16 %v984, %v983
        %v999 = vpack.c.b16 %v986, %v985
        %v1000 = vpack.c.b16 %v988, %v987
        %v1001 = vpack.c.b16 %v990, %v989
        %v1002 = vpack.c.b16 %v992, %v991
        %v1003 = vpack.c.b16 %v994, %v993
        %v1004 = vpack.c.b16 %v996, %v995
        %v1017 = vunpack.c.l.b16 %v949
        %v1018 = vunpack.c.l.b16 %v950
        %v1019 = vunpack.c.l.b16 %v951
        %v1020 = vunpack.c.l.b16 %v952
        %v1021 = vunpack.c.l.b16 %v953
        %v1022 = vunpack.c.l.b16 %v954
        %v1023 = vunpack.c.l.b16 %v955
        %v1024 = vunpack.c.l.b16 %v956
        %v1025 = vunpack.c.l.b16 %v957
        %v1026 = vunpack.c.l.b16 %v958
        %v1027 = vunpack.c.l.b16 %v959
        %v1028 = vunpack.c.l.b16 %v960
        %v1029 = vpack.c.b16 %v1018, %v1017
        %v1030 = vpack.c.b16 %v1020, %v1019
        %v1031 = vpack.c.b16 %v1022, %v1021
        %v1032 = vpack.c.b16 %v1024, %v1023
        %v1033 = vpack.c.b16 %v1026, %v1025
        %v1034 = vpack.c.b16 %v1028, %v1027
        %vm1041 = vcmask 785408
        %v1043 = vsel %vm1041, %v997, 0
        %v1046 = vsel %vm1041, %v998, 0
        %v1049 = vsel %vm1041, %v999, 0
        %v1052 = vsel %vm1041, %v1000, 0
        %v1055 = vsel %vm1041, %v1001, 0
        %v1058 = vsel %vm1041, %v1002, 0
        %v1061 = vsel %vm1041, %v1003, 0
        %v1064 = vsel %vm1041, %v1004, 0
        %1066 = vmatpush.bf16.msra.mxu0 0
        %1067 = vmatpush.bf16.msra.mxu0 0
        %1068 = vmatpush.bf16.msra.mxu0 %v1034
        %1069 = vmatpush.bf16.msra.mxu0 %v1033
        %1070 = vmatpush.bf16.msra.mxu0 %v1032
        %1071 = vmatpush.bf16.msra.mxu0 %v1031
        %1072 = vmatpush.bf16.msra.mxu0 %v1030
        %1073 = vmatpush.bf16.msra.mxu0 %v1029
        %1074 = vmatmul.bf16.gmra.mxu0 %v1043
        %v1075 = vpop.f32.mrf.mxu0
        %v1076 = vadd.f32 %v963, %v1075
        %v1077 = vpop.f32.mrf.mxu0
        %v1078 = vadd.f32 %v963, %v1077
        %1079 = vmatmul.bf16.gmra.mxu0 %v1046
        %v1080 = vpop.f32.mrf.mxu0
        %v1081 = vadd.f32 %v963, %v1080
        %v1082 = vpop.f32.mrf.mxu0
        %v1083 = vadd.f32 %v963, %v1082
        %1084 = vmatmul.bf16.gmra.mxu0 %v1049
        %v1085 = vpop.f32.mrf.mxu0
        %v1086 = vadd.f32 %v963, %v1085
        %v1087 = vpop.f32.mrf.mxu0
        %v1088 = vadd.f32 %v963, %v1087
        %1089 = vmatmul.bf16.gmra.mxu0 %v1052
        %v1090 = vpop.f32.mrf.mxu0
        %v1091 = vadd.f32 %v963, %v1090
        %v1092 = vpop.f32.mrf.mxu0
        %v1093 = vadd.f32 %v963, %v1092
        %1094 = vmatmul.bf16.gmra.mxu0 %v1055
        %v1095 = vpop.f32.mrf.mxu0
        %v1096 = vadd.f32 %v963, %v1095
        %v1097 = vpop.f32.mrf.mxu0
        %v1098 = vadd.f32 %v963, %v1097
        %1099 = vmatmul.bf16.gmra.mxu0 %v1058
        %v1100 = vpop.f32.mrf.mxu0
        %v1101 = vadd.f32 %v963, %v1100
        %v1102 = vpop.f32.mrf.mxu0
        %v1103 = vadd.f32 %v963, %v1102
        %1104 = vmatmul.bf16.gmra.mxu0 %v1061
        %v1105 = vpop.f32.mrf.mxu0
        %v1106 = vadd.f32 %v963, %v1105
        %v1107 = vpop.f32.mrf.mxu0
        %v1108 = vadd.f32 %v963, %v1107
        %1109 = vmatmul.bf16.gmra.mxu0 %v1064
        %v1110 = vpop.f32.mrf.mxu0
        %v1111 = vadd.f32 %v963, %v1110
        %v1112 = vpop.f32.mrf.mxu0
        %v1113 = vadd.f32 %v963, %v1112
        %1114 = vdwg.mxu0
        %v1115 = vmul.f32 %v1076, %v872
        %v1116 = vmul.f32 %v1078, %v877
        %v1117 = vmul.f32 %v1081, %v882
        %v1118 = vmul.f32 %v1083, %v887
        %v1119 = vmul.f32 %v1086, %v892
        %v1120 = vmul.f32 %v1088, %v897
        %v1121 = vmul.f32 %v1091, %v902
        %v1122 = vmul.f32 %v1093, %v907
        %v1123 = vmul.f32 %v1096, %v912
        %v1124 = vmul.f32 %v1098, %v917
        %v1125 = vmul.f32 %v1101, %v922
        %v1126 = vmul.f32 %v1103, %v927
        %v1127 = vmul.f32 %v1106, %v932
        %v1128 = vmul.f32 %v1108, %v937
        %v1129 = vmul.f32 %v1111, %v942
        %v1130 = vmul.f32 %v1113, %v947
        %v1131 = vld [vmem:[%s6] sm:$0x1]
        %v1132 = vld [vmem:[%s8] sm:$0x1]
        %v1133 = vpack.c.bf16 %v1115, %v1115
        %v1134 = vpack.c.bf16 %v1116, %v1116
        %v1135 = vpack.c.bf16 %v1117, %v1117
        %v1136 = vpack.c.bf16 %v1118, %v1118
        %v1137 = vpack.c.bf16 %v1119, %v1119
        %v1138 = vpack.c.bf16 %v1120, %v1120
        %v1139 = vpack.c.bf16 %v1121, %v1121
        %v1140 = vpack.c.bf16 %v1122, %v1122
        %v1141 = vpack.c.bf16 %v1123, %v1123
        %v1142 = vpack.c.bf16 %v1124, %v1124
        %v1143 = vpack.c.bf16 %v1125, %v1125
        %v1144 = vpack.c.bf16 %v1126, %v1126
        %v1145 = vpack.c.bf16 %v1127, %v1127
        %v1146 = vpack.c.bf16 %v1128, %v1128
        %v1147 = vpack.c.bf16 %v1129, %v1129
        %v1148 = vpack.c.bf16 %v1130, %v1130
        %v1151 = vunpack.c.l.b16 %v837
        %v1152 = vunpack.c.l.b16 %v838
        %v1153 = vpack.c.b16 %v1152, %v1151
        %v1156 = vunpack.c.l.b16 %v1133
        %v1157 = vunpack.c.l.b16 %v1134
        %v1158 = vpack.c.b16 %v1157, %v1156
        %vm1160 = vcmask 130048
        %v1162 = vsel %vm1160, %v1153, 0
        %1164 = vmatpush.bf16.msra.mxu0 0
        %1165 = vmatpush.bf16.msra.mxu0 0
        %1166 = vmatpush.bf16.msra.mxu0 0
        %1167 = vmatpush.bf16.msra.mxu0 0
        %1168 = vmatpush.bf16.msra.mxu0 0
        %1169 = vmatpush.bf16.msra.mxu0 0
        %1170 = vmatpush.bf16.msra.mxu0 0
        %1171 = vmatpush.bf16.msra.mxu0 %v1158
        %1172 = vmatmul.bf16.gmra.mxu0 %v1162
        %v1173 = vpop.f32.mrf.mxu0
        %v1174 = vadd.f32 0.0, %v1173
        %v1175 = vpop.f32.mrf.mxu0
        %v1176 = vadd.f32 0.0, %v1175
        %1177 = vdwg.mxu0
        %v1180 = vunpack.c.l.b16 %v839
        %v1181 = vunpack.c.l.b16 %v840
        %v1182 = vpack.c.b16 %v1181, %v1180
        %v1185 = vunpack.c.l.b16 %v1135
        %v1186 = vunpack.c.l.b16 %v1136
        %v1187 = vpack.c.b16 %v1186, %v1185
        %v1190 = vsel %vm1160, %v1182, 0
        %1192 = vmatpush.bf16.msra.mxu0 0
        %1193 = vmatpush.bf16.msra.mxu0 0
        %1194 = vmatpush.bf16.msra.mxu0 0
        %1195 = vmatpush.bf16.msra.mxu0 0
        %1196 = vmatpush.bf16.msra.mxu0 0
        %1197 = vmatpush.bf16.msra.mxu0 0
        %1198 = vmatpush.bf16.msra.mxu0 0
        %1199 = vmatpush.bf16.msra.mxu0 %v1187
        %1200 = vmatmul.bf16.gmra.mxu0 %v1190
        %v1201 = vpop.f32.mrf.mxu0
        %v1202 = vadd.f32 0.0, %v1201
        %v1203 = vpop.f32.mrf.mxu0
        %v1204 = vadd.f32 0.0, %v1203
        %1205 = vdwg.mxu0
        %v1208 = vunpack.c.l.b16 %v841
        %v1209 = vunpack.c.l.b16 %v842
        %v1210 = vpack.c.b16 %v1209, %v1208
        %v1213 = vunpack.c.l.b16 %v1137
        %v1214 = vunpack.c.l.b16 %v1138
        %v1215 = vpack.c.b16 %v1214, %v1213
        %v1218 = vsel %vm1160, %v1210, 0
        %1220 = vmatpush.bf16.msra.mxu0 0
        %1221 = vmatpush.bf16.msra.mxu0 0
        %1222 = vmatpush.bf16.msra.mxu0 0
        %1223 = vmatpush.bf16.msra.mxu0 0
        %1224 = vmatpush.bf16.msra.mxu0 0
        %1225 = vmatpush.bf16.msra.mxu0 0
        %1226 = vmatpush.bf16.msra.mxu0 0
        %1227 = vmatpush.bf16.msra.mxu0 %v1215
        %1228 = vmatmul.bf16.gmra.mxu0 %v1218
        %v1229 = vpop.f32.mrf.mxu0
        %v1230 = vadd.f32 0.0, %v1229
        %v1231 = vpop.f32.mrf.mxu0
        %v1232 = vadd.f32 0.0, %v1231
        %1233 = vdwg.mxu0
        %v1236 = vunpack.c.l.b16 %v843
        %v1237 = vunpack.c.l.b16 %v844
        %v1238 = vpack.c.b16 %v1237, %v1236
        %v1241 = vunpack.c.l.b16 %v1139
        %v1242 = vunpack.c.l.b16 %v1140
        %v1243 = vpack.c.b16 %v1242, %v1241
        %v1246 = vsel %vm1160, %v1238, 0
        %1248 = vmatpush.bf16.msra.mxu0 0
        %1249 = vmatpush.bf16.msra.mxu0 0
        %1250 = vmatpush.bf16.msra.mxu0 0
        %1251 = vmatpush.bf16.msra.mxu0 0
        %1252 = vmatpush.bf16.msra.mxu0 0
        %1253 = vmatpush.bf16.msra.mxu0 0
        %1254 = vmatpush.bf16.msra.mxu0 0
        %1255 = vmatpush.bf16.msra.mxu0 %v1243
        %1256 = vmatmul.bf16.gmra.mxu0 %v1246
        %v1257 = vpop.f32.mrf.mxu0
        %v1258 = vadd.f32 0.0, %v1257
        %v1259 = vpop.f32.mrf.mxu0
        %v1260 = vadd.f32 0.0, %v1259
        %1261 = vdwg.mxu0
        %v1264 = vunpack.c.l.b16 %v845
        %v1265 = vunpack.c.l.b16 %v846
        %v1266 = vpack.c.b16 %v1265, %v1264
        %v1269 = vunpack.c.l.b16 %v1141
        %v1270 = vunpack.c.l.b16 %v1142
        %v1271 = vpack.c.b16 %v1270, %v1269
        %v1274 = vsel %vm1160, %v1266, 0
        %1276 = vmatpush.bf16.msra.mxu0 0
        %1277 = vmatpush.bf16.msra.mxu0 0
        %1278 = vmatpush.bf16.msra.mxu0 0
        %1279 = vmatpush.bf16.msra.mxu0 0
        %1280 = vmatpush.bf16.msra.mxu0 0
        %1281 = vmatpush.bf16.msra.mxu0 0
        %1282 = vmatpush.bf16.msra.mxu0 0
        %1283 = vmatpush.bf16.msra.mxu0 %v1271
        %1284 = vmatmul.bf16.gmra.mxu0 %v1274
        %v1285 = vpop.f32.mrf.mxu0
        %v1286 = vadd.f32 0.0, %v1285
        %v1287 = vpop.f32.mrf.mxu0
        %v1288 = vadd.f32 0.0, %v1287
        %1289 = vdwg.mxu0
        %v1292 = vunpack.c.l.b16 %v847
        %v1293 = vunpack.c.l.b16 %v848
        %v1294 = vpack.c.b16 %v1293, %v1292
        %v1297 = vunpack.c.l.b16 %v1143
        %v1298 = vunpack.c.l.b16 %v1144
        %v1299 = vpack.c.b16 %v1298, %v1297
        %v1302 = vsel %vm1160, %v1294, 0
        %1304 = vmatpush.bf16.msra.mxu0 0
        %1305 = vmatpush.bf16.msra.mxu0 0
        %1306 = vmatpush.bf16.msra.mxu0 0
        %1307 = vmatpush.bf16.msra.mxu0 0
        %1308 = vmatpush.bf16.msra.mxu0 0
        %1309 = vmatpush.bf16.msra.mxu0 0
        %1310 = vmatpush.bf16.msra.mxu0 0
        %1311 = vmatpush.bf16.msra.mxu0 %v1299
        %1312 = vmatmul.bf16.gmra.mxu0 %v1302
        %v1313 = vpop.f32.mrf.mxu0
        %v1314 = vadd.f32 0.0, %v1313
        %v1315 = vpop.f32.mrf.mxu0
        %v1316 = vadd.f32 0.0, %v1315
        %1317 = vdwg.mxu0
        %v1320 = vunpack.c.l.b16 %v849
        %v1321 = vunpack.c.l.b16 %v850
        %v1322 = vpack.c.b16 %v1321, %v1320
        %v1325 = vunpack.c.l.b16 %v1145
        %v1326 = vunpack.c.l.b16 %v1146
        %v1327 = vpack.c.b16 %v1326, %v1325
        %v1330 = vsel %vm1160, %v1322, 0
        %1332 = vmatpush.bf16.msra.mxu0 0
        %1333 = vmatpush.bf16.msra.mxu0 0
        %1334 = vmatpush.bf16.msra.mxu0 0
        %1335 = vmatpush.bf16.msra.mxu0 0
        %1336 = vmatpush.bf16.msra.mxu0 0
        %1337 = vmatpush.bf16.msra.mxu0 0
        %1338 = vmatpush.bf16.msra.mxu0 0
        %1339 = vmatpush.bf16.msra.mxu0 %v1327
        %1340 = vmatmul.bf16.gmra.mxu0 %v1330
        %v1341 = vpop.f32.mrf.mxu0
        %v1342 = vadd.f32 0.0, %v1341
        %v1343 = vpop.f32.mrf.mxu0
        %v1344 = vadd.f32 0.0, %v1343
        %1345 = vdwg.mxu0
        %v1348 = vunpack.c.l.b16 %v851
        %v1349 = vunpack.c.l.b16 %v852
        %v1350 = vpack.c.b16 %v1349, %v1348
        %v1353 = vunpack.c.l.b16 %v1147
        %v1354 = vunpack.c.l.b16 %v1148
        %v1355 = vpack.c.b16 %v1354, %v1353
        %v1358 = vsel %vm1160, %v1350, 0
        %1360 = vmatpush.bf16.msra.mxu0 0
        %1361 = vmatpush.bf16.msra.mxu0 0
        %1362 = vmatpush.bf16.msra.mxu0 0
        %1363 = vmatpush.bf16.msra.mxu0 0
        %1364 = vmatpush.bf16.msra.mxu0 0
        %1365 = vmatpush.bf16.msra.mxu0 0
        %1366 = vmatpush.bf16.msra.mxu0 0
        %1367 = vmatpush.bf16.msra.mxu0 %v1355
        %1368 = vmatmul.bf16.gmra.mxu0 %v1358
        %v1369 = vpop.f32.mrf.mxu0
        %v1370 = vadd.f32 0.0, %v1369
        %v1371 = vpop.f32.mrf.mxu0
        %v1372 = vadd.f32 0.0, %v1371
        %1373 = vdwg.mxu0
        %1390 = vrot.lane.b32.xlu0 %v1115, 32
        %v1391 = vpop.permute.xlu0 %1390
        %1392 = vrot.lane.b32.xlu0 %v1116, 32
        %v1393 = vpop.permute.xlu0 %1392
        %1394 = vrot.lane.b32.xlu0 %v1117, 32
        %v1395 = vpop.permute.xlu0 %1394
        %1396 = vrot.lane.b32.xlu0 %v1118, 32
        %v1397 = vpop.permute.xlu0 %1396
        %1398 = vrot.lane.b32.xlu0 %v1119, 32
        %v1399 = vpop.permute.xlu0 %1398
        %1400 = vrot.lane.b32.xlu0 %v1120, 32
        %v1401 = vpop.permute.xlu0 %1400
        %1402 = vrot.lane.b32.xlu0 %v1121, 32
        %v1403 = vpop.permute.xlu0 %1402
        %1404 = vrot.lane.b32.xlu0 %v1122, 32
        %v1405 = vpop.permute.xlu0 %1404
        %1406 = vrot.lane.b32.xlu0 %v1123, 32
        %v1407 = vpop.permute.xlu0 %1406
        %1408 = vrot.lane.b32.xlu0 %v1124, 32
        %v1409 = vpop.permute.xlu0 %1408
        %1410 = vrot.lane.b32.xlu0 %v1125, 32
        %v1411 = vpop.permute.xlu0 %1410
        %1412 = vrot.lane.b32.xlu0 %v1126, 32
        %v1413 = vpop.permute.xlu0 %1412
        %1414 = vrot.lane.b32.xlu0 %v1127, 32
        %v1415 = vpop.permute.xlu0 %1414
        %1416 = vrot.lane.b32.xlu0 %v1128, 32
        %v1417 = vpop.permute.xlu0 %1416
        %1418 = vrot.lane.b32.xlu0 %v1129, 32
        %v1419 = vpop.permute.xlu0 %1418
        %1420 = vrot.lane.b32.xlu0 %v1130, 32
        %v1421 = vpop.permute.xlu0 %1420
        %vm1438 = vcmask 261120
        %v1439 = vsel %vm1438, %v1174, %v1391
        %v1440 = vsel %vm1438, %v1176, %v1393
        %v1441 = vsel %vm1438, %v1202, %v1395
        %v1442 = vsel %vm1438, %v1204, %v1397
        %v1443 = vsel %vm1438, %v1230, %v1399
        %v1444 = vsel %vm1438, %v1232, %v1401
        %v1445 = vsel %vm1438, %v1258, %v1403
        %v1446 = vsel %vm1438, %v1260, %v1405
        %v1447 = vsel %vm1438, %v1286, %v1407
        %v1448 = vsel %vm1438, %v1288, %v1409
        %v1449 = vsel %vm1438, %v1314, %v1411
        %v1450 = vsel %vm1438, %v1316, %v1413
        %v1451 = vsel %vm1438, %v1342, %v1415
        %v1452 = vsel %vm1438, %v1344, %v1417
        %v1453 = vsel %vm1438, %v1370, %v1419
        %v1454 = vsel %vm1438, %v1372, %v1421
        %v1455 = vld [vmem:[#allocation2] sm:$0xf]
        %v1456 = vld [vmem:[#allocation2 + $0x4] sm:$0xf]
        %v1457 = vld [vmem:[#allocation2 + $0x8] sm:$0xf]
        %v1458 = vld [vmem:[#allocation2 + $0xc] sm:$0xf]
        %v1459 = vld [vmem:[#allocation2 + $0x10] sm:$0xf]
        %v1460 = vld [vmem:[#allocation2 + $0x14] sm:$0xf]
        %v1461 = vld [vmem:[#allocation2 + $0x18] sm:$0xf]
        %v1462 = vld [vmem:[#allocation2 + $0x1c] sm:$0xf]
        %v1463 = vpack.c.bf16 %v1440, %v1439
        %v1464 = vpack.c.bf16 %v1442, %v1441
        %v1465 = vpack.c.bf16 %v1444, %v1443
        %v1466 = vpack.c.bf16 %v1446, %v1445
        %v1467 = vpack.c.bf16 %v1448, %v1447
        %v1468 = vpack.c.bf16 %v1450, %v1449
        %v1469 = vpack.c.bf16 %v1452, %v1451
        %v1470 = vpack.c.bf16 %v1454, %v1453
        %v1472 = vperm.slane %v1131, 0
        %v1482 = vunpack.c.l.b16 %v1455
        %v1483 = vunpack.c.l.b16 %v1456
        %v1484 = vunpack.c.l.b16 %v1457
        %v1485 = vunpack.c.l.b16 %v1458
        %v1486 = vunpack.c.l.b16 %v1459
        %v1487 = vunpack.c.l.b16 %v1460
        %v1488 = vunpack.c.l.b16 %v1461
        %v1489 = vunpack.c.l.b16 %v1462
        %v1490 = vpack.c.b16 %v1483, %v1482
        %v1491 = vpack.c.b16 %v1485, %v1484
        %v1492 = vpack.c.b16 %v1487, %v1486
        %v1493 = vpack.c.b16 %v1489, %v1488
        %vm1498 = vcmask 523264
        %v1500 = vsel %vm1498, %v1463, 0
        %v1503 = vsel %vm1498, %v1464, 0
        %v1506 = vsel %vm1498, %v1465, 0
        %v1509 = vsel %vm1498, %v1466, 0
        %v1512 = vsel %vm1498, %v1467, 0
        %v1515 = vsel %vm1498, %v1468, 0
        %v1518 = vsel %vm1498, %v1469, 0
        %v1521 = vsel %vm1498, %v1470, 0
        %1523 = vmatpush.bf16.msra.mxu0 0
        %1524 = vmatpush.bf16.msra.mxu0 0
        %1525 = vmatpush.bf16.msra.mxu0 0
        %1526 = vmatpush.bf16.msra.mxu0 0
        %1527 = vmatpush.bf16.msra.mxu0 %v1493
        %1528 = vmatpush.bf16.msra.mxu0 %v1492
        %1529 = vmatpush.bf16.msra.mxu0 %v1491
        %1530 = vmatpush.bf16.msra.mxu0 %v1490
        %1531 = vmatmul.bf16.gmra.mxu0 %v1500
        %v1532 = vpop.f32.mrf.mxu0
        %v1533 = vadd.f32 %v1472, %v1532
        %v1534 = vpop.f32.mrf.mxu0
        %v1535 = vadd.f32 %v1472, %v1534
        %1536 = vmatmul.bf16.gmra.mxu0 %v1503
        %v1537 = vpop.f32.mrf.mxu0
        %v1538 = vadd.f32 %v1472, %v1537
        %v1539 = vpop.f32.mrf.mxu0
        %v1540 = vadd.f32 %v1472, %v1539
        %1541 = vmatmul.bf16.gmra.mxu0 %v1506
        %v1542 = vpop.f32.mrf.mxu0
        %v1543 = vadd.f32 %v1472, %v1542
        %v1544 = vpop.f32.mrf.mxu0
        %v1545 = vadd.f32 %v1472, %v1544
        %1546 = vmatmul.bf16.gmra.mxu0 %v1509
        %v1547 = vpop.f32.mrf.mxu0
        %v1548 = vadd.f32 %v1472, %v1547
        %v1549 = vpop.f32.mrf.mxu0
        %v1550 = vadd.f32 %v1472, %v1549
        %1551 = vmatmul.bf16.gmra.mxu0 %v1512
        %v1552 = vpop.f32.mrf.mxu0
        %v1553 = vadd.f32 %v1472, %v1552
        %v1554 = vpop.f32.mrf.mxu0
        %v1555 = vadd.f32 %v1472, %v1554
        %1556 = vmatmul.bf16.gmra.mxu0 %v1515
        %v1557 = vpop.f32.mrf.mxu0
        %v1558 = vadd.f32 %v1472, %v1557
        %v1559 = vpop.f32.mrf.mxu0
        %v1560 = vadd.f32 %v1472, %v1559
        %1561 = vmatmul.bf16.gmra.mxu0 %v1518
        %v1562 = vpop.f32.mrf.mxu0
        %v1563 = vadd.f32 %v1472, %v1562
        %v1564 = vpop.f32.mrf.mxu0
        %v1565 = vadd.f32 %v1472, %v1564
        %1566 = vmatmul.bf16.gmra.mxu0 %v1521
        %v1567 = vpop.f32.mrf.mxu0
        %v1568 = vadd.f32 %v1472, %v1567
        %v1569 = vpop.f32.mrf.mxu0
        %v1570 = vadd.f32 %v1472, %v1569
        %1571 = vdwg.mxu0
        %v1572 = vxor.u32 %v1533, 2147483648
        %v1573 = vxor.u32 %v1535, 2147483648
        %v1574 = vxor.u32 %v1538, 2147483648
        %v1575 = vxor.u32 %v1540, 2147483648
        %v1576 = vxor.u32 %v1543, 2147483648
        %v1577 = vxor.u32 %v1545, 2147483648
        %v1578 = vxor.u32 %v1548, 2147483648
        %v1579 = vxor.u32 %v1550, 2147483648
        %v1580 = vxor.u32 %v1553, 2147483648
        %v1581 = vxor.u32 %v1555, 2147483648
        %v1582 = vxor.u32 %v1558, 2147483648
        %v1583 = vxor.u32 %v1560, 2147483648
        %v1584 = vxor.u32 %v1563, 2147483648
        %v1585 = vxor.u32 %v1565, 2147483648
        %v1586 = vxor.u32 %v1568, 2147483648
        %v1587 = vxor.u32 %v1570, 2147483648
        %v1588 = vmul.f32 %v1572, 1.442695
        %v1589 = vpow.pop %v1588
        %v1590 = vmul.f32 %v1573, 1.442695
        %v1591 = vpow.pop %v1590
        %v1592 = vmul.f32 %v1574, 1.442695
        %v1593 = vpow.pop %v1592
        %v1594 = vmul.f32 %v1575, 1.442695
        %v1595 = vpow.pop %v1594
        %v1596 = vmul.f32 %v1576, 1.442695
        %v1597 = vpow.pop %v1596
        %v1598 = vmul.f32 %v1577, 1.442695
        %v1599 = vpow.pop %v1598
        %v1600 = vmul.f32 %v1578, 1.442695
        %v1601 = vpow.pop %v1600
        %v1602 = vmul.f32 %v1579, 1.442695
        %v1603 = vpow.pop %v1602
        %v1604 = vmul.f32 %v1580, 1.442695
        %v1605 = vpow.pop %v1604
        %v1606 = vmul.f32 %v1581, 1.442695
        %v1607 = vpow.pop %v1606
        %v1608 = vmul.f32 %v1582, 1.442695
        %v1609 = vpow.pop %v1608
        %v1610 = vmul.f32 %v1583, 1.442695
        %v1611 = vpow.pop %v1610
        %v1612 = vmul.f32 %v1584, 1.442695
        %v1613 = vpow.pop %v1612
        %v1614 = vmul.f32 %v1585, 1.442695
        %v1615 = vpow.pop %v1614
        %v1616 = vmul.f32 %v1586, 1.442695
        %v1617 = vpow.pop %v1616
        %v1618 = vmul.f32 %v1587, 1.442695
        %v1619 = vpow.pop %v1618
        %v1620 = vadd.f32 %v1589, 1.0
        %v1621 = vadd.f32 %v1591, 1.0
        %v1622 = vadd.f32 %v1593, 1.0
        %v1623 = vadd.f32 %v1595, 1.0
        %v1624 = vadd.f32 %v1597, 1.0
        %v1625 = vadd.f32 %v1599, 1.0
        %v1626 = vadd.f32 %v1601, 1.0
        %v1627 = vadd.f32 %v1603, 1.0
        %v1628 = vadd.f32 %v1605, 1.0
        %v1629 = vadd.f32 %v1607, 1.0
        %v1630 = vadd.f32 %v1609, 1.0
        %v1631 = vadd.f32 %v1611, 1.0
        %v1632 = vadd.f32 %v1613, 1.0
        %v1633 = vadd.f32 %v1615, 1.0
        %v1634 = vadd.f32 %v1617, 1.0
        %v1635 = vadd.f32 %v1619, 1.0
        %v1636 = vrcp.pop %v1620
        %v1637 = vmul.f32 %v1620, %v1636
        %v1638 = vsub.f32 1.0, %v1637
        %v1639 = vmul.f32 %v1636, %v1638
        %v1640 = vadd.f32 %v1636, %v1639
        %vm1641 = vweird.f32 %v1620
        %vm1642 = vweird.f32 %v1636
        %vm1643 = vmor %vm1641, %vm1642
        %v1644 = vsel %vm1643, %v1636, %v1640
        %v1645 = vand.u32 2147483647, %v1620
        %vm1646 = vcmp.eq.f32.partialorder %v1645, 8.507059e+37
        %v1647 = vand.u32 %v1620, 2147483648
        %v1648 = vor.u32 1.1754944e-38, %v1647
        %v1649 = vsel %vm1646, %v1648, %v1644
        %v1650 = vmul.f32 1.0, %v1649
        %v1651 = vrcp.pop %v1621
        %v1652 = vmul.f32 %v1621, %v1651
        %v1653 = vsub.f32 1.0, %v1652
        %v1654 = vmul.f32 %v1651, %v1653
        %v1655 = vadd.f32 %v1651, %v1654
        %vm1656 = vweird.f32 %v1621
        %vm1657 = vweird.f32 %v1651
        %vm1658 = vmor %vm1656, %vm1657
        %v1659 = vsel %vm1658, %v1651, %v1655
        %v1660 = vand.u32 2147483647, %v1621
        %vm1661 = vcmp.eq.f32.partialorder %v1660, 8.507059e+37
        %v1662 = vand.u32 %v1621, 2147483648
        %v1663 = vor.u32 1.1754944e-38, %v1662
        %v1664 = vsel %vm1661, %v1663, %v1659
        %v1665 = vmul.f32 1.0, %v1664
        %v1666 = vrcp.pop %v1622
        %v1667 = vmul.f32 %v1622, %v1666
        %v1668 = vsub.f32 1.0, %v1667
        %v1669 = vmul.f32 %v1666, %v1668
        %v1670 = vadd.f32 %v1666, %v1669
        %vm1671 = vweird.f32 %v1622
        %vm1672 = vweird.f32 %v1666
        %vm1673 = vmor %vm1671, %vm1672
        %v1674 = vsel %vm1673, %v1666, %v1670
        %v1675 = vand.u32 2147483647, %v1622
        %vm1676 = vcmp.eq.f32.partialorder %v1675, 8.507059e+37
        %v1677 = vand.u32 %v1622, 2147483648
        %v1678 = vor.u32 1.1754944e-38, %v1677
        %v1679 = vsel %vm1676, %v1678, %v1674
        %v1680 = vmul.f32 1.0, %v1679
        %v1681 = vrcp.pop %v1623
        %v1682 = vmul.f32 %v1623, %v1681
        %v1683 = vsub.f32 1.0, %v1682
        %v1684 = vmul.f32 %v1681, %v1683
        %v1685 = vadd.f32 %v1681, %v1684
        %vm1686 = vweird.f32 %v1623
        %vm1687 = vweird.f32 %v1681
        %vm1688 = vmor %vm1686, %vm1687
        %v1689 = vsel %vm1688, %v1681, %v1685
        %v1690 = vand.u32 2147483647, %v1623
        %vm1691 = vcmp.eq.f32.partialorder %v1690, 8.507059e+37
        %v1692 = vand.u32 %v1623, 2147483648
        %v1693 = vor.u32 1.1754944e-38, %v1692
        %v1694 = vsel %vm1691, %v1693, %v1689
        %v1695 = vmul.f32 1.0, %v1694
        %v1696 = vrcp.pop %v1624
        %v1697 = vmul.f32 %v1624, %v1696
        %v1698 = vsub.f32 1.0, %v1697
        %v1699 = vmul.f32 %v1696, %v1698
        %v1700 = vadd.f32 %v1696, %v1699
        %vm1701 = vweird.f32 %v1624
        %vm1702 = vweird.f32 %v1696
        %vm1703 = vmor %vm1701, %vm1702
        %v1704 = vsel %vm1703, %v1696, %v1700
        %v1705 = vand.u32 2147483647, %v1624
        %vm1706 = vcmp.eq.f32.partialorder %v1705, 8.507059e+37
        %v1707 = vand.u32 %v1624, 2147483648
        %v1708 = vor.u32 1.1754944e-38, %v1707
        %v1709 = vsel %vm1706, %v1708, %v1704
        %v1710 = vmul.f32 1.0, %v1709
        %v1711 = vrcp.pop %v1625
        %v1712 = vmul.f32 %v1625, %v1711
        %v1713 = vsub.f32 1.0, %v1712
        %v1714 = vmul.f32 %v1711, %v1713
        %v1715 = vadd.f32 %v1711, %v1714
        %vm1716 = vweird.f32 %v1625
        %vm1717 = vweird.f32 %v1711
        %vm1718 = vmor %vm1716, %vm1717
        %v1719 = vsel %vm1718, %v1711, %v1715
        %v1720 = vand.u32 2147483647, %v1625
        %vm1721 = vcmp.eq.f32.partialorder %v1720, 8.507059e+37
        %v1722 = vand.u32 %v1625, 2147483648
        %v1723 = vor.u32 1.1754944e-38, %v1722
        %v1724 = vsel %vm1721, %v1723, %v1719
        %v1725 = vmul.f32 1.0, %v1724
        %v1726 = vrcp.pop %v1626
        %v1727 = vmul.f32 %v1626, %v1726
        %v1728 = vsub.f32 1.0, %v1727
        %v1729 = vmul.f32 %v1726, %v1728
        %v1730 = vadd.f32 %v1726, %v1729
        %vm1731 = vweird.f32 %v1626
        %vm1732 = vweird.f32 %v1726
        %vm1733 = vmor %vm1731, %vm1732
        %v1734 = vsel %vm1733, %v1726, %v1730
        %v1735 = vand.u32 2147483647, %v1626
        %vm1736 = vcmp.eq.f32.partialorder %v1735, 8.507059e+37
        %v1737 = vand.u32 %v1626, 2147483648
        %v1738 = vor.u32 1.1754944e-38, %v1737
        %v1739 = vsel %vm1736, %v1738, %v1734
        %v1740 = vmul.f32 1.0, %v1739
        %v1741 = vrcp.pop %v1627
        %v1742 = vmul.f32 %v1627, %v1741
        %v1743 = vsub.f32 1.0, %v1742
        %v1744 = vmul.f32 %v1741, %v1743
        %v1745 = vadd.f32 %v1741, %v1744
        %vm1746 = vweird.f32 %v1627
        %vm1747 = vweird.f32 %v1741
        %vm1748 = vmor %vm1746, %vm1747
        %v1749 = vsel %vm1748, %v1741, %v1745
        %v1750 = vand.u32 2147483647, %v1627
        %vm1751 = vcmp.eq.f32.partialorder %v1750, 8.507059e+37
        %v1752 = vand.u32 %v1627, 2147483648
        %v1753 = vor.u32 1.1754944e-38, %v1752
        %v1754 = vsel %vm1751, %v1753, %v1749
        %v1755 = vmul.f32 1.0, %v1754
        %v1756 = vrcp.pop %v1628
        %v1757 = vmul.f32 %v1628, %v1756
        %v1758 = vsub.f32 1.0, %v1757
        %v1759 = vmul.f32 %v1756, %v1758
        %v1760 = vadd.f32 %v1756, %v1759
        %vm1761 = vweird.f32 %v1628
        %vm1762 = vweird.f32 %v1756
        %vm1763 = vmor %vm1761, %vm1762
        %v1764 = vsel %vm1763, %v1756, %v1760
        %v1765 = vand.u32 2147483647, %v1628
        %vm1766 = vcmp.eq.f32.partialorder %v1765, 8.507059e+37
        %v1767 = vand.u32 %v1628, 2147483648
        %v1768 = vor.u32 1.1754944e-38, %v1767
        %v1769 = vsel %vm1766, %v1768, %v1764
        %v1770 = vmul.f32 1.0, %v1769
        %v1771 = vrcp.pop %v1629
        %v1772 = vmul.f32 %v1629, %v1771
        %v1773 = vsub.f32 1.0, %v1772
        %v1774 = vmul.f32 %v1771, %v1773
        %v1775 = vadd.f32 %v1771, %v1774
        %vm1776 = vweird.f32 %v1629
        %vm1777 = vweird.f32 %v1771
        %vm1778 = vmor %vm1776, %vm1777
        %v1779 = vsel %vm1778, %v1771, %v1775
        %v1780 = vand.u32 2147483647, %v1629
        %vm1781 = vcmp.eq.f32.partialorder %v1780, 8.507059e+37
        %v1782 = vand.u32 %v1629, 2147483648
        %v1783 = vor.u32 1.1754944e-38, %v1782
        %v1784 = vsel %vm1781, %v1783, %v1779
        %v1785 = vmul.f32 1.0, %v1784
        %v1786 = vrcp.pop %v1630
        %v1787 = vmul.f32 %v1630, %v1786
        %v1788 = vsub.f32 1.0, %v1787
        %v1789 = vmul.f32 %v1786, %v1788
        %v1790 = vadd.f32 %v1786, %v1789
        %vm1791 = vweird.f32 %v1630
        %vm1792 = vweird.f32 %v1786
        %vm1793 = vmor %vm1791, %vm1792
        %v1794 = vsel %vm1793, %v1786, %v1790
        %v1795 = vand.u32 2147483647, %v1630
        %vm1796 = vcmp.eq.f32.partialorder %v1795, 8.507059e+37
        %v1797 = vand.u32 %v1630, 2147483648
        %v1798 = vor.u32 1.1754944e-38, %v1797
        %v1799 = vsel %vm1796, %v1798, %v1794
        %v1800 = vmul.f32 1.0, %v1799
        %v1801 = vrcp.pop %v1631
        %v1802 = vmul.f32 %v1631, %v1801
        %v1803 = vsub.f32 1.0, %v1802
        %v1804 = vmul.f32 %v1801, %v1803
        %v1805 = vadd.f32 %v1801, %v1804
        %vm1806 = vweird.f32 %v1631
        %vm1807 = vweird.f32 %v1801
        %vm1808 = vmor %vm1806, %vm1807
        %v1809 = vsel %vm1808, %v1801, %v1805
        %v1810 = vand.u32 2147483647, %v1631
        %vm1811 = vcmp.eq.f32.partialorder %v1810, 8.507059e+37
        %v1812 = vand.u32 %v1631, 2147483648
        %v1813 = vor.u32 1.1754944e-38, %v1812
        %v1814 = vsel %vm1811, %v1813, %v1809
        %v1815 = vmul.f32 1.0, %v1814
        %v1816 = vrcp.pop %v1632
        %v1817 = vmul.f32 %v1632, %v1816
        %v1818 = vsub.f32 1.0, %v1817
        %v1819 = vmul.f32 %v1816, %v1818
        %v1820 = vadd.f32 %v1816, %v1819
        %vm1821 = vweird.f32 %v1632
        %vm1822 = vweird.f32 %v1816
        %vm1823 = vmor %vm1821, %vm1822
        %v1824 = vsel %vm1823, %v1816, %v1820
        %v1825 = vand.u32 2147483647, %v1632
        %vm1826 = vcmp.eq.f32.partialorder %v1825, 8.507059e+37
        %v1827 = vand.u32 %v1632, 2147483648
        %v1828 = vor.u32 1.1754944e-38, %v1827
        %v1829 = vsel %vm1826, %v1828, %v1824
        %v1830 = vmul.f32 1.0, %v1829
        %v1831 = vrcp.pop %v1633
        %v1832 = vmul.f32 %v1633, %v1831
        %v1833 = vsub.f32 1.0, %v1832
        %v1834 = vmul.f32 %v1831, %v1833
        %v1835 = vadd.f32 %v1831, %v1834
        %vm1836 = vweird.f32 %v1633
        %vm1837 = vweird.f32 %v1831
        %vm1838 = vmor %vm1836, %vm1837
        %v1839 = vsel %vm1838, %v1831, %v1835
        %v1840 = vand.u32 2147483647, %v1633
        %vm1841 = vcmp.eq.f32.partialorder %v1840, 8.507059e+37
        %v1842 = vand.u32 %v1633, 2147483648
        %v1843 = vor.u32 1.1754944e-38, %v1842
        %v1844 = vsel %vm1841, %v1843, %v1839
        %v1845 = vmul.f32 1.0, %v1844
        %v1846 = vrcp.pop %v1634
        %v1847 = vmul.f32 %v1634, %v1846
        %v1848 = vsub.f32 1.0, %v1847
        %v1849 = vmul.f32 %v1846, %v1848
        %v1850 = vadd.f32 %v1846, %v1849
        %vm1851 = vweird.f32 %v1634
        %vm1852 = vweird.f32 %v1846
        %vm1853 = vmor %vm1851, %vm1852
        %v1854 = vsel %vm1853, %v1846, %v1850
        %v1855 = vand.u32 2147483647, %v1634
        %vm1856 = vcmp.eq.f32.partialorder %v1855, 8.507059e+37
        %v1857 = vand.u32 %v1634, 2147483648
        %v1858 = vor.u32 1.1754944e-38, %v1857
        %v1859 = vsel %vm1856, %v1858, %v1854
        %v1860 = vmul.f32 1.0, %v1859
        %v1861 = vrcp.pop %v1635
        %v1862 = vmul.f32 %v1635, %v1861
        %v1863 = vsub.f32 1.0, %v1862
        %v1864 = vmul.f32 %v1861, %v1863
        %v1865 = vadd.f32 %v1861, %v1864
        %vm1866 = vweird.f32 %v1635
        %vm1867 = vweird.f32 %v1861
        %vm1868 = vmor %vm1866, %vm1867
        %v1869 = vsel %vm1868, %v1861, %v1865
        %v1870 = vand.u32 2147483647, %v1635
        %vm1871 = vcmp.eq.f32.partialorder %v1870, 8.507059e+37
        %v1872 = vand.u32 %v1635, 2147483648
        %v1873 = vor.u32 1.1754944e-38, %v1872
        %v1874 = vsel %vm1871, %v1873, %v1869
        %v1875 = vmul.f32 1.0, %v1874
        %v1876 = vmul.f32 %v1650, %v1391
        %v1877 = vmul.f32 %v1665, %v1393
        %v1878 = vmul.f32 %v1680, %v1395
        %v1879 = vmul.f32 %v1695, %v1397
        %v1880 = vmul.f32 %v1710, %v1399
        %v1881 = vmul.f32 %v1725, %v1401
        %v1882 = vmul.f32 %v1740, %v1403
        %v1883 = vmul.f32 %v1755, %v1405
        %v1884 = vmul.f32 %v1770, %v1407
        %v1885 = vmul.f32 %v1785, %v1409
        %v1886 = vmul.f32 %v1800, %v1411
        %v1887 = vmul.f32 %v1815, %v1413
        %v1888 = vmul.f32 %v1830, %v1415
        %v1889 = vmul.f32 %v1845, %v1417
        %v1890 = vmul.f32 %v1860, %v1419
        %v1891 = vmul.f32 %v1875, %v1421
        %v1892 = vld [vmem:[%s7] sm:$0xf]
        %v1893 = vld [vmem:[%s7 + $0x4] sm:$0xf]
        %v1894 = vld [vmem:[%s7 + $0x8] sm:$0xf]
        %v1895 = vld [vmem:[%s7 + $0xc] sm:$0xf]
        %v1896 = vpack.c.bf16 %v1877, %v1876
        %v1897 = vpack.c.bf16 %v1879, %v1878
        %v1898 = vpack.c.bf16 %v1881, %v1880
        %v1899 = vpack.c.bf16 %v1883, %v1882
        %v1900 = vpack.c.bf16 %v1885, %v1884
        %v1901 = vpack.c.bf16 %v1887, %v1886
        %v1902 = vpack.c.bf16 %v1889, %v1888
        %v1903 = vpack.c.bf16 %v1891, %v1890
        %1912 = vrot.lane.b32.xlu0 %v1896, 96
        %v1913 = vpop.permute.xlu0 %1912
        %1914 = vrot.lane.b32.xlu0 %v1897, 96
        %v1915 = vpop.permute.xlu0 %1914
        %1916 = vrot.lane.b32.xlu0 %v1898, 96
        %v1917 = vpop.permute.xlu0 %1916
        %1918 = vrot.lane.b32.xlu0 %v1899, 96
        %v1919 = vpop.permute.xlu0 %1918
        %1920 = vrot.lane.b32.xlu0 %v1900, 96
        %v1921 = vpop.permute.xlu0 %1920
        %1922 = vrot.lane.b32.xlu0 %v1901, 96
        %v1923 = vpop.permute.xlu0 %1922
        %1924 = vrot.lane.b32.xlu0 %v1902, 96
        %v1925 = vpop.permute.xlu0 %1924
        %1926 = vrot.lane.b32.xlu0 %v1903, 96
        %v1927 = vpop.permute.xlu0 %1926
        %v1932 = vunpack.c.l.b16 %v1892
        %v1933 = vunpack.c.l.b16 %v1893
        %v1934 = vunpack.c.l.b16 %v1894
        %v1935 = vunpack.c.l.b16 %v1895
        %v1936 = vpack.c.b16 %v1933, %v1932
        %v1937 = vpack.c.b16 %v1935, %v1934
        %v1941 = vsel %vm1438, %v1913, 0
        %v1944 = vsel %vm1438, %v1915, 0
        %v1947 = vsel %vm1438, %v1917, 0
        %v1950 = vsel %vm1438, %v1919, 0
        %v1953 = vsel %vm1438, %v1921, 0
        %v1956 = vsel %vm1438, %v1923, 0
        %v1959 = vsel %vm1438, %v1925, 0
        %v1962 = vsel %vm1438, %v1927, 0
        %1964 = vmatpush.bf16.msra.mxu0 0
        %1965 = vmatpush.bf16.msra.mxu0 0
        %1966 = vmatpush.bf16.msra.mxu0 0
        %1967 = vmatpush.bf16.msra.mxu0 0
        %1968 = vmatpush.bf16.msra.mxu0 0
        %1969 = vmatpush.bf16.msra.mxu0 0
        %1970 = vmatpush.bf16.msra.mxu0 %v1937
        %1971 = vmatpush.bf16.msra.mxu0 %v1936
        %1972 = vmatmul.bf16.gmra.mxu0 %v1941
        %v1973 = vpop.f32.mrf.mxu0
        %v1974 = vadd.f32 0.0, %v1973
        %v1975 = vpop.f32.mrf.mxu0
        %v1976 = vadd.f32 0.0, %v1975
        %1977 = vmatmul.bf16.gmra.mxu0 %v1944
        %v1978 = vpop.f32.mrf.mxu0
        %v1979 = vadd.f32 0.0, %v1978
        %v1980 = vpop.f32.mrf.mxu0
        %v1981 = vadd.f32 0.0, %v1980
        %1982 = vmatmul.bf16.gmra.mxu0 %v1947
        %v1983 = vpop.f32.mrf.mxu0
        %v1984 = vadd.f32 0.0, %v1983
        %v1985 = vpop.f32.mrf.mxu0
        %v1986 = vadd.f32 0.0, %v1985
        %1987 = vmatmul.bf16.gmra.mxu0 %v1950
        %v1988 = vpop.f32.mrf.mxu0
        %v1989 = vadd.f32 0.0, %v1988
        %v1990 = vpop.f32.mrf.mxu0
        %v1991 = vadd.f32 0.0, %v1990
        %1992 = vmatmul.bf16.gmra.mxu0 %v1953
        %v1993 = vpop.f32.mrf.mxu0
        %v1994 = vadd.f32 0.0, %v1993
        %v1995 = vpop.f32.mrf.mxu0
        %v1996 = vadd.f32 0.0, %v1995
        %1997 = vmatmul.bf16.gmra.mxu0 %v1956
        %v1998 = vpop.f32.mrf.mxu0
        %v1999 = vadd.f32 0.0, %v1998
        %v2000 = vpop.f32.mrf.mxu0
        %v2001 = vadd.f32 0.0, %v2000
        %2002 = vmatmul.bf16.gmra.mxu0 %v1959
        %v2003 = vpop.f32.mrf.mxu0
        %v2004 = vadd.f32 0.0, %v2003
        %v2005 = vpop.f32.mrf.mxu0
        %v2006 = vadd.f32 0.0, %v2005
        %2007 = vmatmul.bf16.gmra.mxu0 %v1962
        %v2008 = vpop.f32.mrf.mxu0
        %v2009 = vadd.f32 0.0, %v2008
        %v2010 = vpop.f32.mrf.mxu0
        %v2011 = vadd.f32 0.0, %v2010
        %2012 = vdwg.mxu0
        %2029 = vrot.lane.b32.xlu0 %v1974, 64
        %v2030 = vpop.permute.xlu0 %2029
        %2031 = vrot.lane.b32.xlu0 %v1976, 64
        %v2032 = vpop.permute.xlu0 %2031
        %2033 = vrot.lane.b32.xlu0 %v1979, 64
        %v2034 = vpop.permute.xlu0 %2033
        %2035 = vrot.lane.b32.xlu0 %v1981, 64
        %v2036 = vpop.permute.xlu0 %2035
        %2037 = vrot.lane.b32.xlu0 %v1984, 64
        %v2038 = vpop.permute.xlu0 %2037
        %2039 = vrot.lane.b32.xlu0 %v1986, 64
        %v2040 = vpop.permute.xlu0 %2039
        %2041 = vrot.lane.b32.xlu0 %v1989, 64
        %v2042 = vpop.permute.xlu0 %2041
        %2043 = vrot.lane.b32.xlu0 %v1991, 64
        %v2044 = vpop.permute.xlu0 %2043
        %2045 = vrot.lane.b32.xlu0 %v1994, 64
        %v2046 = vpop.permute.xlu0 %2045
        %2047 = vrot.lane.b32.xlu0 %v1996, 64
        %v2048 = vpop.permute.xlu0 %2047
        %2049 = vrot.lane.b32.xlu0 %v1999, 64
        %v2050 = vpop.permute.xlu0 %2049
        %2051 = vrot.lane.b32.xlu0 %v2001, 64
        %v2052 = vpop.permute.xlu0 %2051
        %2053 = vrot.lane.b32.xlu0 %v2004, 64
        %v2054 = vpop.permute.xlu0 %2053
        %2055 = vrot.lane.b32.xlu0 %v2006, 64
        %v2056 = vpop.permute.xlu0 %2055
        %2057 = vrot.lane.b32.xlu0 %v2009, 64
        %v2058 = vpop.permute.xlu0 %2057
        %2059 = vrot.lane.b32.xlu0 %v2011, 64
        %v2060 = vpop.permute.xlu0 %2059
        %v2077 = vadd.f32 %v1533, %v2030
        %v2078 = vadd.f32 %v1535, %v2032
        %v2079 = vadd.f32 %v1538, %v2034
        %v2080 = vadd.f32 %v1540, %v2036
        %v2081 = vadd.f32 %v1543, %v2038
        %v2082 = vadd.f32 %v1545, %v2040
        %v2083 = vadd.f32 %v1548, %v2042
        %v2084 = vadd.f32 %v1550, %v2044
        %v2085 = vadd.f32 %v1553, %v2046
        %v2086 = vadd.f32 %v1555, %v2048
        %v2087 = vadd.f32 %v1558, %v2050
        %v2088 = vadd.f32 %v1560, %v2052
        %v2089 = vadd.f32 %v1563, %v2054
        %v2090 = vadd.f32 %v1565, %v2056
        %v2091 = vadd.f32 %v1568, %v2058
        %v2092 = vadd.f32 %v1570, %v2060
        %v2094 = vperm.slane %v1132, 0
        %2095 = vrot.lane.b32.xlu0 %v2094, 64
        %v2096 = vpop.permute.xlu0 %2095
        %v2098 = vadd.f32 %v2077, %v2096
        %v2099 = vadd.f32 %v2078, %v2096
        %v2100 = vadd.f32 %v2079, %v2096
        %v2101 = vadd.f32 %v2080, %v2096
        %v2102 = vadd.f32 %v2081, %v2096
        %v2103 = vadd.f32 %v2082, %v2096
        %v2104 = vadd.f32 %v2083, %v2096
        %v2105 = vadd.f32 %v2084, %v2096
        %v2106 = vadd.f32 %v2085, %v2096
        %v2107 = vadd.f32 %v2086, %v2096
        %v2108 = vadd.f32 %v2087, %v2096
        %v2109 = vadd.f32 %v2088, %v2096
        %v2110 = vadd.f32 %v2089, %v2096
        %v2111 = vadd.f32 %v2090, %v2096
        %v2112 = vadd.f32 %v2091, %v2096
        %v2113 = vadd.f32 %v2092, %v2096
        %v2114 = vtanh.pop %v2098
        %v2115 = vtanh.pop %v2099
        %v2116 = vtanh.pop %v2100
        %v2117 = vtanh.pop %v2101
        %v2118 = vtanh.pop %v2102
        %v2119 = vtanh.pop %v2103
        %v2120 = vtanh.pop %v2104
        %v2121 = vtanh.pop %v2105
        %v2122 = vtanh.pop %v2106
        %v2123 = vtanh.pop %v2107
        %v2124 = vtanh.pop %v2108
        %v2125 = vtanh.pop %v2109
        %v2126 = vtanh.pop %v2110
        %v2127 = vtanh.pop %v2111
        %v2128 = vtanh.pop %v2112
        %v2129 = vtanh.pop %v2113
        %2146 = vrot.lane.b32.xlu0 %v1650, 64
        %v2147 = vpop.permute.xlu0 %2146
        %2148 = vrot.lane.b32.xlu0 %v1665, 64
        %v2149 = vpop.permute.xlu0 %2148
        %2150 = vrot.lane.b32.xlu0 %v1680, 64
        %v2151 = vpop.permute.xlu0 %2150
        %2152 = vrot.lane.b32.xlu0 %v1695, 64
        %v2153 = vpop.permute.xlu0 %2152
        %2154 = vrot.lane.b32.xlu0 %v1710, 64
        %v2155 = vpop.permute.xlu0 %2154
        %2156 = vrot.lane.b32.xlu0 %v1725, 64
        %v2157 = vpop.permute.xlu0 %2156
        %2158 = vrot.lane.b32.xlu0 %v1740, 64
        %v2159 = vpop.permute.xlu0 %2158
        %2160 = vrot.lane.b32.xlu0 %v1755, 64
        %v2161 = vpop.permute.xlu0 %2160
        %2162 = vrot.lane.b32.xlu0 %v1770, 64
        %v2163 = vpop.permute.xlu0 %2162
        %2164 = vrot.lane.b32.xlu0 %v1785, 64
        %v2165 = vpop.permute.xlu0 %2164
        %2166 = vrot.lane.b32.xlu0 %v1800, 64
        %v2167 = vpop.permute.xlu0 %2166
        %2168 = vrot.lane.b32.xlu0 %v1815, 64
        %v2169 = vpop.permute.xlu0 %2168
        %2170 = vrot.lane.b32.xlu0 %v1830, 64
        %v2171 = vpop.permute.xlu0 %2170
        %2172 = vrot.lane.b32.xlu0 %v1845, 64
        %v2173 = vpop.permute.xlu0 %2172
        %2174 = vrot.lane.b32.xlu0 %v1860, 64
        %v2175 = vpop.permute.xlu0 %2174
        %2176 = vrot.lane.b32.xlu0 %v1875, 64
        %v2177 = vpop.permute.xlu0 %2176
        %v2194 = vmul.f32 %v2114, %v2147
        %v2195 = vmul.f32 %v2115, %v2149
        %v2196 = vmul.f32 %v2116, %v2151
        %v2197 = vmul.f32 %v2117, %v2153
        %v2198 = vmul.f32 %v2118, %v2155
        %v2199 = vmul.f32 %v2119, %v2157
        %v2200 = vmul.f32 %v2120, %v2159
        %v2201 = vmul.f32 %v2121, %v2161
        %v2202 = vmul.f32 %v2122, %v2163
        %v2203 = vmul.f32 %v2123, %v2165
        %v2204 = vmul.f32 %v2124, %v2167
        %v2205 = vmul.f32 %v2125, %v2169
        %v2206 = vmul.f32 %v2126, %v2171
        %v2207 = vmul.f32 %v2127, %v2173
        %v2208 = vmul.f32 %v2128, %v2175
        %v2209 = vmul.f32 %v2129, %v2177
        %v2210 = vsub.f32 1.0, %v1650
        %v2211 = vsub.f32 1.0, %v1665
        %v2212 = vsub.f32 1.0, %v1680
        %v2213 = vsub.f32 1.0, %v1695
        %v2214 = vsub.f32 1.0, %v1710
        %v2215 = vsub.f32 1.0, %v1725
        %v2216 = vsub.f32 1.0, %v1740
        %v2217 = vsub.f32 1.0, %v1755
        %v2218 = vsub.f32 1.0, %v1770
        %v2219 = vsub.f32 1.0, %v1785
        %v2220 = vsub.f32 1.0, %v1800
        %v2221 = vsub.f32 1.0, %v1815
        %v2222 = vsub.f32 1.0, %v1830
        %v2223 = vsub.f32 1.0, %v1845
        %v2224 = vsub.f32 1.0, %v1860
        %v2225 = vsub.f32 1.0, %v1875
        %v2226 = vmul.f32 %v1115, %v2210
        %v2227 = vmul.f32 %v1116, %v2211
        %v2228 = vmul.f32 %v1117, %v2212
        %v2229 = vmul.f32 %v1118, %v2213
        %v2230 = vmul.f32 %v1119, %v2214
        %v2231 = vmul.f32 %v1120, %v2215
        %v2232 = vmul.f32 %v1121, %v2216
        %v2233 = vmul.f32 %v1122, %v2217
        %v2234 = vmul.f32 %v1123, %v2218
        %v2235 = vmul.f32 %v1124, %v2219
        %v2236 = vmul.f32 %v1125, %v2220
        %v2237 = vmul.f32 %v1126, %v2221
        %v2238 = vmul.f32 %v1127, %v2222
        %v2239 = vmul.f32 %v1128, %v2223
        %v2240 = vmul.f32 %v1129, %v2224
        %v2241 = vmul.f32 %v1130, %v2225
        %2258 = vrot.lane.b32.xlu0 %v2226, 64
        %v2259 = vpop.permute.xlu0 %2258
        %2260 = vrot.lane.b32.xlu0 %v2227, 64
        %v2261 = vpop.permute.xlu0 %2260
        %2262 = vrot.lane.b32.xlu0 %v2228, 64
        %v2263 = vpop.permute.xlu0 %2262
        %2264 = vrot.lane.b32.xlu0 %v2229, 64
        %v2265 = vpop.permute.xlu0 %2264
        %2266 = vrot.lane.b32.xlu0 %v2230, 64
        %v2267 = vpop.permute.xlu0 %2266
        %2268 = vrot.lane.b32.xlu0 %v2231, 64
        %v2269 = vpop.permute.xlu0 %2268
        %2270 = vrot.lane.b32.xlu0 %v2232, 64
        %v2271 = vpop.permute.xlu0 %2270
        %2272 = vrot.lane.b32.xlu0 %v2233, 64
        %v2273 = vpop.permute.xlu0 %2272
        %2274 = vrot.lane.b32.xlu0 %v2234, 64
        %v2275 = vpop.permute.xlu0 %2274
        %2276 = vrot.lane.b32.xlu0 %v2235, 64
        %v2277 = vpop.permute.xlu0 %2276
        %2278 = vrot.lane.b32.xlu0 %v2236, 64
        %v2279 = vpop.permute.xlu0 %2278
        %2280 = vrot.lane.b32.xlu0 %v2237, 64
        %v2281 = vpop.permute.xlu0 %2280
        %2282 = vrot.lane.b32.xlu0 %v2238, 64
        %v2283 = vpop.permute.xlu0 %2282
        %2284 = vrot.lane.b32.xlu0 %v2239, 64
        %v2285 = vpop.permute.xlu0 %2284
        %2286 = vrot.lane.b32.xlu0 %v2240, 64
        %v2287 = vpop.permute.xlu0 %2286
        %2288 = vrot.lane.b32.xlu0 %v2241, 64
        %v2289 = vpop.permute.xlu0 %2288
        %v2306 = vadd.f32 %v2194, %v2259
        %v2307 = vadd.f32 %v2195, %v2261
        %v2308 = vadd.f32 %v2196, %v2263
        %v2309 = vadd.f32 %v2197, %v2265
        %v2310 = vadd.f32 %v2198, %v2267
        %v2311 = vadd.f32 %v2199, %v2269
        %v2312 = vadd.f32 %v2200, %v2271
        %v2313 = vadd.f32 %v2201, %v2273
        %v2314 = vadd.f32 %v2202, %v2275
        %v2315 = vadd.f32 %v2203, %v2277
        %v2316 = vadd.f32 %v2204, %v2279
        %v2317 = vadd.f32 %v2205, %v2281
        %v2318 = vadd.f32 %v2206, %v2283
        %v2319 = vadd.f32 %v2207, %v2285
        %v2320 = vadd.f32 %v2208, %v2287
        %v2321 = vadd.f32 %v2209, %v2289
        %v2322 = vmul.f32 %v2306, %v872
        %v2323 = vmul.f32 %v2307, %v877
        %v2324 = vmul.f32 %v2308, %v882
        %v2325 = vmul.f32 %v2309, %v887
        %v2326 = vmul.f32 %v2310, %v892
        %v2327 = vmul.f32 %v2311, %v897
        %v2328 = vmul.f32 %v2312, %v902
        %v2329 = vmul.f32 %v2313, %v907
        %v2330 = vmul.f32 %v2314, %v912
        %v2331 = vmul.f32 %v2315, %v917
        %v2332 = vmul.f32 %v2316, %v922
        %v2333 = vmul.f32 %v2317, %v927
        %v2334 = vmul.f32 %v2318, %v932
        %v2335 = vmul.f32 %v2319, %v937
        %v2336 = vmul.f32 %v2320, %v942
        %v2337 = vmul.f32 %v2321, %v947
        %v2338 = vpack.c.bf16 %v2322, %v2322
        %v2339 = vpack.c.bf16 %v2323, %v2323
        %v2340 = vpack.c.bf16 %v2324, %v2324
        %v2341 = vpack.c.bf16 %v2325, %v2325
        %v2342 = vpack.c.bf16 %v2326, %v2326
        %v2343 = vpack.c.bf16 %v2327, %v2327
        %v2344 = vpack.c.bf16 %v2328, %v2328
        %v2345 = vpack.c.bf16 %v2329, %v2329
        %v2346 = vpack.c.bf16 %v2330, %v2330
        %v2347 = vpack.c.bf16 %v2331, %v2331
        %v2348 = vpack.c.bf16 %v2332, %v2332
        %v2349 = vpack.c.bf16 %v2333, %v2333
        %v2350 = vpack.c.bf16 %v2334, %v2334
        %v2351 = vpack.c.bf16 %v2335, %v2335
        %v2352 = vpack.c.bf16 %v2336, %v2336
        %v2353 = vpack.c.bf16 %v2337, %v2337
        %v2356 = vunpack.c.l.b16 %v2338
        %v2357 = vunpack.c.l.b16 %v2339
        %v2358 = vpack.c.b16 %v2357, %v2356
        %2359 = vrot.lane.b32.xlu0 %v2358, 64
        %v2360 = vpop.permute.xlu0 %2359
        %2362 = vmatpush.bf16.msra.mxu0 0
        %2363 = vmatpush.bf16.msra.mxu0 0
        %2364 = vmatpush.bf16.msra.mxu0 0
        %2365 = vmatpush.bf16.msra.mxu0 0
        %2366 = vmatpush.bf16.msra.mxu0 0
        %2367 = vmatpush.bf16.msra.mxu0 0
        %2368 = vmatpush.bf16.msra.mxu0 0
        %2369 = vmatpush.bf16.msra.mxu0 %v2360
        %2370 = vmatmul.bf16.gmra.mxu0 %v1162
        %v2371 = vpop.f32.mrf.mxu0
        %v2372 = vadd.f32 0.0, %v2371
        %v2373 = vpop.f32.mrf.mxu0
        %v2374 = vadd.f32 0.0, %v2373
        %2375 = vdwg.mxu0
        %v2378 = vunpack.c.l.b16 %v2340
        %v2379 = vunpack.c.l.b16 %v2341
        %v2380 = vpack.c.b16 %v2379, %v2378
        %2381 = vrot.lane.b32.xlu0 %v2380, 64
        %v2382 = vpop.permute.xlu0 %2381
        %2384 = vmatpush.bf16.msra.mxu0 0
        %2385 = vmatpush.bf16.msra.mxu0 0
        %2386 = vmatpush.bf16.msra.mxu0 0
        %2387 = vmatpush.bf16.msra.mxu0 0
        %2388 = vmatpush.bf16.msra.mxu0 0
        %2389 = vmatpush.bf16.msra.mxu0 0
        %2390 = vmatpush.bf16.msra.mxu0 0
        %2391 = vmatpush.bf16.msra.mxu0 %v2382
        %2392 = vmatmul.bf16.gmra.mxu0 %v1190
        %v2393 = vpop.f32.mrf.mxu0
        %v2394 = vadd.f32 0.0, %v2393
        %v2395 = vpop.f32.mrf.mxu0
        %v2396 = vadd.f32 0.0, %v2395
        %2397 = vdwg.mxu0
        %v2400 = vunpack.c.l.b16 %v2342
        %v2401 = vunpack.c.l.b16 %v2343
        %v2402 = vpack.c.b16 %v2401, %v2400
        %2403 = vrot.lane.b32.xlu0 %v2402, 64
        %v2404 = vpop.permute.xlu0 %2403
        %2406 = vmatpush.bf16.msra.mxu0 0
        %2407 = vmatpush.bf16.msra.mxu0 0
        %2408 = vmatpush.bf16.msra.mxu0 0
        %2409 = vmatpush.bf16.msra.mxu0 0
        %2410 = vmatpush.bf16.msra.mxu0 0
        %2411 = vmatpush.bf16.msra.mxu0 0
        %2412 = vmatpush.bf16.msra.mxu0 0
        %2413 = vmatpush.bf16.msra.mxu0 %v2404
        %2414 = vmatmul.bf16.gmra.mxu0 %v1218
        %v2415 = vpop.f32.mrf.mxu0
        %v2416 = vadd.f32 0.0, %v2415
        %v2417 = vpop.f32.mrf.mxu0
        %v2418 = vadd.f32 0.0, %v2417
        %2419 = vdwg.mxu0
        %v2422 = vunpack.c.l.b16 %v2344
        %v2423 = vunpack.c.l.b16 %v2345
        %v2424 = vpack.c.b16 %v2423, %v2422
        %2425 = vrot.lane.b32.xlu0 %v2424, 64
        %v2426 = vpop.permute.xlu0 %2425
        %2428 = vmatpush.bf16.msra.mxu0 0
        %2429 = vmatpush.bf16.msra.mxu0 0
        %2430 = vmatpush.bf16.msra.mxu0 0
        %2431 = vmatpush.bf16.msra.mxu0 0
        %2432 = vmatpush.bf16.msra.mxu0 0
        %2433 = vmatpush.bf16.msra.mxu0 0
        %2434 = vmatpush.bf16.msra.mxu0 0
        %2435 = vmatpush.bf16.msra.mxu0 %v2426
        %2436 = vmatmul.bf16.gmra.mxu0 %v1246
        %v2437 = vpop.f32.mrf.mxu0
        %v2438 = vadd.f32 0.0, %v2437
        %v2439 = vpop.f32.mrf.mxu0
        %v2440 = vadd.f32 0.0, %v2439
        %2441 = vdwg.mxu0
        %v2444 = vunpack.c.l.b16 %v2346
        %v2445 = vunpack.c.l.b16 %v2347
        %v2446 = vpack.c.b16 %v2445, %v2444
        %2447 = vrot.lane.b32.xlu0 %v2446, 64
        %v2448 = vpop.permute.xlu0 %2447
        %2450 = vmatpush.bf16.msra.mxu0 0
        %2451 = vmatpush.bf16.msra.mxu0 0
        %2452 = vmatpush.bf16.msra.mxu0 0
        %2453 = vmatpush.bf16.msra.mxu0 0
        %2454 = vmatpush.bf16.msra.mxu0 0
        %2455 = vmatpush.bf16.msra.mxu0 0
        %2456 = vmatpush.bf16.msra.mxu0 0
        %2457 = vmatpush.bf16.msra.mxu0 %v2448
        %2458 = vmatmul.bf16.gmra.mxu0 %v1274
        %v2459 = vpop.f32.mrf.mxu0
        %v2460 = vadd.f32 0.0, %v2459
        %v2461 = vpop.f32.mrf.mxu0
        %v2462 = vadd.f32 0.0, %v2461
        %2463 = vdwg.mxu0
        %v2466 = vunpack.c.l.b16 %v2348
        %v2467 = vunpack.c.l.b16 %v2349
        %v2468 = vpack.c.b16 %v2467, %v2466
        %2469 = vrot.lane.b32.xlu0 %v2468, 64
        %v2470 = vpop.permute.xlu0 %2469
        %2472 = vmatpush.bf16.msra.mxu0 0
        %2473 = vmatpush.bf16.msra.mxu0 0
        %2474 = vmatpush.bf16.msra.mxu0 0
        %2475 = vmatpush.bf16.msra.mxu0 0
        %2476 = vmatpush.bf16.msra.mxu0 0
        %2477 = vmatpush.bf16.msra.mxu0 0
        %2478 = vmatpush.bf16.msra.mxu0 0
        %2479 = vmatpush.bf16.msra.mxu0 %v2470
        %2480 = vmatmul.bf16.gmra.mxu0 %v1302
        %v2481 = vpop.f32.mrf.mxu0
        %v2482 = vadd.f32 0.0, %v2481
        %v2483 = vpop.f32.mrf.mxu0
        %v2484 = vadd.f32 0.0, %v2483
        %2485 = vdwg.mxu0
        %v2488 = vunpack.c.l.b16 %v2350
        %v2489 = vunpack.c.l.b16 %v2351
        %v2490 = vpack.c.b16 %v2489, %v2488
        %2491 = vrot.lane.b32.xlu0 %v2490, 64
        %v2492 = vpop.permute.xlu0 %2491
        %2494 = vmatpush.bf16.msra.mxu0 0
        %2495 = vmatpush.bf16.msra.mxu0 0
        %2496 = vmatpush.bf16.msra.mxu0 0
        %2497 = vmatpush.bf16.msra.mxu0 0
        %2498 = vmatpush.bf16.msra.mxu0 0
        %2499 = vmatpush.bf16.msra.mxu0 0
        %2500 = vmatpush.bf16.msra.mxu0 0
        %2501 = vmatpush.bf16.msra.mxu0 %v2492
        %2502 = vmatmul.bf16.gmra.mxu0 %v1330
        %v2503 = vpop.f32.mrf.mxu0
        %v2504 = vadd.f32 0.0, %v2503
        %v2505 = vpop.f32.mrf.mxu0
        %v2506 = vadd.f32 0.0, %v2505
        %2507 = vdwg.mxu0
        %v2510 = vunpack.c.l.b16 %v2352
        %v2511 = vunpack.c.l.b16 %v2353
        %v2512 = vpack.c.b16 %v2511, %v2510
        %2513 = vrot.lane.b32.xlu0 %v2512, 64
        %v2514 = vpop.permute.xlu0 %2513
        %2516 = vmatpush.bf16.msra.mxu0 0
        %2517 = vmatpush.bf16.msra.mxu0 0
        %2518 = vmatpush.bf16.msra.mxu0 0
        %2519 = vmatpush.bf16.msra.mxu0 0
        %2520 = vmatpush.bf16.msra.mxu0 0
        %2521 = vmatpush.bf16.msra.mxu0 0
        %2522 = vmatpush.bf16.msra.mxu0 0
        %2523 = vmatpush.bf16.msra.mxu0 %v2514
        %2524 = vmatmul.bf16.gmra.mxu0 %v1358
        %v2525 = vpop.f32.mrf.mxu0
        %v2526 = vadd.f32 0.0, %v2525
        %v2527 = vpop.f32.mrf.mxu0
        %v2528 = vadd.f32 0.0, %v2527
        %2529 = vdwg.mxu0
        %2546 = vrot.lane.b32.xlu0 %v2322, 96
        %v2547 = vpop.permute.xlu0 %2546
        %2548 = vrot.lane.b32.xlu0 %v2323, 96
        %v2549 = vpop.permute.xlu0 %2548
        %2550 = vrot.lane.b32.xlu0 %v2324, 96
        %v2551 = vpop.permute.xlu0 %2550
        %2552 = vrot.lane.b32.xlu0 %v2325, 96
        %v2553 = vpop.permute.xlu0 %2552
        %2554 = vrot.lane.b32.xlu0 %v2326, 96
        %v2555 = vpop.permute.xlu0 %2554
        %2556 = vrot.lane.b32.xlu0 %v2327, 96
        %v2557 = vpop.permute.xlu0 %2556
        %2558 = vrot.lane.b32.xlu0 %v2328, 96
        %v2559 = vpop.permute.xlu0 %2558
        %2560 = vrot.lane.b32.xlu0 %v2329, 96
        %v2561 = vpop.permute.xlu0 %2560
        %2562 = vrot.lane.b32.xlu0 %v2330, 96
        %v2563 = vpop.permute.xlu0 %2562
        %2564 = vrot.lane.b32.xlu0 %v2331, 96
        %v2565 = vpop.permute.xlu0 %2564
        %2566 = vrot.lane.b32.xlu0 %v2332, 96
        %v2567 = vpop.permute.xlu0 %2566
        %2568 = vrot.lane.b32.xlu0 %v2333, 96
        %v2569 = vpop.permute.xlu0 %2568
        %2570 = vrot.lane.b32.xlu0 %v2334, 96
        %v2571 = vpop.permute.xlu0 %2570
        %2572 = vrot.lane.b32.xlu0 %v2335, 96
        %v2573 = vpop.permute.xlu0 %2572
        %2574 = vrot.lane.b32.xlu0 %v2336, 96
        %v2575 = vpop.permute.xlu0 %2574
        %2576 = vrot.lane.b32.xlu0 %v2337, 96
        %v2577 = vpop.permute.xlu0 %2576
        %v2594 = vsel %vm1438, %v2372, %v2547
        %v2595 = vsel %vm1438, %v2374, %v2549
        %v2596 = vsel %vm1438, %v2394, %v2551
        %v2597 = vsel %vm1438, %v2396, %v2553
        %v2598 = vsel %vm1438, %v2416, %v2555
        %v2599 = vsel %vm1438, %v2418, %v2557
        %v2600 = vsel %vm1438, %v2438, %v2559
        %v2601 = vsel %vm1438, %v2440, %v2561
        %v2602 = vsel %vm1438, %v2460, %v2563
        %v2603 = vsel %vm1438, %v2462, %v2565
        %v2604 = vsel %vm1438, %v2482, %v2567
        %v2605 = vsel %vm1438, %v2484, %v2569
        %v2606 = vsel %vm1438, %v2504, %v2571
        %v2607 = vsel %vm1438, %v2506, %v2573
        %v2608 = vsel %vm1438, %v2526, %v2575
        %v2609 = vsel %vm1438, %v2528, %v2577
        %v2610 = vpack.c.bf16 %v2595, %v2594
        %v2611 = vpack.c.bf16 %v2597, %v2596
        %v2612 = vpack.c.bf16 %v2599, %v2598
        %v2613 = vpack.c.bf16 %v2601, %v2600
        %v2614 = vpack.c.bf16 %v2603, %v2602
        %v2615 = vpack.c.bf16 %v2605, %v2604
        %v2616 = vpack.c.bf16 %v2607, %v2606
        %v2617 = vpack.c.bf16 %v2609, %v2608
        %v2619 = vsel %vm1498, %v2610, 0
        %v2622 = vsel %vm1498, %v2611, 0
        %v2625 = vsel %vm1498, %v2612, 0
        %v2628 = vsel %vm1498, %v2613, 0
        %v2631 = vsel %vm1498, %v2614, 0
        %v2634 = vsel %vm1498, %v2615, 0
        %v2637 = vsel %vm1498, %v2616, 0
        %v2640 = vsel %vm1498, %v2617, 0
        %2642 = vmatpush.bf16.msra.mxu0 0
        %2643 = vmatpush.bf16.msra.mxu0 0
        %2644 = vmatpush.bf16.msra.mxu0 0
        %2645 = vmatpush.bf16.msra.mxu0 0
        %2646 = vmatpush.bf16.msra.mxu0 %v1493
        %2647 = vmatpush.bf16.msra.mxu0 %v1492
        %2648 = vmatpush.bf16.msra.mxu0 %v1491
        %2649 = vmatpush.bf16.msra.mxu0 %v1490
        %2650 = vmatmul.bf16.gmra.mxu0 %v2619
        %v2651 = vpop.f32.mrf.mxu0
        %v2652 = vadd.f32 %v1472, %v2651
        %v2653 = vpop.f32.mrf.mxu0
        %v2654 = vadd.f32 %v1472, %v2653
        %2655 = vmatmul.bf16.gmra.mxu0 %v2622
        %v2656 = vpop.f32.mrf.mxu0
        %v2657 = vadd.f32 %v1472, %v2656
        %v2658 = vpop.f32.mrf.mxu0
        %v2659 = vadd.f32 %v1472, %v2658
        %2660 = vmatmul.bf16.gmra.mxu0 %v2625
        %v2661 = vpop.f32.mrf.mxu0
        %v2662 = vadd.f32 %v1472, %v2661
        %v2663 = vpop.f32.mrf.mxu0
        %v2664 = vadd.f32 %v1472, %v2663
        %2665 = vmatmul.bf16.gmra.mxu0 %v2628
        %v2666 = vpop.f32.mrf.mxu0
        %v2667 = vadd.f32 %v1472, %v2666
        %v2668 = vpop.f32.mrf.mxu0
        %v2669 = vadd.f32 %v1472, %v2668
        %2670 = vmatmul.bf16.gmra.mxu0 %v2631
        %v2671 = vpop.f32.mrf.mxu0
        %v2672 = vadd.f32 %v1472, %v2671
        %v2673 = vpop.f32.mrf.mxu0
        %v2674 = vadd.f32 %v1472, %v2673
        %2675 = vmatmul.bf16.gmra.mxu0 %v2634
        %v2676 = vpop.f32.mrf.mxu0
        %v2677 = vadd.f32 %v1472, %v2676
        %v2678 = vpop.f32.mrf.mxu0
        %v2679 = vadd.f32 %v1472, %v2678
        %2680 = vmatmul.bf16.gmra.mxu0 %v2637
        %v2681 = vpop.f32.mrf.mxu0
        %v2682 = vadd.f32 %v1472, %v2681
        %v2683 = vpop.f32.mrf.mxu0
        %v2684 = vadd.f32 %v1472, %v2683
        %2685 = vmatmul.bf16.gmra.mxu0 %v2640
        %v2686 = vpop.f32.mrf.mxu0
        %v2687 = vadd.f32 %v1472, %v2686
        %v2688 = vpop.f32.mrf.mxu0
        %v2689 = vadd.f32 %v1472, %v2688
        %2690 = vdwg.mxu0
        %v2691 = vxor.u32 %v2652, 2147483648
        %v2692 = vxor.u32 %v2654, 2147483648
        %v2693 = vxor.u32 %v2657, 2147483648
        %v2694 = vxor.u32 %v2659, 2147483648
        %v2695 = vxor.u32 %v2662, 2147483648
        %v2696 = vxor.u32 %v2664, 2147483648
        %v2697 = vxor.u32 %v2667, 2147483648
        %v2698 = vxor.u32 %v2669, 2147483648
        %v2699 = vxor.u32 %v2672, 2147483648
        %v2700 = vxor.u32 %v2674, 2147483648
        %v2701 = vxor.u32 %v2677, 2147483648
        %v2702 = vxor.u32 %v2679, 2147483648
        %v2703 = vxor.u32 %v2682, 2147483648
        %v2704 = vxor.u32 %v2684, 2147483648
        %v2705 = vxor.u32 %v2687, 2147483648
        %v2706 = vxor.u32 %v2689, 2147483648
        %v2707 = vmul.f32 %v2691, 1.442695
        %v2708 = vpow.pop %v2707
        %v2709 = vmul.f32 %v2692, 1.442695
        %v2710 = vpow.pop %v2709
        %v2711 = vmul.f32 %v2693, 1.442695
        %v2712 = vpow.pop %v2711
        %v2713 = vmul.f32 %v2694, 1.442695
        %v2714 = vpow.pop %v2713
        %v2715 = vmul.f32 %v2695, 1.442695
        %v2716 = vpow.pop %v2715
        %v2717 = vmul.f32 %v2696, 1.442695
        %v2718 = vpow.pop %v2717
        %v2719 = vmul.f32 %v2697, 1.442695
        %v2720 = vpow.pop %v2719
        %v2721 = vmul.f32 %v2698, 1.442695
        %v2722 = vpow.pop %v2721
        %v2723 = vmul.f32 %v2699, 1.442695
        %v2724 = vpow.pop %v2723
        %v2725 = vmul.f32 %v2700, 1.442695
        %v2726 = vpow.pop %v2725
        %v2727 = vmul.f32 %v2701, 1.442695
        %v2728 = vpow.pop %v2727
        %v2729 = vmul.f32 %v2702, 1.442695
        %v2730 = vpow.pop %v2729
        %v2731 = vmul.f32 %v2703, 1.442695
        %v2732 = vpow.pop %v2731
        %v2733 = vmul.f32 %v2704, 1.442695
        %v2734 = vpow.pop %v2733
        %v2735 = vmul.f32 %v2705, 1.442695
        %v2736 = vpow.pop %v2735
        %v2737 = vmul.f32 %v2706, 1.442695
        %v2738 = vpow.pop %v2737
        %v2739 = vadd.f32 %v2708, 1.0
        %v2740 = vadd.f32 %v2710, 1.0
        %v2741 = vadd.f32 %v2712, 1.0
        %v2742 = vadd.f32 %v2714, 1.0
        %v2743 = vadd.f32 %v2716, 1.0
        %v2744 = vadd.f32 %v2718, 1.0
        %v2745 = vadd.f32 %v2720, 1.0
        %v2746 = vadd.f32 %v2722, 1.0
        %v2747 = vadd.f32 %v2724, 1.0
        %v2748 = vadd.f32 %v2726, 1.0
        %v2749 = vadd.f32 %v2728, 1.0
        %v2750 = vadd.f32 %v2730, 1.0
        %v2751 = vadd.f32 %v2732, 1.0
        %v2752 = vadd.f32 %v2734, 1.0
        %v2753 = vadd.f32 %v2736, 1.0
        %v2754 = vadd.f32 %v2738, 1.0
        %v2755 = vrcp.pop %v2739
        %v2756 = vmul.f32 %v2739, %v2755
        %v2757 = vsub.f32 1.0, %v2756
        %v2758 = vmul.f32 %v2755, %v2757
        %v2759 = vadd.f32 %v2755, %v2758
        %vm2760 = vweird.f32 %v2739
        %vm2761 = vweird.f32 %v2755
        %vm2762 = vmor %vm2760, %vm2761
        %v2763 = vsel %vm2762, %v2755, %v2759
        %v2764 = vand.u32 2147483647, %v2739
        %vm2765 = vcmp.eq.f32.partialorder %v2764, 8.507059e+37
        %v2766 = vand.u32 %v2739, 2147483648
        %v2767 = vor.u32 1.1754944e-38, %v2766
        %v2768 = vsel %vm2765, %v2767, %v2763
        %v2769 = vmul.f32 1.0, %v2768
        %v2770 = vrcp.pop %v2740
        %v2771 = vmul.f32 %v2740, %v2770
        %v2772 = vsub.f32 1.0, %v2771
        %v2773 = vmul.f32 %v2770, %v2772
        %v2774 = vadd.f32 %v2770, %v2773
        %vm2775 = vweird.f32 %v2740
        %vm2776 = vweird.f32 %v2770
        %vm2777 = vmor %vm2775, %vm2776
        %v2778 = vsel %vm2777, %v2770, %v2774
        %v2779 = vand.u32 2147483647, %v2740
        %vm2780 = vcmp.eq.f32.partialorder %v2779, 8.507059e+37
        %v2781 = vand.u32 %v2740, 2147483648
        %v2782 = vor.u32 1.1754944e-38, %v2781
        %v2783 = vsel %vm2780, %v2782, %v2778
        %v2784 = vmul.f32 1.0, %v2783
        %v2785 = vrcp.pop %v2741
        %v2786 = vmul.f32 %v2741, %v2785
        %v2787 = vsub.f32 1.0, %v2786
        %v2788 = vmul.f32 %v2785, %v2787
        %v2789 = vadd.f32 %v2785, %v2788
        %vm2790 = vweird.f32 %v2741
        %vm2791 = vweird.f32 %v2785
        %vm2792 = vmor %vm2790, %vm2791
        %v2793 = vsel %vm2792, %v2785, %v2789
        %v2794 = vand.u32 2147483647, %v2741
        %vm2795 = vcmp.eq.f32.partialorder %v2794, 8.507059e+37
        %v2796 = vand.u32 %v2741, 2147483648
        %v2797 = vor.u32 1.1754944e-38, %v2796
        %v2798 = vsel %vm2795, %v2797, %v2793
        %v2799 = vmul.f32 1.0, %v2798
        %v2800 = vrcp.pop %v2742
        %v2801 = vmul.f32 %v2742, %v2800
        %v2802 = vsub.f32 1.0, %v2801
        %v2803 = vmul.f32 %v2800, %v2802
        %v2804 = vadd.f32 %v2800, %v2803
        %vm2805 = vweird.f32 %v2742
        %vm2806 = vweird.f32 %v2800
        %vm2807 = vmor %vm2805, %vm2806
        %v2808 = vsel %vm2807, %v2800, %v2804
        %v2809 = vand.u32 2147483647, %v2742
        %vm2810 = vcmp.eq.f32.partialorder %v2809, 8.507059e+37
        %v2811 = vand.u32 %v2742, 2147483648
        %v2812 = vor.u32 1.1754944e-38, %v2811
        %v2813 = vsel %vm2810, %v2812, %v2808
        %v2814 = vmul.f32 1.0, %v2813
        %v2815 = vrcp.pop %v2743
        %v2816 = vmul.f32 %v2743, %v2815
        %v2817 = vsub.f32 1.0, %v2816
        %v2818 = vmul.f32 %v2815, %v2817
        %v2819 = vadd.f32 %v2815, %v2818
        %vm2820 = vweird.f32 %v2743
        %vm2821 = vweird.f32 %v2815
        %vm2822 = vmor %vm2820, %vm2821
        %v2823 = vsel %vm2822, %v2815, %v2819
        %v2824 = vand.u32 2147483647, %v2743
        %vm2825 = vcmp.eq.f32.partialorder %v2824, 8.507059e+37
        %v2826 = vand.u32 %v2743, 2147483648
        %v2827 = vor.u32 1.1754944e-38, %v2826
        %v2828 = vsel %vm2825, %v2827, %v2823
        %v2829 = vmul.f32 1.0, %v2828
        %v2830 = vrcp.pop %v2744
        %v2831 = vmul.f32 %v2744, %v2830
        %v2832 = vsub.f32 1.0, %v2831
        %v2833 = vmul.f32 %v2830, %v2832
        %v2834 = vadd.f32 %v2830, %v2833
        %vm2835 = vweird.f32 %v2744
        %vm2836 = vweird.f32 %v2830
        %vm2837 = vmor %vm2835, %vm2836
        %v2838 = vsel %vm2837, %v2830, %v2834
        %v2839 = vand.u32 2147483647, %v2744
        %vm2840 = vcmp.eq.f32.partialorder %v2839, 8.507059e+37
        %v2841 = vand.u32 %v2744, 2147483648
        %v2842 = vor.u32 1.1754944e-38, %v2841
        %v2843 = vsel %vm2840, %v2842, %v2838
        %v2844 = vmul.f32 1.0, %v2843
        %v2845 = vrcp.pop %v2745
        %v2846 = vmul.f32 %v2745, %v2845
        %v2847 = vsub.f32 1.0, %v2846
        %v2848 = vmul.f32 %v2845, %v2847
        %v2849 = vadd.f32 %v2845, %v2848
        %vm2850 = vweird.f32 %v2745
        %vm2851 = vweird.f32 %v2845
        %vm2852 = vmor %vm2850, %vm2851
        %v2853 = vsel %vm2852, %v2845, %v2849
        %v2854 = vand.u32 2147483647, %v2745
        %vm2855 = vcmp.eq.f32.partialorder %v2854, 8.507059e+37
        %v2856 = vand.u32 %v2745, 2147483648
        %v2857 = vor.u32 1.1754944e-38, %v2856
        %v2858 = vsel %vm2855, %v2857, %v2853
        %v2859 = vmul.f32 1.0, %v2858
        %v2860 = vrcp.pop %v2746
        %v2861 = vmul.f32 %v2746, %v2860
        %v2862 = vsub.f32 1.0, %v2861
        %v2863 = vmul.f32 %v2860, %v2862
        %v2864 = vadd.f32 %v2860, %v2863
        %vm2865 = vweird.f32 %v2746
        %vm2866 = vweird.f32 %v2860
        %vm2867 = vmor %vm2865, %vm2866
        %v2868 = vsel %vm2867, %v2860, %v2864
        %v2869 = vand.u32 2147483647, %v2746
        %vm2870 = vcmp.eq.f32.partialorder %v2869, 8.507059e+37
        %v2871 = vand.u32 %v2746, 2147483648
        %v2872 = vor.u32 1.1754944e-38, %v2871
        %v2873 = vsel %vm2870, %v2872, %v2868
        %v2874 = vmul.f32 1.0, %v2873
        %v2875 = vrcp.pop %v2747
        %v2876 = vmul.f32 %v2747, %v2875
        %v2877 = vsub.f32 1.0, %v2876
        %v2878 = vmul.f32 %v2875, %v2877
        %v2879 = vadd.f32 %v2875, %v2878
        %vm2880 = vweird.f32 %v2747
        %vm2881 = vweird.f32 %v2875
        %vm2882 = vmor %vm2880, %vm2881
        %v2883 = vsel %vm2882, %v2875, %v2879
        %v2884 = vand.u32 2147483647, %v2747
        %vm2885 = vcmp.eq.f32.partialorder %v2884, 8.507059e+37
        %v2886 = vand.u32 %v2747, 2147483648
        %v2887 = vor.u32 1.1754944e-38, %v2886
        %v2888 = vsel %vm2885, %v2887, %v2883
        %v2889 = vmul.f32 1.0, %v2888
        %v2890 = vrcp.pop %v2748
        %v2891 = vmul.f32 %v2748, %v2890
        %v2892 = vsub.f32 1.0, %v2891
        %v2893 = vmul.f32 %v2890, %v2892
        %v2894 = vadd.f32 %v2890, %v2893
        %vm2895 = vweird.f32 %v2748
        %vm2896 = vweird.f32 %v2890
        %vm2897 = vmor %vm2895, %vm2896
        %v2898 = vsel %vm2897, %v2890, %v2894
        %v2899 = vand.u32 2147483647, %v2748
        %vm2900 = vcmp.eq.f32.partialorder %v2899, 8.507059e+37
        %v2901 = vand.u32 %v2748, 2147483648
        %v2902 = vor.u32 1.1754944e-38, %v2901
        %v2903 = vsel %vm2900, %v2902, %v2898
        %v2904 = vmul.f32 1.0, %v2903
        %v2905 = vrcp.pop %v2749
        %v2906 = vmul.f32 %v2749, %v2905
        %v2907 = vsub.f32 1.0, %v2906
        %v2908 = vmul.f32 %v2905, %v2907
        %v2909 = vadd.f32 %v2905, %v2908
        %vm2910 = vweird.f32 %v2749
        %vm2911 = vweird.f32 %v2905
        %vm2912 = vmor %vm2910, %vm2911
        %v2913 = vsel %vm2912, %v2905, %v2909
        %v2914 = vand.u32 2147483647, %v2749
        %vm2915 = vcmp.eq.f32.partialorder %v2914, 8.507059e+37
        %v2916 = vand.u32 %v2749, 2147483648
        %v2917 = vor.u32 1.1754944e-38, %v2916
        %v2918 = vsel %vm2915, %v2917, %v2913
        %v2919 = vmul.f32 1.0, %v2918
        %v2920 = vrcp.pop %v2750
        %v2921 = vmul.f32 %v2750, %v2920
        %v2922 = vsub.f32 1.0, %v2921
        %v2923 = vmul.f32 %v2920, %v2922
        %v2924 = vadd.f32 %v2920, %v2923
        %vm2925 = vweird.f32 %v2750
        %vm2926 = vweird.f32 %v2920
        %vm2927 = vmor %vm2925, %vm2926
        %v2928 = vsel %vm2927, %v2920, %v2924
        %v2929 = vand.u32 2147483647, %v2750
        %vm2930 = vcmp.eq.f32.partialorder %v2929, 8.507059e+37
        %v2931 = vand.u32 %v2750, 2147483648
        %v2932 = vor.u32 1.1754944e-38, %v2931
        %v2933 = vsel %vm2930, %v2932, %v2928
        %v2934 = vmul.f32 1.0, %v2933
        %v2935 = vrcp.pop %v2751
        %v2936 = vmul.f32 %v2751, %v2935
        %v2937 = vsub.f32 1.0, %v2936
        %v2938 = vmul.f32 %v2935, %v2937
        %v2939 = vadd.f32 %v2935, %v2938
        %vm2940 = vweird.f32 %v2751
        %vm2941 = vweird.f32 %v2935
        %vm2942 = vmor %vm2940, %vm2941
        %v2943 = vsel %vm2942, %v2935, %v2939
        %v2944 = vand.u32 2147483647, %v2751
        %vm2945 = vcmp.eq.f32.partialorder %v2944, 8.507059e+37
        %v2946 = vand.u32 %v2751, 2147483648
        %v2947 = vor.u32 1.1754944e-38, %v2946
        %v2948 = vsel %vm2945, %v2947, %v2943
        %v2949 = vmul.f32 1.0, %v2948
        %v2950 = vrcp.pop %v2752
        %v2951 = vmul.f32 %v2752, %v2950
        %v2952 = vsub.f32 1.0, %v2951
        %v2953 = vmul.f32 %v2950, %v2952
        %v2954 = vadd.f32 %v2950, %v2953
        %vm2955 = vweird.f32 %v2752
        %vm2956 = vweird.f32 %v2950
        %vm2957 = vmor %vm2955, %vm2956
        %v2958 = vsel %vm2957, %v2950, %v2954
        %v2959 = vand.u32 2147483647, %v2752
        %vm2960 = vcmp.eq.f32.partialorder %v2959, 8.507059e+37
        %v2961 = vand.u32 %v2752, 2147483648
        %v2962 = vor.u32 1.1754944e-38, %v2961
        %v2963 = vsel %vm2960, %v2962, %v2958
        %v2964 = vmul.f32 1.0, %v2963
        %v2965 = vrcp.pop %v2753
        %v2966 = vmul.f32 %v2753, %v2965
        %v2967 = vsub.f32 1.0, %v2966
        %v2968 = vmul.f32 %v2965, %v2967
        %v2969 = vadd.f32 %v2965, %v2968
        %vm2970 = vweird.f32 %v2753
        %vm2971 = vweird.f32 %v2965
        %vm2972 = vmor %vm2970, %vm2971
        %v2973 = vsel %vm2972, %v2965, %v2969
        %v2974 = vand.u32 2147483647, %v2753
        %vm2975 = vcmp.eq.f32.partialorder %v2974, 8.507059e+37
        %v2976 = vand.u32 %v2753, 2147483648
        %v2977 = vor.u32 1.1754944e-38, %v2976
        %v2978 = vsel %vm2975, %v2977, %v2973
        %v2979 = vmul.f32 1.0, %v2978
        %v2980 = vrcp.pop %v2754
        %v2981 = vmul.f32 %v2754, %v2980
        %v2982 = vsub.f32 1.0, %v2981
        %v2983 = vmul.f32 %v2980, %v2982
        %v2984 = vadd.f32 %v2980, %v2983
        %vm2985 = vweird.f32 %v2754
        %vm2986 = vweird.f32 %v2980
        %vm2987 = vmor %vm2985, %vm2986
        %v2988 = vsel %vm2987, %v2980, %v2984
        %v2989 = vand.u32 2147483647, %v2754
        %vm2990 = vcmp.eq.f32.partialorder %v2989, 8.507059e+37
        %v2991 = vand.u32 %v2754, 2147483648
        %v2992 = vor.u32 1.1754944e-38, %v2991
        %v2993 = vsel %vm2990, %v2992, %v2988
        %v2994 = vmul.f32 1.0, %v2993
        %v2995 = vmul.f32 %v2769, %v2547
        %v2996 = vmul.f32 %v2784, %v2549
        %v2997 = vmul.f32 %v2799, %v2551
        %v2998 = vmul.f32 %v2814, %v2553
        %v2999 = vmul.f32 %v2829, %v2555
        %v3000 = vmul.f32 %v2844, %v2557
        %v3001 = vmul.f32 %v2859, %v2559
        %v3002 = vmul.f32 %v2874, %v2561
        %v3003 = vmul.f32 %v2889, %v2563
        %v3004 = vmul.f32 %v2904, %v2565
        %v3005 = vmul.f32 %v2919, %v2567
        %v3006 = vmul.f32 %v2934, %v2569
        %v3007 = vmul.f32 %v2949, %v2571
        %v3008 = vmul.f32 %v2964, %v2573
        %v3009 = vmul.f32 %v2979, %v2575
        %v3010 = vmul.f32 %v2994, %v2577
        %v3011 = vpack.c.bf16 %v2996, %v2995
        %v3012 = vpack.c.bf16 %v2998, %v2997
        %v3013 = vpack.c.bf16 %v3000, %v2999
        %v3014 = vpack.c.bf16 %v3002, %v3001
        %v3015 = vpack.c.bf16 %v3004, %v3003
        %v3016 = vpack.c.bf16 %v3006, %v3005
        %v3017 = vpack.c.bf16 %v3008, %v3007
        %v3018 = vpack.c.bf16 %v3010, %v3009
        %3027 = vrot.lane.b32.xlu0 %v3011, 96
        %v3028 = vpop.permute.xlu0 %3027
        %3029 = vrot.lane.b32.xlu0 %v3012, 96
        %v3030 = vpop.permute.xlu0 %3029
        %3031 = vrot.lane.b32.xlu0 %v3013, 96
        %v3032 = vpop.permute.xlu0 %3031
        %3033 = vrot.lane.b32.xlu0 %v3014, 96
        %v3034 = vpop.permute.xlu0 %3033
        %3035 = vrot.lane.b32.xlu0 %v3015, 96
        %v3036 = vpop.permute.xlu0 %3035
        %3037 = vrot.lane.b32.xlu0 %v3016, 96
        %v3038 = vpop.permute.xlu0 %3037
        %3039 = vrot.lane.b32.xlu0 %v3017, 96
        %v3040 = vpop.permute.xlu0 %3039
        %3041 = vrot.lane.b32.xlu0 %v3018, 96
        %v3042 = vpop.permute.xlu0 %3041
        %v3044 = vsel %vm1438, %v3028, 0
        %v3047 = vsel %vm1438, %v3030, 0
        %v3050 = vsel %vm1438, %v3032, 0
        %v3053 = vsel %vm1438, %v3034, 0
        %v3056 = vsel %vm1438, %v3036, 0
        %v3059 = vsel %vm1438, %v3038, 0
        %v3062 = vsel %vm1438, %v3040, 0
        %v3065 = vsel %vm1438, %v3042, 0
        %3067 = vmatpush.bf16.msra.mxu0 0
        %3068 = vmatpush.bf16.msra.mxu0 0
        %3069 = vmatpush.bf16.msra.mxu0 0
        %3070 = vmatpush.bf16.msra.mxu0 0
        %3071 = vmatpush.bf16.msra.mxu0 0
        %3072 = vmatpush.bf16.msra.mxu0 0
        %3073 = vmatpush.bf16.msra.mxu0 %v1937
        %3074 = vmatpush.bf16.msra.mxu0 %v1936
        %3075 = vmatmul.bf16.gmra.mxu0 %v3044
        %v3076 = vpop.f32.mrf.mxu0
        %v3077 = vadd.f32 0.0, %v3076
        %v3078 = vpop.f32.mrf.mxu0
        %v3079 = vadd.f32 0.0, %v3078
        %3080 = vmatmul.bf16.gmra.mxu0 %v3047
        %v3081 = vpop.f32.mrf.mxu0
        %v3082 = vadd.f32 0.0, %v3081
        %v3083 = vpop.f32.mrf.mxu0
        %v3084 = vadd.f32 0.0, %v3083
        %3085 = vmatmul.bf16.gmra.mxu0 %v3050
        %v3086 = vpop.f32.mrf.mxu0
        %v3087 = vadd.f32 0.0, %v3086
        %v3088 = vpop.f32.mrf.mxu0
        %v3089 = vadd.f32 0.0, %v3088
        %3090 = vmatmul.bf16.gmra.mxu0 %v3053
        %v3091 = vpop.f32.mrf.mxu0
        %v3092 = vadd.f32 0.0, %v3091
        %v3093 = vpop.f32.mrf.mxu0
        %v3094 = vadd.f32 0.0, %v3093
        %3095 = vmatmul.bf16.gmra.mxu0 %v3056
        %v3096 = vpop.f32.mrf.mxu0
        %v3097 = vadd.f32 0.0, %v3096
        %v3098 = vpop.f32.mrf.mxu0
        %v3099 = vadd.f32 0.0, %v3098
        %3100 = vmatmul.bf16.gmra.mxu0 %v3059
        %v3101 = vpop.f32.mrf.mxu0
        %v3102 = vadd.f32 0.0, %v3101
        %v3103 = vpop.f32.mrf.mxu0
        %v3104 = vadd.f32 0.0, %v3103
        %3105 = vmatmul.bf16.gmra.mxu0 %v3062
        %v3106 = vpop.f32.mrf.mxu0
        %v3107 = vadd.f32 0.0, %v3106
        %v3108 = vpop.f32.mrf.mxu0
        %v3109 = vadd.f32 0.0, %v3108
        %3110 = vmatmul.bf16.gmra.mxu0 %v3065
        %v3111 = vpop.f32.mrf.mxu0
        %v3112 = vadd.f32 0.0, %v3111
        %v3113 = vpop.f32.mrf.mxu0
        %v3114 = vadd.f32 0.0, %v3113
        %3115 = vdwg.mxu0
        %3132 = vrot.lane.b32.xlu0 %v3077, 64
        %v3133 = vpop.permute.xlu0 %3132
        %3134 = vrot.lane.b32.xlu0 %v3079, 64
        %v3135 = vpop.permute.xlu0 %3134
        %3136 = vrot.lane.b32.xlu0 %v3082, 64
        %v3137 = vpop.permute.xlu0 %3136
        %3138 = vrot.lane.b32.xlu0 %v3084, 64
        %v3139 = vpop.permute.xlu0 %3138
        %3140 = vrot.lane.b32.xlu0 %v3087, 64
        %v3141 = vpop.permute.xlu0 %3140
        %3142 = vrot.lane.b32.xlu0 %v3089, 64
        %v3143 = vpop.permute.xlu0 %3142
        %3144 = vrot.lane.b32.xlu0 %v3092, 64
        %v3145 = vpop.permute.xlu0 %3144
        %3146 = vrot.lane.b32.xlu0 %v3094, 64
        %v3147 = vpop.permute.xlu0 %3146
        %3148 = vrot.lane.b32.xlu0 %v3097, 64
        %v3149 = vpop.permute.xlu0 %3148
        %3150 = vrot.lane.b32.xlu0 %v3099, 64
        %v3151 = vpop.permute.xlu0 %3150
        %3152 = vrot.lane.b32.xlu0 %v3102, 64
        %v3153 = vpop.permute.xlu0 %3152
        %3154 = vrot.lane.b32.xlu0 %v3104, 64
        %v3155 = vpop.permute.xlu0 %3154
        %3156 = vrot.lane.b32.xlu0 %v3107, 64
        %v3157 = vpop.permute.xlu0 %3156
        %3158 = vrot.lane.b32.xlu0 %v3109, 64
        %v3159 = vpop.permute.xlu0 %3158
        %3160 = vrot.lane.b32.xlu0 %v3112, 64
        %v3161 = vpop.permute.xlu0 %3160
        %3162 = vrot.lane.b32.xlu0 %v3114, 64
        %v3163 = vpop.permute.xlu0 %3162
        %v3180 = vadd.f32 %v2652, %v3133
        %v3181 = vadd.f32 %v2654, %v3135
        %v3182 = vadd.f32 %v2657, %v3137
        %v3183 = vadd.f32 %v2659, %v3139
        %v3184 = vadd.f32 %v2662, %v3141
        %v3185 = vadd.f32 %v2664, %v3143
        %v3186 = vadd.f32 %v2667, %v3145
        %v3187 = vadd.f32 %v2669, %v3147
        %v3188 = vadd.f32 %v2672, %v3149
        %v3189 = vadd.f32 %v2674, %v3151
        %v3190 = vadd.f32 %v2677, %v3153
        %v3191 = vadd.f32 %v2679, %v3155
        %v3192 = vadd.f32 %v2682, %v3157
        %v3193 = vadd.f32 %v2684, %v3159
        %v3194 = vadd.f32 %v2687, %v3161
        %v3195 = vadd.f32 %v2689, %v3163
        %v3196 = vadd.f32 %v3180, %v2096
        %v3197 = vadd.f32 %v3181, %v2096
        %v3198 = vadd.f32 %v3182, %v2096
        %v3199 = vadd.f32 %v3183, %v2096
        %v3200 = vadd.f32 %v3184, %v2096
        %v3201 = vadd.f32 %v3185, %v2096
        %v3202 = vadd.f32 %v3186, %v2096
        %v3203 = vadd.f32 %v3187, %v2096
        %v3204 = vadd.f32 %v3188, %v2096
        %v3205 = vadd.f32 %v3189, %v2096
        %v3206 = vadd.f32 %v3190, %v2096
        %v3207 = vadd.f32 %v3191, %v2096
        %v3208 = vadd.f32 %v3192, %v2096
        %v3209 = vadd.f32 %v3193, %v2096
        %v3210 = vadd.f32 %v3194, %v2096
        %v3211 = vadd.f32 %v3195, %v2096
        %v3212 = vtanh.pop %v3196
        %v3213 = vtanh.pop %v3197
        %v3214 = vtanh.pop %v3198
        %v3215 = vtanh.pop %v3199
        %v3216 = vtanh.pop %v3200
        %v3217 = vtanh.pop %v3201
        %v3218 = vtanh.pop %v3202
        %v3219 = vtanh.pop %v3203
        %v3220 = vtanh.pop %v3204
        %v3221 = vtanh.pop %v3205
        %v3222 = vtanh.pop %v3206
        %v3223 = vtanh.pop %v3207
        %v3224 = vtanh.pop %v3208
        %v3225 = vtanh.pop %v3209
        %v3226 = vtanh.pop %v3210
        %v3227 = vtanh.pop %v3211
        %3244 = vrot.lane.b32.xlu0 %v2769, 64
        %v3245 = vpop.permute.xlu0 %3244
        %3246 = vrot.lane.b32.xlu0 %v2784, 64
        %v3247 = vpop.permute.xlu0 %3246
        %3248 = vrot.lane.b32.xlu0 %v2799, 64
        %v3249 = vpop.permute.xlu0 %3248
        %3250 = vrot.lane.b32.xlu0 %v2814, 64
        %v3251 = vpop.permute.xlu0 %3250
        %3252 = vrot.lane.b32.xlu0 %v2829, 64
        %v3253 = vpop.permute.xlu0 %3252
        %3254 = vrot.lane.b32.xlu0 %v2844, 64
        %v3255 = vpop.permute.xlu0 %3254
        %3256 = vrot.lane.b32.xlu0 %v2859, 64
        %v3257 = vpop.permute.xlu0 %3256
        %3258 = vrot.lane.b32.xlu0 %v2874, 64
        %v3259 = vpop.permute.xlu0 %3258
        %3260 = vrot.lane.b32.xlu0 %v2889, 64
        %v3261 = vpop.permute.xlu0 %3260
        %3262 = vrot.lane.b32.xlu0 %v2904, 64
        %v3263 = vpop.permute.xlu0 %3262
        %3264 = vrot.lane.b32.xlu0 %v2919, 64
        %v3265 = vpop.permute.xlu0 %3264
        %3266 = vrot.lane.b32.xlu0 %v2934, 64
        %v3267 = vpop.permute.xlu0 %3266
        %3268 = vrot.lane.b32.xlu0 %v2949, 64
        %v3269 = vpop.permute.xlu0 %3268
        %3270 = vrot.lane.b32.xlu0 %v2964, 64
        %v3271 = vpop.permute.xlu0 %3270
        %3272 = vrot.lane.b32.xlu0 %v2979, 64
        %v3273 = vpop.permute.xlu0 %3272
        %3274 = vrot.lane.b32.xlu0 %v2994, 64
        %v3275 = vpop.permute.xlu0 %3274
        %v3292 = vmul.f32 %v3212, %v3245
        %v3293 = vmul.f32 %v3213, %v3247
        %v3294 = vmul.f32 %v3214, %v3249
        %v3295 = vmul.f32 %v3215, %v3251
        %v3296 = vmul.f32 %v3216, %v3253
        %v3297 = vmul.f32 %v3217, %v3255
        %v3298 = vmul.f32 %v3218, %v3257
        %v3299 = vmul.f32 %v3219, %v3259
        %v3300 = vmul.f32 %v3220, %v3261
        %v3301 = vmul.f32 %v3221, %v3263
        %v3302 = vmul.f32 %v3222, %v3265
        %v3303 = vmul.f32 %v3223, %v3267
        %v3304 = vmul.f32 %v3224, %v3269
        %v3305 = vmul.f32 %v3225, %v3271
        %v3306 = vmul.f32 %v3226, %v3273
        %v3307 = vmul.f32 %v3227, %v3275
        %v3308 = vsub.f32 1.0, %v2769
        %v3309 = vsub.f32 1.0, %v2784
        %v3310 = vsub.f32 1.0, %v2799
        %v3311 = vsub.f32 1.0, %v2814
        %v3312 = vsub.f32 1.0, %v2829
        %v3313 = vsub.f32 1.0, %v2844
        %v3314 = vsub.f32 1.0, %v2859
        %v3315 = vsub.f32 1.0, %v2874
        %v3316 = vsub.f32 1.0, %v2889
        %v3317 = vsub.f32 1.0, %v2904
        %v3318 = vsub.f32 1.0, %v2919
        %v3319 = vsub.f32 1.0, %v2934
        %v3320 = vsub.f32 1.0, %v2949
        %v3321 = vsub.f32 1.0, %v2964
        %v3322 = vsub.f32 1.0, %v2979
        %v3323 = vsub.f32 1.0, %v2994
        %3340 = vrot.lane.b32.xlu0 %v3308, 64
        %v3341 = vpop.permute.xlu0 %3340
        %3342 = vrot.lane.b32.xlu0 %v3309, 64
        %v3343 = vpop.permute.xlu0 %3342
        %3344 = vrot.lane.b32.xlu0 %v3310, 64
        %v3345 = vpop.permute.xlu0 %3344
        %3346 = vrot.lane.b32.xlu0 %v3311, 64
        %v3347 = vpop.permute.xlu0 %3346
        %3348 = vrot.lane.b32.xlu0 %v3312, 64
        %v3349 = vpop.permute.xlu0 %3348
        %3350 = vrot.lane.b32.xlu0 %v3313, 64
        %v3351 = vpop.permute.xlu0 %3350
        %3352 = vrot.lane.b32.xlu0 %v3314, 64
        %v3353 = vpop.permute.xlu0 %3352
        %3354 = vrot.lane.b32.xlu0 %v3315, 64
        %v3355 = vpop.permute.xlu0 %3354
        %3356 = vrot.lane.b32.xlu0 %v3316, 64
        %v3357 = vpop.permute.xlu0 %3356
        %3358 = vrot.lane.b32.xlu0 %v3317, 64
        %v3359 = vpop.permute.xlu0 %3358
        %3360 = vrot.lane.b32.xlu0 %v3318, 64
        %v3361 = vpop.permute.xlu0 %3360
        %3362 = vrot.lane.b32.xlu0 %v3319, 64
        %v3363 = vpop.permute.xlu0 %3362
        %3364 = vrot.lane.b32.xlu0 %v3320, 64
        %v3365 = vpop.permute.xlu0 %3364
        %3366 = vrot.lane.b32.xlu0 %v3321, 64
        %v3367 = vpop.permute.xlu0 %3366
        %3368 = vrot.lane.b32.xlu0 %v3322, 64
        %v3369 = vpop.permute.xlu0 %3368
        %3370 = vrot.lane.b32.xlu0 %v3323, 64
        %v3371 = vpop.permute.xlu0 %3370
        %v3388 = vmul.f32 %v2322, %v3341
        %v3389 = vmul.f32 %v2323, %v3343
        %v3390 = vmul.f32 %v2324, %v3345
        %v3391 = vmul.f32 %v2325, %v3347
        %v3392 = vmul.f32 %v2326, %v3349
        %v3393 = vmul.f32 %v2327, %v3351
        %v3394 = vmul.f32 %v2328, %v3353
        %v3395 = vmul.f32 %v2329, %v3355
        %v3396 = vmul.f32 %v2330, %v3357
        %v3397 = vmul.f32 %v2331, %v3359
        %v3398 = vmul.f32 %v2332, %v3361
        %v3399 = vmul.f32 %v2333, %v3363
        %v3400 = vmul.f32 %v2334, %v3365
        %v3401 = vmul.f32 %v2335, %v3367
        %v3402 = vmul.f32 %v2336, %v3369
        %v3403 = vmul.f32 %v2337, %v3371
        %v3404 = vadd.f32 %v3292, %v3388
        %v3405 = vadd.f32 %v3293, %v3389
        %v3406 = vadd.f32 %v3294, %v3390
        %v3407 = vadd.f32 %v3295, %v3391
        %v3408 = vadd.f32 %v3296, %v3392
        %v3409 = vadd.f32 %v3297, %v3393
        %v3410 = vadd.f32 %v3298, %v3394
        %v3411 = vadd.f32 %v3299, %v3395
        %v3412 = vadd.f32 %v3300, %v3396
        %v3413 = vadd.f32 %v3301, %v3397
        %v3414 = vadd.f32 %v3302, %v3398
        %v3415 = vadd.f32 %v3303, %v3399
        %v3416 = vadd.f32 %v3304, %v3400
        %v3417 = vadd.f32 %v3305, %v3401
        %v3418 = vadd.f32 %v3306, %v3402
        %v3419 = vadd.f32 %v3307, %v3403
        %v3420 = vmul.f32 %v3404, %v872
        %v3421 = vmul.f32 %v3405, %v877
        %v3422 = vmul.f32 %v3406, %v882
        %v3423 = vmul.f32 %v3407, %v887
        %v3424 = vmul.f32 %v3408, %v892
        %v3425 = vmul.f32 %v3409, %v897
        %v3426 = vmul.f32 %v3410, %v902
        %v3427 = vmul.f32 %v3411, %v907
        %v3428 = vmul.f32 %v3412, %v912
        %v3429 = vmul.f32 %v3413, %v917
        %v3430 = vmul.f32 %v3414, %v922
        %v3431 = vmul.f32 %v3415, %v927
        %v3432 = vmul.f32 %v3416, %v932
        %v3433 = vmul.f32 %v3417, %v937
        %v3434 = vmul.f32 %v3418, %v942
        %v3435 = vmul.f32 %v3419, %v947
        %v3436 = vld [vmem:[#allocation4] sm:$0xf]
        %v3437 = vld [vmem:[#allocation4 + $0x4] sm:$0xf]
        %v3438 = vld [vmem:[#allocation4 + $0x8] sm:$0xf]
        %v3439 = vld [vmem:[#allocation4 + $0xc] sm:$0xf]
        %v3440 = vpack.c.bf16 %v3421, %v3420
        %v3441 = vpack.c.bf16 %v3423, %v3422
        %v3442 = vpack.c.bf16 %v3425, %v3424
        %v3443 = vpack.c.bf16 %v3427, %v3426
        %v3444 = vpack.c.bf16 %v3429, %v3428
        %v3445 = vpack.c.bf16 %v3431, %v3430
        %v3446 = vpack.c.bf16 %v3433, %v3432
        %v3447 = vpack.c.bf16 %v3435, %v3434
        %3456 = vrot.lane.b32.xlu0 %v3440, 64
        %v3457 = vpop.permute.xlu0 %3456
        %3458 = vrot.lane.b32.xlu0 %v3441, 64
        %v3459 = vpop.permute.xlu0 %3458
        %3460 = vrot.lane.b32.xlu0 %v3442, 64
        %v3461 = vpop.permute.xlu0 %3460
        %3462 = vrot.lane.b32.xlu0 %v3443, 64
        %v3463 = vpop.permute.xlu0 %3462
        %3464 = vrot.lane.b32.xlu0 %v3444, 64
        %v3465 = vpop.permute.xlu0 %3464
        %3466 = vrot.lane.b32.xlu0 %v3445, 64
        %v3467 = vpop.permute.xlu0 %3466
        %3468 = vrot.lane.b32.xlu0 %v3446, 64
        %v3469 = vpop.permute.xlu0 %3468
        %3470 = vrot.lane.b32.xlu0 %v3447, 64
        %v3471 = vpop.permute.xlu0 %3470
        %v3476 = vunpack.c.l.b16 %v3436
        %v3477 = vunpack.c.l.b16 %v3437
        %v3478 = vunpack.c.l.b16 %v3438
        %v3479 = vunpack.c.l.b16 %v3439
        %v3480 = vpack.c.b16 %v3477, %v3476
        %v3481 = vpack.c.b16 %v3479, %v3478
        %v3485 = vsel %vm1438, %v3457, 0
        %v3488 = vsel %vm1438, %v3459, 0
        %v3491 = vsel %vm1438, %v3461, 0
        %v3494 = vsel %vm1438, %v3463, 0
        %v3497 = vsel %vm1438, %v3465, 0
        %v3500 = vsel %vm1438, %v3467, 0
        %v3503 = vsel %vm1438, %v3469, 0
        %v3506 = vsel %vm1438, %v3471, 0
        %3508 = vmatpush.bf16.msra.mxu0 0
        %3509 = vmatpush.bf16.msra.mxu0 0
        %3510 = vmatpush.bf16.msra.mxu0 0
        %3511 = vmatpush.bf16.msra.mxu0 0
        %3512 = vmatpush.bf16.msra.mxu0 0
        %3513 = vmatpush.bf16.msra.mxu0 0
        %3514 = vmatpush.bf16.msra.mxu0 %v3481
        %3515 = vmatpush.bf16.msra.mxu0 %v3480
        %3516 = vmatmul.bf16.gmra.mxu0 %v3485
        %v3517 = vpop.f32.mrf.mxu0
        %v3518 = vadd.f32 0.0, %v3517
        %v3519 = vpop.f32.mrf.mxu0
        %v3520 = vadd.f32 0.0, %v3519
        %3521 = vmatmul.bf16.gmra.mxu0 %v3488
        %v3522 = vpop.f32.mrf.mxu0
        %v3523 = vadd.f32 0.0, %v3522
        %v3524 = vpop.f32.mrf.mxu0
        %v3525 = vadd.f32 0.0, %v3524
        %3526 = vmatmul.bf16.gmra.mxu0 %v3491
        %v3527 = vpop.f32.mrf.mxu0
        %v3528 = vadd.f32 0.0, %v3527
        %v3529 = vpop.f32.mrf.mxu0
        %v3530 = vadd.f32 0.0, %v3529
        %3531 = vmatmul.bf16.gmra.mxu0 %v3494
        %v3532 = vpop.f32.mrf.mxu0
        %v3533 = vadd.f32 0.0, %v3532
        %v3534 = vpop.f32.mrf.mxu0
        %v3535 = vadd.f32 0.0, %v3534
        %3536 = vmatmul.bf16.gmra.mxu0 %v3497
        %v3537 = vpop.f32.mrf.mxu0
        %v3538 = vadd.f32 0.0, %v3537
        %v3539 = vpop.f32.mrf.mxu0
        %v3540 = vadd.f32 0.0, %v3539
        %3541 = vmatmul.bf16.gmra.mxu0 %v3500
        %v3542 = vpop.f32.mrf.mxu0
        %v3543 = vadd.f32 0.0, %v3542
        %v3544 = vpop.f32.mrf.mxu0
        %v3545 = vadd.f32 0.0, %v3544
        %3546 = vmatmul.bf16.gmra.mxu0 %v3503
        %v3547 = vpop.f32.mrf.mxu0
        %v3548 = vadd.f32 0.0, %v3547
        %v3549 = vpop.f32.mrf.mxu0
        %v3550 = vadd.f32 0.0, %v3549
        %3551 = vmatmul.bf16.gmra.mxu0 %v3506
        %v3552 = vpop.f32.mrf.mxu0
        %v3553 = vadd.f32 0.0, %v3552
        %v3554 = vpop.f32.mrf.mxu0
        %v3555 = vadd.f32 0.0, %v3554
        %3556 = vdwg.mxu0
        %3573 = vrot.lane.b32.xlu0 %v3518, 96
        %v3574 = vpop.permute.xlu0 %3573
        %3575 = vrot.lane.b32.xlu0 %v3520, 96
        %v3576 = vpop.permute.xlu0 %3575
        %3577 = vrot.lane.b32.xlu0 %v3523, 96
        %v3578 = vpop.permute.xlu0 %3577
        %3579 = vrot.lane.b32.xlu0 %v3525, 96
        %v3580 = vpop.permute.xlu0 %3579
        %3581 = vrot.lane.b32.xlu0 %v3528, 96
        %v3582 = vpop.permute.xlu0 %3581
        %3583 = vrot.lane.b32.xlu0 %v3530, 96
        %v3584 = vpop.permute.xlu0 %3583
        %3585 = vrot.lane.b32.xlu0 %v3533, 96
        %v3586 = vpop.permute.xlu0 %3585
        %3587 = vrot.lane.b32.xlu0 %v3535, 96
        %v3588 = vpop.permute.xlu0 %3587
        %3589 = vrot.lane.b32.xlu0 %v3538, 96
        %v3590 = vpop.permute.xlu0 %3589
        %3591 = vrot.lane.b32.xlu0 %v3540, 96
        %v3592 = vpop.permute.xlu0 %3591
        %3593 = vrot.lane.b32.xlu0 %v3543, 96
        %v3594 = vpop.permute.xlu0 %3593
        %3595 = vrot.lane.b32.xlu0 %v3545, 96
        %v3596 = vpop.permute.xlu0 %3595
        %3597 = vrot.lane.b32.xlu0 %v3548, 96
        %v3598 = vpop.permute.xlu0 %3597
        %3599 = vrot.lane.b32.xlu0 %v3550, 96
        %v3600 = vpop.permute.xlu0 %3599
        %3601 = vrot.lane.b32.xlu0 %v3553, 96
        %v3602 = vpop.permute.xlu0 %3601
        %3603 = vrot.lane.b32.xlu0 %v3555, 96
        %v3604 = vpop.permute.xlu0 %3603
        %v3621 = vrot.slane %v3574, 1
        %v3622 = vrot.slane %v3576, 1
        %v3623 = vrot.slane %v3578, 1
        %v3624 = vrot.slane %v3580, 1
        %v3625 = vrot.slane %v3582, 1
        %v3626 = vrot.slane %v3584, 1
        %v3627 = vrot.slane %v3586, 1
        %v3628 = vrot.slane %v3588, 1
        %v3629 = vrot.slane %v3590, 1
        %v3630 = vrot.slane %v3592, 1
        %v3631 = vrot.slane %v3594, 1
        %v3632 = vrot.slane %v3596, 1
        %v3633 = vrot.slane %v3598, 1
        %v3634 = vrot.slane %v3600, 1
        %v3635 = vrot.slane %v3602, 1
        %v3636 = vrot.slane %v3604, 1
        %v3637 = vlaneseq
        %v3638 = vshrl.u32 %v3637, 7
        %vm3639 = vcmp.lt.s32.totalorder %v3638, 7
        %v3640 = vsel %vm3639, %v3635, %v3636
        %v3641 = vsel %vm3639, %v3634, %v3635
        %v3642 = vsel %vm3639, %v3633, %v3634
        %v3643 = vsel %vm3639, %v3632, %v3633
        %v3644 = vsel %vm3639, %v3631, %v3632
        %v3645 = vsel %vm3639, %v3630, %v3631
        %v3646 = vsel %vm3639, %v3629, %v3630
        %v3647 = vsel %vm3639, %v3628, %v3629
        %v3648 = vsel %vm3639, %v3627, %v3628
        %v3649 = vsel %vm3639, %v3626, %v3627
        %v3650 = vsel %vm3639, %v3625, %v3626
        %v3651 = vsel %vm3639, %v3624, %v3625
        %v3652 = vsel %vm3639, %v3623, %v3624
        %v3653 = vsel %vm3639, %v3622, %v3623
        %v3654 = vsel %vm3639, %v3621, %v3622
        %v3655 = vsel %vm3639, %v3636, %v3621
        %v3656 = vadd.f32 %v3518, %v3654
        %v3657 = vadd.f32 %v3520, %v3653
        %v3658 = vadd.f32 %v3523, %v3652
        %v3659 = vadd.f32 %v3525, %v3651
        %v3660 = vadd.f32 %v3528, %v3650
        %v3661 = vadd.f32 %v3530, %v3649
        %v3662 = vadd.f32 %v3533, %v3648
        %v3663 = vadd.f32 %v3535, %v3647
        %v3664 = vadd.f32 %v3538, %v3646
        %v3665 = vadd.f32 %v3540, %v3645
        %v3666 = vadd.f32 %v3543, %v3644
        %v3667 = vadd.f32 %v3545, %v3643
        %v3668 = vadd.f32 %v3548, %v3642
        %v3669 = vadd.f32 %v3550, %v3641
        %v3670 = vadd.f32 %v3553, %v3640
        %v3671 = vadd.f32 %v3555, %v3655
        %3672 = vrot.lane.b32.xlu0 %v3518, 64
        %v3673 = vpop.permute.xlu0 %3672
        %3674 = vrot.lane.b32.xlu0 %v3520, 64
        %v3675 = vpop.permute.xlu0 %3674
        %3676 = vrot.lane.b32.xlu0 %v3523, 64
        %v3677 = vpop.permute.xlu0 %3676
        %3678 = vrot.lane.b32.xlu0 %v3525, 64
        %v3679 = vpop.permute.xlu0 %3678
        %3680 = vrot.lane.b32.xlu0 %v3528, 64
        %v3681 = vpop.permute.xlu0 %3680
        %3682 = vrot.lane.b32.xlu0 %v3530, 64
        %v3683 = vpop.permute.xlu0 %3682
        %3684 = vrot.lane.b32.xlu0 %v3533, 64
        %v3685 = vpop.permute.xlu0 %3684
        %3686 = vrot.lane.b32.xlu0 %v3535, 64
        %v3687 = vpop.permute.xlu0 %3686
        %3688 = vrot.lane.b32.xlu0 %v3538, 64
        %v3689 = vpop.permute.xlu0 %3688
        %3690 = vrot.lane.b32.xlu0 %v3540, 64
        %v3691 = vpop.permute.xlu0 %3690
        %3692 = vrot.lane.b32.xlu0 %v3543, 64
        %v3693 = vpop.permute.xlu0 %3692
        %3694 = vrot.lane.b32.xlu0 %v3545, 64
        %v3695 = vpop.permute.xlu0 %3694
        %3696 = vrot.lane.b32.xlu0 %v3548, 64
        %v3697 = vpop.permute.xlu0 %3696
        %3698 = vrot.lane.b32.xlu0 %v3550, 64
        %v3699 = vpop.permute.xlu0 %3698
        %3700 = vrot.lane.b32.xlu0 %v3553, 64
        %v3701 = vpop.permute.xlu0 %3700
        %3702 = vrot.lane.b32.xlu0 %v3555, 64
        %v3703 = vpop.permute.xlu0 %3702
        %v3720 = vrot.slane %v3673, 2
        %v3721 = vrot.slane %v3675, 2
        %v3722 = vrot.slane %v3677, 2
        %v3723 = vrot.slane %v3679, 2
        %v3724 = vrot.slane %v3681, 2
        %v3725 = vrot.slane %v3683, 2
        %v3726 = vrot.slane %v3685, 2
        %v3727 = vrot.slane %v3687, 2
        %v3728 = vrot.slane %v3689, 2
        %v3729 = vrot.slane %v3691, 2
        %v3730 = vrot.slane %v3693, 2
        %v3731 = vrot.slane %v3695, 2
        %v3732 = vrot.slane %v3697, 2
        %v3733 = vrot.slane %v3699, 2
        %v3734 = vrot.slane %v3701, 2
        %v3735 = vrot.slane %v3703, 2
        %vm3736 = vcmp.lt.s32.totalorder %v3638, 6
        %v3737 = vsel %vm3736, %v3734, %v3735
        %v3738 = vsel %vm3736, %v3733, %v3734
        %v3739 = vsel %vm3736, %v3732, %v3733
        %v3740 = vsel %vm3736, %v3731, %v3732
        %v3741 = vsel %vm3736, %v3730, %v3731
        %v3742 = vsel %vm3736, %v3729, %v3730
        %v3743 = vsel %vm3736, %v3728, %v3729
        %v3744 = vsel %vm3736, %v3727, %v3728
        %v3745 = vsel %vm3736, %v3726, %v3727
        %v3746 = vsel %vm3736, %v3725, %v3726
        %v3747 = vsel %vm3736, %v3724, %v3725
        %v3748 = vsel %vm3736, %v3723, %v3724
        %v3749 = vsel %vm3736, %v3722, %v3723
        %v3750 = vsel %vm3736, %v3721, %v3722
        %v3751 = vsel %vm3736, %v3720, %v3721
        %v3752 = vsel %vm3736, %v3735, %v3720
        %v3753 = vadd.f32 %v3656, %v3751
        %v3754 = vadd.f32 %v3657, %v3750
        %v3755 = vadd.f32 %v3658, %v3749
        %v3756 = vadd.f32 %v3659, %v3748
        %v3757 = vadd.f32 %v3660, %v3747
        %v3758 = vadd.f32 %v3661, %v3746
        %v3759 = vadd.f32 %v3662, %v3745
        %v3760 = vadd.f32 %v3663, %v3744
        %v3761 = vadd.f32 %v3664, %v3743
        %v3762 = vadd.f32 %v3665, %v3742
        %v3763 = vadd.f32 %v3666, %v3741
        %v3764 = vadd.f32 %v3667, %v3740
        %v3765 = vadd.f32 %v3668, %v3739
        %v3766 = vadd.f32 %v3669, %v3738
        %v3767 = vadd.f32 %v3670, %v3737
        %v3768 = vadd.f32 %v3671, %v3752
        %v3769 = vld [vmem:[%s10] sm:$0x1]
        %v3771 = vperm.slane %v3769, 0
        %v3773 = vadd.f32 %v3753, %v3771
        %v3774 = vadd.f32 %v3754, %v3771
        %v3775 = vadd.f32 %v3755, %v3771
        %v3776 = vadd.f32 %v3756, %v3771
        %v3777 = vadd.f32 %v3757, %v3771
        %v3778 = vadd.f32 %v3758, %v3771
        %v3779 = vadd.f32 %v3759, %v3771
        %v3780 = vadd.f32 %v3760, %v3771
        %v3781 = vadd.f32 %v3761, %v3771
        %v3782 = vadd.f32 %v3762, %v3771
        %v3783 = vadd.f32 %v3763, %v3771
        %v3784 = vadd.f32 %v3764, %v3771
        %v3785 = vadd.f32 %v3765, %v3771
        %v3786 = vadd.f32 %v3766, %v3771
        %v3787 = vadd.f32 %v3767, %v3771
        %v3788 = vadd.f32 %v3768, %v3771
        %v3789 = vmax.f32 %v3773, 0.0
        %v3790 = vmax.f32 %v3774, 0.0
        %v3791 = vmax.f32 %v3775, 0.0
        %v3792 = vmax.f32 %v3776, 0.0
        %v3793 = vmax.f32 %v3777, 0.0
        %v3794 = vmax.f32 %v3778, 0.0
        %v3795 = vmax.f32 %v3779, 0.0
        %v3796 = vmax.f32 %v3780, 0.0
        %v3797 = vmax.f32 %v3781, 0.0
        %v3798 = vmax.f32 %v3782, 0.0
        %v3799 = vmax.f32 %v3783, 0.0
        %v3800 = vmax.f32 %v3784, 0.0
        %v3801 = vmax.f32 %v3785, 0.0
        %v3802 = vmax.f32 %v3786, 0.0
        %v3803 = vmax.f32 %v3787, 0.0
        %v3804 = vmax.f32 %v3788, 0.0
        %v3805 = vrot.slane %v3789, 1
        %v3806 = vrot.slane %v3790, 1
        %v3807 = vrot.slane %v3791, 1
        %v3808 = vrot.slane %v3792, 1
        %v3809 = vrot.slane %v3793, 1
        %v3810 = vrot.slane %v3794, 1
        %v3811 = vrot.slane %v3795, 1
        %v3812 = vrot.slane %v3796, 1
        %v3813 = vrot.slane %v3797, 1
        %v3814 = vrot.slane %v3798, 1
        %v3815 = vrot.slane %v3799, 1
        %v3816 = vrot.slane %v3800, 1
        %v3817 = vrot.slane %v3801, 1
        %v3818 = vrot.slane %v3802, 1
        %v3819 = vrot.slane %v3803, 1
        %v3820 = vrot.slane %v3804, 1
        %v3821 = vsel %vm3639, %v3819, %v3820
        %v3822 = vsel %vm3639, %v3818, %v3819
        %v3823 = vsel %vm3639, %v3817, %v3818
        %v3824 = vsel %vm3639, %v3816, %v3817
        %v3825 = vsel %vm3639, %v3815, %v3816
        %v3826 = vsel %vm3639, %v3814, %v3815
        %v3827 = vsel %vm3639, %v3813, %v3814
        %v3828 = vsel %vm3639, %v3812, %v3813
        %v3829 = vsel %vm3639, %v3811, %v3812
        %v3830 = vsel %vm3639, %v3810, %v3811
        %v3831 = vsel %vm3639, %v3809, %v3810
        %v3832 = vsel %vm3639, %v3808, %v3809
        %v3833 = vsel %vm3639, %v3807, %v3808
        %v3834 = vsel %vm3639, %v3806, %v3807
        %v3835 = vsel %vm3639, %v3805, %v3806
        %v3836 = vsel %vm3639, %v3820, %v3805
        %v3837 = vmax.f32 %v3789, %v3835
        %v3838 = vmax.f32 %v3790, %v3834
        %v3839 = vmax.f32 %v3791, %v3833
        %v3840 = vmax.f32 %v3792, %v3832
        %v3841 = vmax.f32 %v3793, %v3831
        %v3842 = vmax.f32 %v3794, %v3830
        %v3843 = vmax.f32 %v3795, %v3829
        %v3844 = vmax.f32 %v3796, %v3828
        %v3845 = vmax.f32 %v3797, %v3827
        %v3846 = vmax.f32 %v3798, %v3826
        %v3847 = vmax.f32 %v3799, %v3825
        %v3848 = vmax.f32 %v3800, %v3824
        %v3849 = vmax.f32 %v3801, %v3823
        %v3850 = vmax.f32 %v3802, %v3822
        %v3851 = vmax.f32 %v3803, %v3821
        %v3852 = vmax.f32 %v3804, %v3836
        %v3853 = vrot.slane %v3789, 2
        %v3854 = vrot.slane %v3790, 2
        %v3855 = vrot.slane %v3791, 2
        %v3856 = vrot.slane %v3792, 2
        %v3857 = vrot.slane %v3793, 2
        %v3858 = vrot.slane %v3794, 2
        %v3859 = vrot.slane %v3795, 2
        %v3860 = vrot.slane %v3796, 2
        %v3861 = vrot.slane %v3797, 2
        %v3862 = vrot.slane %v3798, 2
        %v3863 = vrot.slane %v3799, 2
        %v3864 = vrot.slane %v3800, 2
        %v3865 = vrot.slane %v3801, 2
        %v3866 = vrot.slane %v3802, 2
        %v3867 = vrot.slane %v3803, 2
        %v3868 = vrot.slane %v3804, 2
        %v3869 = vsel %vm3736, %v3867, %v3868
        %v3870 = vsel %vm3736, %v3866, %v3867
        %v3871 = vsel %vm3736, %v3865, %v3866
        %v3872 = vsel %vm3736, %v3864, %v3865
        %v3873 = vsel %vm3736, %v3863, %v3864
        %v3874 = vsel %vm3736, %v3862, %v3863
        %v3875 = vsel %vm3736, %v3861, %v3862
        %v3876 = vsel %vm3736, %v3860, %v3861
        %v3877 = vsel %vm3736, %v3859, %v3860
        %v3878 = vsel %vm3736, %v3858, %v3859
        %v3879 = vsel %vm3736, %v3857, %v3858
        %v3880 = vsel %vm3736, %v3856, %v3857
        %v3881 = vsel %vm3736, %v3855, %v3856
        %v3882 = vsel %vm3736, %v3854, %v3855
        %v3883 = vsel %vm3736, %v3853, %v3854
        %v3884 = vsel %vm3736, %v3868, %v3853
        %v3885 = vmax.f32 %v3837, %v3883
        %v3886 = vmax.f32 %v3838, %v3882
        %v3887 = vmax.f32 %v3839, %v3881
        %v3888 = vmax.f32 %v3840, %v3880
        %v3889 = vmax.f32 %v3841, %v3879
        %v3890 = vmax.f32 %v3842, %v3878
        %v3891 = vmax.f32 %v3843, %v3877
        %v3892 = vmax.f32 %v3844, %v3876
        %v3893 = vmax.f32 %v3845, %v3875
        %v3894 = vmax.f32 %v3846, %v3874
        %v3895 = vmax.f32 %v3847, %v3873
        %v3896 = vmax.f32 %v3848, %v3872
        %v3897 = vmax.f32 %v3849, %v3871
        %v3898 = vmax.f32 %v3850, %v3870
        %v3899 = vmax.f32 %v3851, %v3869
        %v3900 = vmax.f32 %v3852, %v3884
        %v3901 = vld [vmem:[#allocation6] sm:$0xf]
        %v3902 = vld [vmem:[#allocation6 + $0x4] sm:$0xf]
        %v3903 = vld [vmem:[#allocation6 + $0x8] sm:$0xf]
        %v3904 = vld [vmem:[#allocation6 + $0xc] sm:$0xf]
        %v3905 = vpack.c.bf16 %v3886, %v3885
        %v3906 = vpack.c.bf16 %v3888, %v3887
        %v3907 = vpack.c.bf16 %v3890, %v3889
        %v3908 = vpack.c.bf16 %v3892, %v3891
        %v3909 = vpack.c.bf16 %v3894, %v3893
        %v3910 = vpack.c.bf16 %v3896, %v3895
        %v3911 = vpack.c.bf16 %v3898, %v3897
        %v3912 = vpack.c.bf16 %v3900, %v3899
        %v3913 = vld [vmem:[%s12] sm:$0x1]
        %v3915 = vperm.slane %v3913, 0
        %v3921 = vunpack.c.l.b16 %v3901
        %v3922 = vunpack.c.l.b16 %v3902
        %v3923 = vunpack.c.l.b16 %v3903
        %v3924 = vunpack.c.l.b16 %v3904
        %v3925 = vpack.c.b16 %v3922, %v3921
        %v3926 = vpack.c.b16 %v3924, %v3923
        %v3930 = vsel %vm1438, %v3905, 0
        %v3933 = vsel %vm1438, %v3906, 0
        %v3936 = vsel %vm1438, %v3907, 0
        %v3939 = vsel %vm1438, %v3908, 0
        %v3942 = vsel %vm1438, %v3909, 0
        %v3945 = vsel %vm1438, %v3910, 0
        %v3948 = vsel %vm1438, %v3911, 0
        %v3951 = vsel %vm1438, %v3912, 0
        %3953 = vmatpush.bf16.msra.mxu0 0
        %3954 = vmatpush.bf16.msra.mxu0 0
        %3955 = vmatpush.bf16.msra.mxu0 0
        %3956 = vmatpush.bf16.msra.mxu0 0
        %3957 = vmatpush.bf16.msra.mxu0 0
        %3958 = vmatpush.bf16.msra.mxu0 0
        %3959 = vmatpush.bf16.msra.mxu0 %v3926
        %3960 = vmatpush.bf16.msra.mxu0 %v3925
        %3961 = vmatmul.bf16.gmra.mxu0 %v3930
        %v3962 = vpop.f32.mrf.mxu0
        %v3963 = vadd.f32 %v3915, %v3962
        %v3964 = vpop.f32.mrf.mxu0
        %v3965 = vadd.f32 %v3915, %v3964
        %3966 = vmatmul.bf16.gmra.mxu0 %v3933
        %v3967 = vpop.f32.mrf.mxu0
        %v3968 = vadd.f32 %v3915, %v3967
        %v3969 = vpop.f32.mrf.mxu0
        %v3970 = vadd.f32 %v3915, %v3969
        %3971 = vmatmul.bf16.gmra.mxu0 %v3936
        %v3972 = vpop.f32.mrf.mxu0
        %v3973 = vadd.f32 %v3915, %v3972
        %v3974 = vpop.f32.mrf.mxu0
        %v3975 = vadd.f32 %v3915, %v3974
        %3976 = vmatmul.bf16.gmra.mxu0 %v3939
        %v3977 = vpop.f32.mrf.mxu0
        %v3978 = vadd.f32 %v3915, %v3977
        %v3979 = vpop.f32.mrf.mxu0
        %v3980 = vadd.f32 %v3915, %v3979
        %3981 = vmatmul.bf16.gmra.mxu0 %v3942
        %v3982 = vpop.f32.mrf.mxu0
        %v3983 = vadd.f32 %v3915, %v3982
        %v3984 = vpop.f32.mrf.mxu0
        %v3985 = vadd.f32 %v3915, %v3984
        %3986 = vmatmul.bf16.gmra.mxu0 %v3945
        %v3987 = vpop.f32.mrf.mxu0
        %v3988 = vadd.f32 %v3915, %v3987
        %v3989 = vpop.f32.mrf.mxu0
        %v3990 = vadd.f32 %v3915, %v3989
        %3991 = vmatmul.bf16.gmra.mxu0 %v3948
        %v3992 = vpop.f32.mrf.mxu0
        %v3993 = vadd.f32 %v3915, %v3992
        %v3994 = vpop.f32.mrf.mxu0
        %v3995 = vadd.f32 %v3915, %v3994
        %3996 = vmatmul.bf16.gmra.mxu0 %v3951
        %v3997 = vpop.f32.mrf.mxu0
        %v3998 = vadd.f32 %v3915, %v3997
        %v3999 = vpop.f32.mrf.mxu0
        %v4000 = vadd.f32 %v3915, %v3999
        %4001 = vdwg.mxu0
        %v4002 = vmax.f32 %v3963, 0.0
        %v4003 = vmax.f32 %v3965, 0.0
        %v4004 = vmax.f32 %v3968, 0.0
        %v4005 = vmax.f32 %v3970, 0.0
        %v4006 = vmax.f32 %v3973, 0.0
        %v4007 = vmax.f32 %v3975, 0.0
        %v4008 = vmax.f32 %v3978, 0.0
        %v4009 = vmax.f32 %v3980, 0.0
        %v4010 = vmax.f32 %v3983, 0.0
        %v4011 = vmax.f32 %v3985, 0.0
        %v4012 = vmax.f32 %v3988, 0.0
        %v4013 = vmax.f32 %v3990, 0.0
        %v4014 = vmax.f32 %v3993, 0.0
        %v4015 = vmax.f32 %v3995, 0.0
        %v4016 = vmax.f32 %v3998, 0.0
        %v4017 = vmax.f32 %v4000, 0.0
        %v4018 = vrot.slane %v4002, 2
        %v4019 = vrot.slane %v4003, 2
        %v4020 = vrot.slane %v4004, 2
        %v4021 = vrot.slane %v4005, 2
        %v4022 = vrot.slane %v4006, 2
        %v4023 = vrot.slane %v4007, 2
        %v4024 = vrot.slane %v4008, 2
        %v4025 = vrot.slane %v4009, 2
        %v4026 = vrot.slane %v4010, 2
        %v4027 = vrot.slane %v4011, 2
        %v4028 = vrot.slane %v4012, 2
        %v4029 = vrot.slane %v4013, 2
        %v4030 = vrot.slane %v4014, 2
        %v4031 = vrot.slane %v4015, 2
        %v4032 = vrot.slane %v4016, 2
        %v4033 = vrot.slane %v4017, 2
        %v4034 = vsel %vm3736, %v4032, %v4033
        %v4035 = vsel %vm3736, %v4031, %v4032
        %v4036 = vsel %vm3736, %v4030, %v4031
        %v4037 = vsel %vm3736, %v4029, %v4030
        %v4038 = vsel %vm3736, %v4028, %v4029
        %v4039 = vsel %vm3736, %v4027, %v4028
        %v4040 = vsel %vm3736, %v4026, %v4027
        %v4041 = vsel %vm3736, %v4025, %v4026
        %v4042 = vsel %vm3736, %v4024, %v4025
        %v4043 = vsel %vm3736, %v4023, %v4024
        %v4044 = vsel %vm3736, %v4022, %v4023
        %v4045 = vsel %vm3736, %v4021, %v4022
        %v4046 = vsel %vm3736, %v4020, %v4021
        %v4047 = vsel %vm3736, %v4019, %v4020
        %v4048 = vsel %vm3736, %v4018, %v4019
        %v4049 = vsel %vm3736, %v4033, %v4018
        %v4050 = vmax.f32 %v4002, %v4048
        %v4051 = vmax.f32 %v4003, %v4047
        %v4052 = vmax.f32 %v4004, %v4046
        %v4053 = vmax.f32 %v4005, %v4045
        %v4054 = vmax.f32 %v4006, %v4044
        %v4055 = vmax.f32 %v4007, %v4043
        %v4056 = vmax.f32 %v4008, %v4042
        %v4057 = vmax.f32 %v4009, %v4041
        %v4058 = vmax.f32 %v4010, %v4040
        %v4059 = vmax.f32 %v4011, %v4039
        %v4060 = vmax.f32 %v4012, %v4038
        %v4061 = vmax.f32 %v4013, %v4037
        %v4062 = vmax.f32 %v4014, %v4036
        %v4063 = vmax.f32 %v4015, %v4035
        %v4064 = vmax.f32 %v4016, %v4034
        %v4065 = vmax.f32 %v4017, %v4049
        %v4066 = vld [vmem:[%s18] sm:$0xf]
        %v4067 = vld [vmem:[%s18 + $0x4] sm:$0xf]
        %v4068 = vld [vmem:[%s18 + $0x8] sm:$0xf]
        %v4069 = vld [vmem:[%s18 + $0xc] sm:$0xf]
        %v4070 = vpack.c.bf16 %v4051, %v4050
        %v4071 = vpack.c.bf16 %v4053, %v4052
        %v4072 = vpack.c.bf16 %v4055, %v4054
        %v4073 = vpack.c.bf16 %v4057, %v4056
        %v4074 = vpack.c.bf16 %v4059, %v4058
        %v4075 = vpack.c.bf16 %v4061, %v4060
        %v4076 = vpack.c.bf16 %v4063, %v4062
        %v4077 = vpack.c.bf16 %v4065, %v4064
        %v4078 = vld [vmem:[%s19] sm:$0x1]
        %v4080 = vperm.slane %v4078, 0
        %v4086 = vunpack.c.l.b16 %v4066
        %v4087 = vunpack.c.l.b16 %v4067
        %v4088 = vunpack.c.l.b16 %v4068
        %v4089 = vunpack.c.l.b16 %v4069
        %v4090 = vpack.c.b16 %v4087, %v4086
        %v4091 = vpack.c.b16 %v4089, %v4088
        %v4095 = vsel %vm1438, %v4070, 0
        %v4098 = vsel %vm1438, %v4071, 0
        %v4101 = vsel %vm1438, %v4072, 0
        %v4104 = vsel %vm1438, %v4073, 0
        %v4107 = vsel %vm1438, %v4074, 0
        %v4110 = vsel %vm1438, %v4075, 0
        %v4113 = vsel %vm1438, %v4076, 0
        %v4116 = vsel %vm1438, %v4077, 0
        %4118 = vmatpush.bf16.msra.mxu0 0
        %4119 = vmatpush.bf16.msra.mxu0 0
        %4120 = vmatpush.bf16.msra.mxu0 0
        %4121 = vmatpush.bf16.msra.mxu0 0
        %4122 = vmatpush.bf16.msra.mxu0 0
        %4123 = vmatpush.bf16.msra.mxu0 0
        %4124 = vmatpush.bf16.msra.mxu0 %v4091
        %4125 = vmatpush.bf16.msra.mxu0 %v4090
        %4126 = vmatmul.bf16.gmra.mxu0 %v4095
        %v4127 = vpop.f32.mrf.mxu0
        %v4128 = vadd.f32 %v4080, %v4127
        %v4129 = vpop.f32.mrf.mxu0
        %v4130 = vadd.f32 %v4080, %v4129
        %4131 = vmatmul.bf16.gmra.mxu0 %v4098
        %v4132 = vpop.f32.mrf.mxu0
        %v4133 = vadd.f32 %v4080, %v4132
        %v4134 = vpop.f32.mrf.mxu0
        %v4135 = vadd.f32 %v4080, %v4134
        %4136 = vmatmul.bf16.gmra.mxu0 %v4101
        %v4137 = vpop.f32.mrf.mxu0
        %v4138 = vadd.f32 %v4080, %v4137
        %v4139 = vpop.f32.mrf.mxu0
        %v4140 = vadd.f32 %v4080, %v4139
        %4141 = vmatmul.bf16.gmra.mxu0 %v4104
        %v4142 = vpop.f32.mrf.mxu0
        %v4143 = vadd.f32 %v4080, %v4142
        %v4144 = vpop.f32.mrf.mxu0
        %v4145 = vadd.f32 %v4080, %v4144
        %4146 = vmatmul.bf16.gmra.mxu0 %v4107
        %v4147 = vpop.f32.mrf.mxu0
        %v4148 = vadd.f32 %v4080, %v4147
        %v4149 = vpop.f32.mrf.mxu0
        %v4150 = vadd.f32 %v4080, %v4149
        %4151 = vmatmul.bf16.gmra.mxu0 %v4110
        %v4152 = vpop.f32.mrf.mxu0
        %v4153 = vadd.f32 %v4080, %v4152
        %v4154 = vpop.f32.mrf.mxu0
        %v4155 = vadd.f32 %v4080, %v4154
        %4156 = vmatmul.bf16.gmra.mxu0 %v4113
        %v4157 = vpop.f32.mrf.mxu0
        %v4158 = vadd.f32 %v4080, %v4157
        %v4159 = vpop.f32.mrf.mxu0
        %v4160 = vadd.f32 %v4080, %v4159
        %4161 = vmatmul.bf16.gmra.mxu0 %v4116
        %v4162 = vpop.f32.mrf.mxu0
        %v4163 = vadd.f32 %v4080, %v4162
        %v4164 = vpop.f32.mrf.mxu0
        %v4165 = vadd.f32 %v4080, %v4164
        %4166 = vdwg.mxu0
        %v4167 = vld [vmem:[#allocation7] sm:$0xff]
        %v4168 = vld [vmem:[#allocation7 + $0x8] sm:$0xf]
        %v4169 = vld [vmem:[#allocation7 + $0xc] sm:$0xff]
        %v4170 = vld [vmem:[#allocation7 + $0x14] sm:$0xf]
        %v4171 = vld [vmem:[#allocation7 + $0x18] sm:$0xff]
        %v4172 = vld [vmem:[#allocation7 + $0x20] sm:$0xf]
        %v4173 = vld [vmem:[#allocation7 + $0x24] sm:$0xff]
        %v4174 = vld [vmem:[#allocation7 + $0x2c] sm:$0xf]
        %v4175 = vld [vmem:[%s14] sm:$0xff]
        %v4176 = vld [vmem:[%s14 + $0x8] sm:$0xf]
        %v4177 = vld [vmem:[%s14 + $0xc] sm:$0xff]
        %v4178 = vld [vmem:[%s14 + $0x14] sm:$0xf]
        %v4179 = vld [vmem:[%s14 + $0x18] sm:$0xff]
        %v4180 = vld [vmem:[%s14 + $0x20] sm:$0xf]
        %v4181 = vld [vmem:[%s14 + $0x24] sm:$0xff]
        %v4182 = vld [vmem:[%s14 + $0x2c] sm:$0xf]
        %v4183 = vld [vmem:[%s14 + $0x30] sm:$0xff]
        %v4184 = vld [vmem:[%s14 + $0x38] sm:$0xf]
        %v4185 = vld [vmem:[%s14 + $0x3c] sm:$0xff]
        %v4186 = vld [vmem:[%s14 + $0x44] sm:$0xf]
        %v4187 = vld [vmem:[%s14 + $0x48] sm:$0xff]
        %v4188 = vld [vmem:[%s14 + $0x50] sm:$0xf]
        %v4189 = vld [vmem:[%s14 + $0x54] sm:$0xff]
        %v4190 = vld [vmem:[%s14 + $0x5c] sm:$0xf]
        %v4191 = vld [vmem:[%s14 + $0x60] sm:$0xff]
        %v4192 = vld [vmem:[%s14 + $0x68] sm:$0xf]
        %v4193 = vld [vmem:[%s14 + $0x6c] sm:$0xff]
        %v4194 = vld [vmem:[%s14 + $0x74] sm:$0xf]
        %v4195 = vld [vmem:[%s14 + $0x78] sm:$0xff]
        %v4196 = vld [vmem:[%s14 + $0x80] sm:$0xf]
        %v4197 = vld [vmem:[%s14 + $0x84] sm:$0xff]
        %v4198 = vld [vmem:[%s14 + $0x8c] sm:$0xf]
        %v4223 = vunpack.c.l.b16 %v4175
        %v4224 = vunpack.c.h.b16 %v4175
        %v4225 = vunpack.c.l.b16 %v4176
        %v4226 = vunpack.c.l.b16 %v4177
        %v4227 = vunpack.c.h.b16 %v4177
        %v4228 = vunpack.c.l.b16 %v4178
        %v4229 = vunpack.c.l.b16 %v4179
        %v4230 = vunpack.c.h.b16 %v4179
        %v4231 = vunpack.c.l.b16 %v4180
        %v4232 = vunpack.c.l.b16 %v4181
        %v4233 = vunpack.c.h.b16 %v4181
        %v4234 = vunpack.c.l.b16 %v4182
        %v4235 = vunpack.c.l.b16 %v4183
        %v4236 = vunpack.c.h.b16 %v4183
        %v4237 = vunpack.c.l.b16 %v4184
        %v4238 = vunpack.c.l.b16 %v4185
        %v4239 = vunpack.c.h.b16 %v4185
        %v4240 = vunpack.c.l.b16 %v4186
        %v4241 = vunpack.c.l.b16 %v4187
        %v4242 = vunpack.c.h.b16 %v4187
        %v4243 = vunpack.c.l.b16 %v4188
        %v4244 = vunpack.c.l.b16 %v4189
        %v4245 = vunpack.c.h.b16 %v4189
        %v4246 = vunpack.c.l.b16 %v4190
        %v4247 = vunpack.c.l.b16 %v4191
        %v4248 = vunpack.c.h.b16 %v4191
        %v4249 = vunpack.c.l.b16 %v4192
        %v4250 = vunpack.c.l.b16 %v4193
        %v4251 = vunpack.c.h.b16 %v4193
        %v4252 = vunpack.c.l.b16 %v4194
        %v4253 = vunpack.c.l.b16 %v4195
        %v4254 = vunpack.c.h.b16 %v4195
        %v4255 = vunpack.c.l.b16 %v4196
        %v4256 = vunpack.c.l.b16 %v4197
        %v4257 = vunpack.c.h.b16 %v4197
        %v4258 = vunpack.c.l.b16 %v4198
        %v4259 = vpack.c.b16 %v4226, %v4223
        %v4260 = vpack.c.b16 %v4227, %v4224
        %v4261 = vpack.c.b16 %v4228, %v4225
        %v4262 = vpack.c.b16 %v4232, %v4229
        %v4263 = vpack.c.b16 %v4233, %v4230
        %v4264 = vpack.c.b16 %v4234, %v4231
        %v4265 = vpack.c.b16 %v4238, %v4235
        %v4266 = vpack.c.b16 %v4239, %v4236
        %v4267 = vpack.c.b16 %v4240, %v4237
        %v4268 = vpack.c.b16 %v4244, %v4241
        %v4269 = vpack.c.b16 %v4245, %v4242
        %v4270 = vpack.c.b16 %v4246, %v4243
        %v4271 = vpack.c.b16 %v4250, %v4247
        %v4272 = vpack.c.b16 %v4251, %v4248
        %v4273 = vpack.c.b16 %v4252, %v4249
        %v4274 = vpack.c.b16 %v4256, %v4253
        %v4275 = vpack.c.b16 %v4257, %v4254
        %v4276 = vpack.c.b16 %v4258, %v4255
        %4295 = vmatpush.bf16.msra.mxu0 0
        %4296 = vmatpush.bf16.msra.mxu0 0
        %4297 = vmatpush.bf16.msra.mxu0 %v4274
        %4298 = vmatpush.bf16.msra.mxu0 %v4271
        %4299 = vmatpush.bf16.msra.mxu0 %v4268
        %4300 = vmatpush.bf16.msra.mxu0 %v4265
        %4301 = vmatpush.bf16.msra.mxu0 %v4262
        %4302 = vmatpush.bf16.msra.mxu0 %v4259
        %4303 = vmatmul.bf16.gmra.mxu0 %v1043
        %v4304 = vpop.f32.mrf.mxu0
        %v4305 = vadd.f32 0.0, %v4304
        %v4306 = vpop.f32.mrf.mxu0
        %v4307 = vadd.f32 0.0, %v4306
        %4308 = vmatmul.bf16.gmra.mxu0 %v1046
        %v4309 = vpop.f32.mrf.mxu0
        %v4310 = vadd.f32 0.0, %v4309
        %v4311 = vpop.f32.mrf.mxu0
        %v4312 = vadd.f32 0.0, %v4311
        %4313 = vmatmul.bf16.gmra.mxu0 %v1049
        %v4314 = vpop.f32.mrf.mxu0
        %v4315 = vadd.f32 0.0, %v4314
        %v4316 = vpop.f32.mrf.mxu0
        %v4317 = vadd.f32 0.0, %v4316
        %4318 = vmatmul.bf16.gmra.mxu0 %v1052
        %v4319 = vpop.f32.mrf.mxu0
        %v4320 = vadd.f32 0.0, %v4319
        %v4321 = vpop.f32.mrf.mxu0
        %v4322 = vadd.f32 0.0, %v4321
        %4323 = vmatmul.bf16.gmra.mxu0 %v1055
        %v4324 = vpop.f32.mrf.mxu0
        %v4325 = vadd.f32 0.0, %v4324
        %v4326 = vpop.f32.mrf.mxu0
        %v4327 = vadd.f32 0.0, %v4326
        %4328 = vmatmul.bf16.gmra.mxu0 %v1058
        %v4329 = vpop.f32.mrf.mxu0
        %v4330 = vadd.f32 0.0, %v4329
        %v4331 = vpop.f32.mrf.mxu0
        %v4332 = vadd.f32 0.0, %v4331
        %4333 = vmatmul.bf16.gmra.mxu0 %v1061
        %v4334 = vpop.f32.mrf.mxu0
        %v4335 = vadd.f32 0.0, %v4334
        %v4336 = vpop.f32.mrf.mxu0
        %v4337 = vadd.f32 0.0, %v4336
        %4338 = vmatmul.bf16.gmra.mxu0 %v1064
        %v4339 = vpop.f32.mrf.mxu0
        %v4340 = vadd.f32 0.0, %v4339
        %v4341 = vpop.f32.mrf.mxu0
        %v4342 = vadd.f32 0.0, %v4341
        %4343 = vdwg.mxu0
        %4344 = vmatpush.bf16.msra.mxu0 0
        %4345 = vmatpush.bf16.msra.mxu0 0
        %4346 = vmatpush.bf16.msra.mxu0 %v4275
        %4347 = vmatpush.bf16.msra.mxu0 %v4272
        %4348 = vmatpush.bf16.msra.mxu0 %v4269
        %4349 = vmatpush.bf16.msra.mxu0 %v4266
        %4350 = vmatpush.bf16.msra.mxu0 %v4263
        %4351 = vmatpush.bf16.msra.mxu0 %v4260
        %4352 = vmatmul.bf16.gmra.mxu0 %v1043
        %v4353 = vpop.f32.mrf.mxu0
        %v4354 = vadd.f32 0.0, %v4353
        %v4355 = vpop.f32.mrf.mxu0
        %v4356 = vadd.f32 0.0, %v4355
        %4357 = vmatmul.bf16.gmra.mxu0 %v1046
        %v4358 = vpop.f32.mrf.mxu0
        %v4359 = vadd.f32 0.0, %v4358
        %v4360 = vpop.f32.mrf.mxu0
        %v4361 = vadd.f32 0.0, %v4360
        %4362 = vmatmul.bf16.gmra.mxu0 %v1049
        %v4363 = vpop.f32.mrf.mxu0
        %v4364 = vadd.f32 0.0, %v4363
        %v4365 = vpop.f32.mrf.mxu0
        %v4366 = vadd.f32 0.0, %v4365
        %4367 = vmatmul.bf16.gmra.mxu0 %v1052
        %v4368 = vpop.f32.mrf.mxu0
        %v4369 = vadd.f32 0.0, %v4368
        %v4370 = vpop.f32.mrf.mxu0
        %v4371 = vadd.f32 0.0, %v4370
        %4372 = vmatmul.bf16.gmra.mxu0 %v1055
        %v4373 = vpop.f32.mrf.mxu0
        %v4374 = vadd.f32 0.0, %v4373
        %v4375 = vpop.f32.mrf.mxu0
        %v4376 = vadd.f32 0.0, %v4375
        %4377 = vmatmul.bf16.gmra.mxu0 %v1058
        %v4378 = vpop.f32.mrf.mxu0
        %v4379 = vadd.f32 0.0, %v4378
        %v4380 = vpop.f32.mrf.mxu0
        %v4381 = vadd.f32 0.0, %v4380
        %4382 = vmatmul.bf16.gmra.mxu0 %v1061
        %v4383 = vpop.f32.mrf.mxu0
        %v4384 = vadd.f32 0.0, %v4383
        %v4385 = vpop.f32.mrf.mxu0
        %v4386 = vadd.f32 0.0, %v4385
        %4387 = vmatmul.bf16.gmra.mxu0 %v1064
        %v4388 = vpop.f32.mrf.mxu0
        %v4389 = vadd.f32 0.0, %v4388
        %v4390 = vpop.f32.mrf.mxu0
        %v4391 = vadd.f32 0.0, %v4390
        %4392 = vdwg.mxu0
        %4393 = vmatpush.bf16.msra.mxu0 0
        %4394 = vmatpush.bf16.msra.mxu0 0
        %4395 = vmatpush.bf16.msra.mxu0 %v4276
        %4396 = vmatpush.bf16.msra.mxu0 %v4273
        %4397 = vmatpush.bf16.msra.mxu0 %v4270
        %4398 = vmatpush.bf16.msra.mxu0 %v4267
        %4399 = vmatpush.bf16.msra.mxu0 %v4264
        %4400 = vmatpush.bf16.msra.mxu0 %v4261
        %4401 = vmatmul.bf16.gmra.mxu0 %v1043
        %v4402 = vpop.f32.mrf.mxu0
        %v4403 = vadd.f32 0.0, %v4402
        %v4404 = vpop.f32.mrf.mxu0
        %v4405 = vadd.f32 0.0, %v4404
        %4406 = vmatmul.bf16.gmra.mxu0 %v1046
        %v4407 = vpop.f32.mrf.mxu0
        %v4408 = vadd.f32 0.0, %v4407
        %v4409 = vpop.f32.mrf.mxu0
        %v4410 = vadd.f32 0.0, %v4409
        %4411 = vmatmul.bf16.gmra.mxu0 %v1049
        %v4412 = vpop.f32.mrf.mxu0
        %v4413 = vadd.f32 0.0, %v4412
        %v4414 = vpop.f32.mrf.mxu0
        %v4415 = vadd.f32 0.0, %v4414
        %4416 = vmatmul.bf16.gmra.mxu0 %v1052
        %v4417 = vpop.f32.mrf.mxu0
        %v4418 = vadd.f32 0.0, %v4417
        %v4419 = vpop.f32.mrf.mxu0
        %v4420 = vadd.f32 0.0, %v4419
        %4421 = vmatmul.bf16.gmra.mxu0 %v1055
        %v4422 = vpop.f32.mrf.mxu0
        %v4423 = vadd.f32 0.0, %v4422
        %v4424 = vpop.f32.mrf.mxu0
        %v4425 = vadd.f32 0.0, %v4424
        %4426 = vmatmul.bf16.gmra.mxu0 %v1058
        %v4427 = vpop.f32.mrf.mxu0
        %v4428 = vadd.f32 0.0, %v4427
        %v4429 = vpop.f32.mrf.mxu0
        %v4430 = vadd.f32 0.0, %v4429
        %4431 = vmatmul.bf16.gmra.mxu0 %v1061
        %v4432 = vpop.f32.mrf.mxu0
        %v4433 = vadd.f32 0.0, %v4432
        %v4434 = vpop.f32.mrf.mxu0
        %v4435 = vadd.f32 0.0, %v4434
        %4436 = vmatmul.bf16.gmra.mxu0 %v1064
        %v4437 = vpop.f32.mrf.mxu0
        %v4438 = vadd.f32 0.0, %v4437
        %v4439 = vpop.f32.mrf.mxu0
        %v4440 = vadd.f32 0.0, %v4439
        %4441 = vdwg.mxu0
        %v4450 = vunpack.c.l.b16 %v4167
        %v4451 = vunpack.c.h.b16 %v4167
        %v4452 = vunpack.c.l.b16 %v4168
        %v4453 = vunpack.c.l.b16 %v4169
        %v4454 = vunpack.c.h.b16 %v4169
        %v4455 = vunpack.c.l.b16 %v4170
        %v4456 = vunpack.c.l.b16 %v4171
        %v4457 = vunpack.c.h.b16 %v4171
        %v4458 = vunpack.c.l.b16 %v4172
        %v4459 = vunpack.c.l.b16 %v4173
        %v4460 = vunpack.c.h.b16 %v4173
        %v4461 = vunpack.c.l.b16 %v4174
        %v4462 = vpack.c.b16 %v4453, %v4450
        %v4463 = vpack.c.b16 %v4454, %v4451
        %v4464 = vpack.c.b16 %v4455, %v4452
        %v4465 = vpack.c.b16 %v4459, %v4456
        %v4466 = vpack.c.b16 %v4460, %v4457
        %v4467 = vpack.c.b16 %v4461, %v4458
        %4474 = vmatpush.bf16.msra.mxu0 0
        %4475 = vmatpush.bf16.msra.mxu0 0
        %4476 = vmatpush.bf16.msra.mxu0 0
        %4477 = vmatpush.bf16.msra.mxu0 0
        %4478 = vmatpush.bf16.msra.mxu0 0
        %4479 = vmatpush.bf16.msra.mxu0 0
        %4480 = vmatpush.bf16.msra.mxu0 %v4465
        %4481 = vmatpush.bf16.msra.mxu0 %v4462
        %4482 = vmatmul.bf16.gmra.mxu0 %v3485
        %v4483 = vpop.f32.mrf.mxu0
        %v4484 = vadd.f32 %v4305, %v4483
        %v4485 = vpop.f32.mrf.mxu0
        %v4486 = vadd.f32 %v4307, %v4485
        %4487 = vmatmul.bf16.gmra.mxu0 %v3488
        %v4488 = vpop.f32.mrf.mxu0
        %v4489 = vadd.f32 %v4310, %v4488
        %v4490 = vpop.f32.mrf.mxu0
        %v4491 = vadd.f32 %v4312, %v4490
        %4492 = vmatmul.bf16.gmra.mxu0 %v3491
        %v4493 = vpop.f32.mrf.mxu0
        %v4494 = vadd.f32 %v4315, %v4493
        %v4495 = vpop.f32.mrf.mxu0
        %v4496 = vadd.f32 %v4317, %v4495
        %4497 = vmatmul.bf16.gmra.mxu0 %v3494
        %v4498 = vpop.f32.mrf.mxu0
        %v4499 = vadd.f32 %v4320, %v4498
        %v4500 = vpop.f32.mrf.mxu0
        %v4501 = vadd.f32 %v4322, %v4500
        %4502 = vmatmul.bf16.gmra.mxu0 %v3497
        %v4503 = vpop.f32.mrf.mxu0
        %v4504 = vadd.f32 %v4325, %v4503
        %v4505 = vpop.f32.mrf.mxu0
        %v4506 = vadd.f32 %v4327, %v4505
        %4507 = vmatmul.bf16.gmra.mxu0 %v3500
        %v4508 = vpop.f32.mrf.mxu0
        %v4509 = vadd.f32 %v4330, %v4508
        %v4510 = vpop.f32.mrf.mxu0
        %v4511 = vadd.f32 %v4332, %v4510
        %4512 = vmatmul.bf16.gmra.mxu0 %v3503
        %v4513 = vpop.f32.mrf.mxu0
        %v4514 = vadd.f32 %v4335, %v4513
        %v4515 = vpop.f32.mrf.mxu0
        %v4516 = vadd.f32 %v4337, %v4515
        %4517 = vmatmul.bf16.gmra.mxu0 %v3506
        %v4518 = vpop.f32.mrf.mxu0
        %v4519 = vadd.f32 %v4340, %v4518
        %v4520 = vpop.f32.mrf.mxu0
        %v4521 = vadd.f32 %v4342, %v4520
        %4522 = vdwg.mxu0
        %4523 = vmatpush.bf16.msra.mxu0 0
        %4524 = vmatpush.bf16.msra.mxu0 0
        %4525 = vmatpush.bf16.msra.mxu0 0
        %4526 = vmatpush.bf16.msra.mxu0 0
        %4527 = vmatpush.bf16.msra.mxu0 0
        %4528 = vmatpush.bf16.msra.mxu0 0
        %4529 = vmatpush.bf16.msra.mxu0 %v4466
        %4530 = vmatpush.bf16.msra.mxu0 %v4463
        %4531 = vmatmul.bf16.gmra.mxu0 %v3485
        %v4532 = vpop.f32.mrf.mxu0
        %v4533 = vadd.f32 %v4354, %v4532
        %v4534 = vpop.f32.mrf.mxu0
        %v4535 = vadd.f32 %v4356, %v4534
        %4536 = vmatmul.bf16.gmra.mxu0 %v3488
        %v4537 = vpop.f32.mrf.mxu0
        %v4538 = vadd.f32 %v4359, %v4537
        %v4539 = vpop.f32.mrf.mxu0
        %v4540 = vadd.f32 %v4361, %v4539
        %4541 = vmatmul.bf16.gmra.mxu0 %v3491
        %v4542 = vpop.f32.mrf.mxu0
        %v4543 = vadd.f32 %v4364, %v4542
        %v4544 = vpop.f32.mrf.mxu0
        %v4545 = vadd.f32 %v4366, %v4544
        %4546 = vmatmul.bf16.gmra.mxu0 %v3494
        %v4547 = vpop.f32.mrf.mxu0
        %v4548 = vadd.f32 %v4369, %v4547
        %v4549 = vpop.f32.mrf.mxu0
        %v4550 = vadd.f32 %v4371, %v4549
        %4551 = vmatmul.bf16.gmra.mxu0 %v3497
        %v4552 = vpop.f32.mrf.mxu0
        %v4553 = vadd.f32 %v4374, %v4552
        %v4554 = vpop.f32.mrf.mxu0
        %v4555 = vadd.f32 %v4376, %v4554
        %4556 = vmatmul.bf16.gmra.mxu0 %v3500
        %v4557 = vpop.f32.mrf.mxu0
        %v4558 = vadd.f32 %v4379, %v4557
        %v4559 = vpop.f32.mrf.mxu0
        %v4560 = vadd.f32 %v4381, %v4559
        %4561 = vmatmul.bf16.gmra.mxu0 %v3503
        %v4562 = vpop.f32.mrf.mxu0
        %v4563 = vadd.f32 %v4384, %v4562
        %v4564 = vpop.f32.mrf.mxu0
        %v4565 = vadd.f32 %v4386, %v4564
        %4566 = vmatmul.bf16.gmra.mxu0 %v3506
        %v4567 = vpop.f32.mrf.mxu0
        %v4568 = vadd.f32 %v4389, %v4567
        %v4569 = vpop.f32.mrf.mxu0
        %v4570 = vadd.f32 %v4391, %v4569
        %4571 = vdwg.mxu0
        %4572 = vmatpush.bf16.msra.mxu0 0
        %4573 = vmatpush.bf16.msra.mxu0 0
        %4574 = vmatpush.bf16.msra.mxu0 0
        %4575 = vmatpush.bf16.msra.mxu0 0
        %4576 = vmatpush.bf16.msra.mxu0 0
        %4577 = vmatpush.bf16.msra.mxu0 0
        %4578 = vmatpush.bf16.msra.mxu0 %v4467
        %4579 = vmatpush.bf16.msra.mxu0 %v4464
        %4580 = vmatmul.bf16.gmra.mxu0 %v3485
        %v4581 = vpop.f32.mrf.mxu0
        %v4582 = vadd.f32 %v4403, %v4581
        %v4583 = vpop.f32.mrf.mxu0
        %v4584 = vadd.f32 %v4405, %v4583
        %4585 = vmatmul.bf16.gmra.mxu0 %v3488
        %v4586 = vpop.f32.mrf.mxu0
        %v4587 = vadd.f32 %v4408, %v4586
        %v4588 = vpop.f32.mrf.mxu0
        %v4589 = vadd.f32 %v4410, %v4588
        %4590 = vmatmul.bf16.gmra.mxu0 %v3491
        %v4591 = vpop.f32.mrf.mxu0
        %v4592 = vadd.f32 %v4413, %v4591
        %v4593 = vpop.f32.mrf.mxu0
        %v4594 = vadd.f32 %v4415, %v4593
        %4595 = vmatmul.bf16.gmra.mxu0 %v3494
        %v4596 = vpop.f32.mrf.mxu0
        %v4597 = vadd.f32 %v4418, %v4596
        %v4598 = vpop.f32.mrf.mxu0
        %v4599 = vadd.f32 %v4420, %v4598
        %4600 = vmatmul.bf16.gmra.mxu0 %v3497
        %v4601 = vpop.f32.mrf.mxu0
        %v4602 = vadd.f32 %v4423, %v4601
        %v4603 = vpop.f32.mrf.mxu0
        %v4604 = vadd.f32 %v4425, %v4603
        %4605 = vmatmul.bf16.gmra.mxu0 %v3500
        %v4606 = vpop.f32.mrf.mxu0
        %v4607 = vadd.f32 %v4428, %v4606
        %v4608 = vpop.f32.mrf.mxu0
        %v4609 = vadd.f32 %v4430, %v4608
        %4610 = vmatmul.bf16.gmra.mxu0 %v3503
        %v4611 = vpop.f32.mrf.mxu0
        %v4612 = vadd.f32 %v4433, %v4611
        %v4613 = vpop.f32.mrf.mxu0
        %v4614 = vadd.f32 %v4435, %v4613
        %4615 = vmatmul.bf16.gmra.mxu0 %v3506
        %v4616 = vpop.f32.mrf.mxu0
        %v4617 = vadd.f32 %v4438, %v4616
        %v4618 = vpop.f32.mrf.mxu0
        %v4619 = vadd.f32 %v4440, %v4618
        %4620 = vdwg.mxu0
        %v4621 = vrot.slane %v4533, 1
        %v4622 = vrot.slane %v4535, 1
        %v4623 = vrot.slane %v4538, 1
        %v4624 = vrot.slane %v4540, 1
        %v4625 = vrot.slane %v4543, 1
        %v4626 = vrot.slane %v4545, 1
        %v4627 = vrot.slane %v4548, 1
        %v4628 = vrot.slane %v4550, 1
        %v4629 = vrot.slane %v4553, 1
        %v4630 = vrot.slane %v4555, 1
        %v4631 = vrot.slane %v4558, 1
        %v4632 = vrot.slane %v4560, 1
        %v4633 = vrot.slane %v4563, 1
        %v4634 = vrot.slane %v4565, 1
        %v4635 = vrot.slane %v4568, 1
        %v4636 = vrot.slane %v4570, 1
        %v4637 = vsel %vm3639, %v4635, %v4636
        %v4638 = vsel %vm3639, %v4634, %v4635
        %v4639 = vsel %vm3639, %v4633, %v4634
        %v4640 = vsel %vm3639, %v4632, %v4633
        %v4641 = vsel %vm3639, %v4631, %v4632
        %v4642 = vsel %vm3639, %v4630, %v4631
        %v4643 = vsel %vm3639, %v4629, %v4630
        %v4644 = vsel %vm3639, %v4628, %v4629
        %v4645 = vsel %vm3639, %v4627, %v4628
        %v4646 = vsel %vm3639, %v4626, %v4627
        %v4647 = vsel %vm3639, %v4625, %v4626
        %v4648 = vsel %vm3639, %v4624, %v4625
        %v4649 = vsel %vm3639, %v4623, %v4624
        %v4650 = vsel %vm3639, %v4622, %v4623
        %v4651 = vsel %vm3639, %v4621, %v4622
        %v4652 = vsel %vm3639, %v4636, %v4621
        %v4653 = vadd.f32 %v4484, %v4651
        %v4654 = vadd.f32 %v4486, %v4650
        %v4655 = vadd.f32 %v4489, %v4649
        %v4656 = vadd.f32 %v4491, %v4648
        %v4657 = vadd.f32 %v4494, %v4647
        %v4658 = vadd.f32 %v4496, %v4646
        %v4659 = vadd.f32 %v4499, %v4645
        %v4660 = vadd.f32 %v4501, %v4644
        %v4661 = vadd.f32 %v4504, %v4643
        %v4662 = vadd.f32 %v4506, %v4642
        %v4663 = vadd.f32 %v4509, %v4641
        %v4664 = vadd.f32 %v4511, %v4640
        %v4665 = vadd.f32 %v4514, %v4639
        %v4666 = vadd.f32 %v4516, %v4638
        %v4667 = vadd.f32 %v4519, %v4637
        %v4668 = vadd.f32 %v4521, %v4652
        %v4669 = vrot.slane %v4582, 2
        %v4670 = vrot.slane %v4584, 2
        %v4671 = vrot.slane %v4587, 2
        %v4672 = vrot.slane %v4589, 2
        %v4673 = vrot.slane %v4592, 2
        %v4674 = vrot.slane %v4594, 2
        %v4675 = vrot.slane %v4597, 2
        %v4676 = vrot.slane %v4599, 2
        %v4677 = vrot.slane %v4602, 2
        %v4678 = vrot.slane %v4604, 2
        %v4679 = vrot.slane %v4607, 2
        %v4680 = vrot.slane %v4609, 2
        %v4681 = vrot.slane %v4612, 2
        %v4682 = vrot.slane %v4614, 2
        %v4683 = vrot.slane %v4617, 2
        %v4684 = vrot.slane %v4619, 2
        %v4685 = vsel %vm3736, %v4683, %v4684
        %v4686 = vsel %vm3736, %v4682, %v4683
        %v4687 = vsel %vm3736, %v4681, %v4682
        %v4688 = vsel %vm3736, %v4680, %v4681
        %v4689 = vsel %vm3736, %v4679, %v4680
        %v4690 = vsel %vm3736, %v4678, %v4679
        %v4691 = vsel %vm3736, %v4677, %v4678
        %v4692 = vsel %vm3736, %v4676, %v4677
        %v4693 = vsel %vm3736, %v4675, %v4676
        %v4694 = vsel %vm3736, %v4674, %v4675
        %v4695 = vsel %vm3736, %v4673, %v4674
        %v4696 = vsel %vm3736, %v4672, %v4673
        %v4697 = vsel %vm3736, %v4671, %v4672
        %v4698 = vsel %vm3736, %v4670, %v4671
        %v4699 = vsel %vm3736, %v4669, %v4670
        %v4700 = vsel %vm3736, %v4684, %v4669
        %v4701 = vadd.f32 %v4653, %v4699
        %v4702 = vadd.f32 %v4654, %v4698
        %v4703 = vadd.f32 %v4655, %v4697
        %v4704 = vadd.f32 %v4656, %v4696
        %v4705 = vadd.f32 %v4657, %v4695
        %v4706 = vadd.f32 %v4658, %v4694
        %v4707 = vadd.f32 %v4659, %v4693
        %v4708 = vadd.f32 %v4660, %v4692
        %v4709 = vadd.f32 %v4661, %v4691
        %v4710 = vadd.f32 %v4662, %v4690
        %v4711 = vadd.f32 %v4663, %v4689
        %v4712 = vadd.f32 %v4664, %v4688
        %v4713 = vadd.f32 %v4665, %v4687
        %v4714 = vadd.f32 %v4666, %v4686
        %v4715 = vadd.f32 %v4667, %v4685
        %v4716 = vadd.f32 %v4668, %v4700
        %v4717 = vld [vmem:[%s15] sm:$0x1]
        %v4719 = vperm.slane %v4717, 0
        %v4721 = vadd.f32 %v4701, %v4719
        %v4722 = vadd.f32 %v4702, %v4719
        %v4723 = vadd.f32 %v4703, %v4719
        %v4724 = vadd.f32 %v4704, %v4719
        %v4725 = vadd.f32 %v4705, %v4719
        %v4726 = vadd.f32 %v4706, %v4719
        %v4727 = vadd.f32 %v4707, %v4719
        %v4728 = vadd.f32 %v4708, %v4719
        %v4729 = vadd.f32 %v4709, %v4719
        %v4730 = vadd.f32 %v4710, %v4719
        %v4731 = vadd.f32 %v4711, %v4719
        %v4732 = vadd.f32 %v4712, %v4719
        %v4733 = vadd.f32 %v4713, %v4719
        %v4734 = vadd.f32 %v4714, %v4719
        %v4735 = vadd.f32 %v4715, %v4719
        %v4736 = vadd.f32 %v4716, %v4719
        %v4737 = vmax.f32 %v4721, 0.0
        %v4738 = vmax.f32 %v4722, 0.0
        %v4739 = vmax.f32 %v4723, 0.0
        %v4740 = vmax.f32 %v4724, 0.0
        %v4741 = vmax.f32 %v4725, 0.0
        %v4742 = vmax.f32 %v4726, 0.0
        %v4743 = vmax.f32 %v4727, 0.0
        %v4744 = vmax.f32 %v4728, 0.0
        %v4745 = vmax.f32 %v4729, 0.0
        %v4746 = vmax.f32 %v4730, 0.0
        %v4747 = vmax.f32 %v4731, 0.0
        %v4748 = vmax.f32 %v4732, 0.0
        %v4749 = vmax.f32 %v4733, 0.0
        %v4750 = vmax.f32 %v4734, 0.0
        %v4751 = vmax.f32 %v4735, 0.0
        %v4752 = vmax.f32 %v4736, 0.0
        %v4753 = vrot.slane %v4737, 1
        %v4754 = vrot.slane %v4738, 1
        %v4755 = vrot.slane %v4739, 1
        %v4756 = vrot.slane %v4740, 1
        %v4757 = vrot.slane %v4741, 1
        %v4758 = vrot.slane %v4742, 1
        %v4759 = vrot.slane %v4743, 1
        %v4760 = vrot.slane %v4744, 1
        %v4761 = vrot.slane %v4745, 1
        %v4762 = vrot.slane %v4746, 1
        %v4763 = vrot.slane %v4747, 1
        %v4764 = vrot.slane %v4748, 1
        %v4765 = vrot.slane %v4749, 1
        %v4766 = vrot.slane %v4750, 1
        %v4767 = vrot.slane %v4751, 1
        %v4768 = vrot.slane %v4752, 1
        %v4769 = vsel %vm3639, %v4767, %v4768
        %v4770 = vsel %vm3639, %v4766, %v4767
        %v4771 = vsel %vm3639, %v4765, %v4766
        %v4772 = vsel %vm3639, %v4764, %v4765
        %v4773 = vsel %vm3639, %v4763, %v4764
        %v4774 = vsel %vm3639, %v4762, %v4763
        %v4775 = vsel %vm3639, %v4761, %v4762
        %v4776 = vsel %vm3639, %v4760, %v4761
        %v4777 = vsel %vm3639, %v4759, %v4760
        %v4778 = vsel %vm3639, %v4758, %v4759
        %v4779 = vsel %vm3639, %v4757, %v4758
        %v4780 = vsel %vm3639, %v4756, %v4757
        %v4781 = vsel %vm3639, %v4755, %v4756
        %v4782 = vsel %vm3639, %v4754, %v4755
        %v4783 = vsel %vm3639, %v4753, %v4754
        %v4784 = vsel %vm3639, %v4768, %v4753
        %v4785 = vmax.f32 %v4737, %v4783
        %v4786 = vmax.f32 %v4738, %v4782
        %v4787 = vmax.f32 %v4739, %v4781
        %v4788 = vmax.f32 %v4740, %v4780
        %v4789 = vmax.f32 %v4741, %v4779
        %v4790 = vmax.f32 %v4742, %v4778
        %v4791 = vmax.f32 %v4743, %v4777
        %v4792 = vmax.f32 %v4744, %v4776
        %v4793 = vmax.f32 %v4745, %v4775
        %v4794 = vmax.f32 %v4746, %v4774
        %v4795 = vmax.f32 %v4747, %v4773
        %v4796 = vmax.f32 %v4748, %v4772
        %v4797 = vmax.f32 %v4749, %v4771
        %v4798 = vmax.f32 %v4750, %v4770
        %v4799 = vmax.f32 %v4751, %v4769
        %v4800 = vmax.f32 %v4752, %v4784
        %v4801 = vrot.slane %v4737, 2
        %v4802 = vrot.slane %v4738, 2
        %v4803 = vrot.slane %v4739, 2
        %v4804 = vrot.slane %v4740, 2
        %v4805 = vrot.slane %v4741, 2
        %v4806 = vrot.slane %v4742, 2
        %v4807 = vrot.slane %v4743, 2
        %v4808 = vrot.slane %v4744, 2
        %v4809 = vrot.slane %v4745, 2
        %v4810 = vrot.slane %v4746, 2
        %v4811 = vrot.slane %v4747, 2
        %v4812 = vrot.slane %v4748, 2
        %v4813 = vrot.slane %v4749, 2
        %v4814 = vrot.slane %v4750, 2
        %v4815 = vrot.slane %v4751, 2
        %v4816 = vrot.slane %v4752, 2
        %v4817 = vsel %vm3736, %v4815, %v4816
        %v4818 = vsel %vm3736, %v4814, %v4815
        %v4819 = vsel %vm3736, %v4813, %v4814
        %v4820 = vsel %vm3736, %v4812, %v4813
        %v4821 = vsel %vm3736, %v4811, %v4812
        %v4822 = vsel %vm3736, %v4810, %v4811
        %v4823 = vsel %vm3736, %v4809, %v4810
        %v4824 = vsel %vm3736, %v4808, %v4809
        %v4825 = vsel %vm3736, %v4807, %v4808
        %v4826 = vsel %vm3736, %v4806, %v4807
        %v4827 = vsel %vm3736, %v4805, %v4806
        %v4828 = vsel %vm3736, %v4804, %v4805
        %v4829 = vsel %vm3736, %v4803, %v4804
        %v4830 = vsel %vm3736, %v4802, %v4803
        %v4831 = vsel %vm3736, %v4801, %v4802
        %v4832 = vsel %vm3736, %v4816, %v4801
        %v4833 = vmax.f32 %v4785, %v4831
        %v4834 = vmax.f32 %v4786, %v4830
        %v4835 = vmax.f32 %v4787, %v4829
        %v4836 = vmax.f32 %v4788, %v4828
        %v4837 = vmax.f32 %v4789, %v4827
        %v4838 = vmax.f32 %v4790, %v4826
        %v4839 = vmax.f32 %v4791, %v4825
        %v4840 = vmax.f32 %v4792, %v4824
        %v4841 = vmax.f32 %v4793, %v4823
        %v4842 = vmax.f32 %v4794, %v4822
        %v4843 = vmax.f32 %v4795, %v4821
        %v4844 = vmax.f32 %v4796, %v4820
        %v4845 = vmax.f32 %v4797, %v4819
        %v4846 = vmax.f32 %v4798, %v4818
        %v4847 = vmax.f32 %v4799, %v4817
        %v4848 = vmax.f32 %v4800, %v4832
        %v4849 = vld [vmem:[#allocation9] sm:$0xf]
        %v4850 = vld [vmem:[#allocation9 + $0x4] sm:$0xf]
        %v4851 = vld [vmem:[#allocation9 + $0x8] sm:$0xf]
        %v4852 = vld [vmem:[#allocation9 + $0xc] sm:$0xf]
        %v4853 = vld [vmem:[#allocation9 + $0x10] sm:$0xf]
        %v4854 = vld [vmem:[#allocation9 + $0x14] sm:$0xf]
        %v4855 = vld [vmem:[#allocation9 + $0x18] sm:$0xf]
        %v4856 = vld [vmem:[#allocation9 + $0x1c] sm:$0xf]
        %v4857 = vld [vmem:[#allocation9 + $0x20] sm:$0xf]
        %v4858 = vld [vmem:[#allocation9 + $0x24] sm:$0xf]
        %v4859 = vld [vmem:[#allocation9 + $0x28] sm:$0xf]
        %v4860 = vld [vmem:[#allocation9 + $0x2c] sm:$0xf]
        %v4861 = vld [vmem:[#allocation9 + $0x30] sm:$0xf]
        %v4862 = vld [vmem:[#allocation9 + $0x34] sm:$0xf]
        %v4863 = vld [vmem:[#allocation9 + $0x38] sm:$0xf]
        %v4864 = vld [vmem:[#allocation9 + $0x3c] sm:$0xf]
        %v4865 = vpack.c.bf16 %v4834, %v4833
        %v4866 = vpack.c.bf16 %v4836, %v4835
        %v4867 = vpack.c.bf16 %v4838, %v4837
        %v4868 = vpack.c.bf16 %v4840, %v4839
        %v4869 = vpack.c.bf16 %v4842, %v4841
        %v4870 = vpack.c.bf16 %v4844, %v4843
        %v4871 = vpack.c.bf16 %v4846, %v4845
        %v4872 = vpack.c.bf16 %v4848, %v4847
        %v4873 = vld [vmem:[%s17] sm:$0x1]
        %v4875 = vperm.slane %v4873, 0
        %v4893 = vunpack.c.l.b16 %v4849
        %v4894 = vunpack.c.l.b16 %v4850
        %v4895 = vunpack.c.l.b16 %v4851
        %v4896 = vunpack.c.l.b16 %v4852
        %v4897 = vunpack.c.l.b16 %v4853
        %v4898 = vunpack.c.l.b16 %v4854
        %v4899 = vunpack.c.l.b16 %v4855
        %v4900 = vunpack.c.l.b16 %v4856
        %v4901 = vunpack.c.l.b16 %v4857
        %v4902 = vunpack.c.l.b16 %v4858
        %v4903 = vunpack.c.l.b16 %v4859
        %v4904 = vunpack.c.l.b16 %v4860
        %v4905 = vunpack.c.l.b16 %v4861
        %v4906 = vunpack.c.l.b16 %v4862
        %v4907 = vunpack.c.l.b16 %v4863
        %v4908 = vunpack.c.l.b16 %v4864
        %v4909 = vpack.c.b16 %v4894, %v4893
        %v4910 = vpack.c.b16 %v4896, %v4895
        %v4911 = vpack.c.b16 %v4898, %v4897
        %v4912 = vpack.c.b16 %v4900, %v4899
        %v4913 = vpack.c.b16 %v4902, %v4901
        %v4914 = vpack.c.b16 %v4904, %v4903
        %v4915 = vpack.c.b16 %v4906, %v4905
        %v4916 = vpack.c.b16 %v4908, %v4907
        %4925 = vmatpush.bf16.msra.mxu0 %v4916
        %4926 = vmatpush.bf16.msra.mxu0 %v4915
        %4927 = vmatpush.bf16.msra.mxu0 %v4914
        %4928 = vmatpush.bf16.msra.mxu0 %v4913
        %4929 = vmatpush.bf16.msra.mxu0 %v4912
        %4930 = vmatpush.bf16.msra.mxu0 %v4911
        %4931 = vmatpush.bf16.msra.mxu0 %v4910
        %4932 = vmatpush.bf16.msra.mxu0 %v4909
        %4933 = vmatmul.bf16.gmra.mxu0 %v4865
        %v4934 = vpop.f32.mrf.mxu0
        %v4935 = vadd.f32 %v4875, %v4934
        %v4936 = vpop.f32.mrf.mxu0
        %v4937 = vadd.f32 %v4875, %v4936
        %4938 = vmatmul.bf16.gmra.mxu0 %v4866
        %v4939 = vpop.f32.mrf.mxu0
        %v4940 = vadd.f32 %v4875, %v4939
        %v4941 = vpop.f32.mrf.mxu0
        %v4942 = vadd.f32 %v4875, %v4941
        %4943 = vmatmul.bf16.gmra.mxu0 %v4867
        %v4944 = vpop.f32.mrf.mxu0
        %v4945 = vadd.f32 %v4875, %v4944
        %v4946 = vpop.f32.mrf.mxu0
        %v4947 = vadd.f32 %v4875, %v4946
        %4948 = vmatmul.bf16.gmra.mxu0 %v4868
        %v4949 = vpop.f32.mrf.mxu0
        %v4950 = vadd.f32 %v4875, %v4949
        %v4951 = vpop.f32.mrf.mxu0
        %v4952 = vadd.f32 %v4875, %v4951
        %4953 = vmatmul.bf16.gmra.mxu0 %v4869
        %v4954 = vpop.f32.mrf.mxu0
        %v4955 = vadd.f32 %v4875, %v4954
        %v4956 = vpop.f32.mrf.mxu0
        %v4957 = vadd.f32 %v4875, %v4956
        %4958 = vmatmul.bf16.gmra.mxu0 %v4870
        %v4959 = vpop.f32.mrf.mxu0
        %v4960 = vadd.f32 %v4875, %v4959
        %v4961 = vpop.f32.mrf.mxu0
        %v4962 = vadd.f32 %v4875, %v4961
        %4963 = vmatmul.bf16.gmra.mxu0 %v4871
        %v4964 = vpop.f32.mrf.mxu0
        %v4965 = vadd.f32 %v4875, %v4964
        %v4966 = vpop.f32.mrf.mxu0
        %v4967 = vadd.f32 %v4875, %v4966
        %4968 = vmatmul.bf16.gmra.mxu0 %v4872
        %v4969 = vpop.f32.mrf.mxu0
        %v4970 = vadd.f32 %v4875, %v4969
        %v4971 = vpop.f32.mrf.mxu0
        %v4972 = vadd.f32 %v4875, %v4971
        %4973 = vdwg.mxu0
        %v4974 = vmax.f32 %v4935, 0.0
        %v4975 = vmax.f32 %v4937, 0.0
        %v4976 = vmax.f32 %v4940, 0.0
        %v4977 = vmax.f32 %v4942, 0.0
        %v4978 = vmax.f32 %v4945, 0.0
        %v4979 = vmax.f32 %v4947, 0.0
        %v4980 = vmax.f32 %v4950, 0.0
        %v4981 = vmax.f32 %v4952, 0.0
        %v4982 = vmax.f32 %v4955, 0.0
        %v4983 = vmax.f32 %v4957, 0.0
        %v4984 = vmax.f32 %v4960, 0.0
        %v4985 = vmax.f32 %v4962, 0.0
        %v4986 = vmax.f32 %v4965, 0.0
        %v4987 = vmax.f32 %v4967, 0.0
        %v4988 = vmax.f32 %v4970, 0.0
        %v4989 = vmax.f32 %v4972, 0.0
        %v4990 = vrot.slane %v4974, 2
        %v4991 = vrot.slane %v4975, 2
        %v4992 = vrot.slane %v4976, 2
        %v4993 = vrot.slane %v4977, 2
        %v4994 = vrot.slane %v4978, 2
        %v4995 = vrot.slane %v4979, 2
        %v4996 = vrot.slane %v4980, 2
        %v4997 = vrot.slane %v4981, 2
        %v4998 = vrot.slane %v4982, 2
        %v4999 = vrot.slane %v4983, 2
        %v5000 = vrot.slane %v4984, 2
        %v5001 = vrot.slane %v4985, 2
        %v5002 = vrot.slane %v4986, 2
        %v5003 = vrot.slane %v4987, 2
        %v5004 = vrot.slane %v4988, 2
        %v5005 = vrot.slane %v4989, 2
        %v5006 = vsel %vm3736, %v5004, %v5005
        %v5007 = vsel %vm3736, %v5003, %v5004
        %v5008 = vsel %vm3736, %v5002, %v5003
        %v5009 = vsel %vm3736, %v5001, %v5002
        %v5010 = vsel %vm3736, %v5000, %v5001
        %v5011 = vsel %vm3736, %v4999, %v5000
        %v5012 = vsel %vm3736, %v4998, %v4999
        %v5013 = vsel %vm3736, %v4997, %v4998
        %v5014 = vsel %vm3736, %v4996, %v4997
        %v5015 = vsel %vm3736, %v4995, %v4996
        %v5016 = vsel %vm3736, %v4994, %v4995
        %v5017 = vsel %vm3736, %v4993, %v4994
        %v5018 = vsel %vm3736, %v4992, %v4993
        %v5019 = vsel %vm3736, %v4991, %v4992
        %v5020 = vsel %vm3736, %v4990, %v4991
        %v5021 = vsel %vm3736, %v5005, %v4990
        %v5022 = vmax.f32 %v4974, %v5020
        %v5023 = vmax.f32 %v4975, %v5019
        %v5024 = vmax.f32 %v4976, %v5018
        %v5025 = vmax.f32 %v4977, %v5017
        %v5026 = vmax.f32 %v4978, %v5016
        %v5027 = vmax.f32 %v4979, %v5015
        %v5028 = vmax.f32 %v4980, %v5014
        %v5029 = vmax.f32 %v4981, %v5013
        %v5030 = vmax.f32 %v4982, %v5012
        %v5031 = vmax.f32 %v4983, %v5011
        %v5032 = vmax.f32 %v4984, %v5010
        %v5033 = vmax.f32 %v4985, %v5009
        %v5034 = vmax.f32 %v4986, %v5008
        %v5035 = vmax.f32 %v4987, %v5007
        %v5036 = vmax.f32 %v4988, %v5006
        %v5037 = vmax.f32 %v4989, %v5021
        %v5038 = vld [vmem:[%s20] sm:$0xf]
        %v5039 = vld [vmem:[%s20 + $0x4] sm:$0xf]
        %v5040 = vld [vmem:[%s20 + $0x8] sm:$0xf]
        %v5041 = vld [vmem:[%s20 + $0xc] sm:$0xf]
        %v5042 = vld [vmem:[%s20 + $0x10] sm:$0xf]
        %v5043 = vld [vmem:[%s20 + $0x14] sm:$0xf]
        %v5044 = vld [vmem:[%s20 + $0x18] sm:$0xf]
        %v5045 = vld [vmem:[%s20 + $0x1c] sm:$0xf]
        %v5046 = vld [vmem:[%s20 + $0x20] sm:$0xf]
        %v5047 = vld [vmem:[%s20 + $0x24] sm:$0xf]
        %v5048 = vld [vmem:[%s20 + $0x28] sm:$0xf]
        %v5049 = vld [vmem:[%s20 + $0x2c] sm:$0xf]
        %v5050 = vld [vmem:[%s20 + $0x30] sm:$0xf]
        %v5051 = vld [vmem:[%s20 + $0x34] sm:$0xf]
        %v5052 = vld [vmem:[%s20 + $0x38] sm:$0xf]
        %v5053 = vld [vmem:[%s20 + $0x3c] sm:$0xf]
        %v5054 = vpack.c.bf16 %v5023, %v5022
        %v5055 = vpack.c.bf16 %v5025, %v5024
        %v5056 = vpack.c.bf16 %v5027, %v5026
        %v5057 = vpack.c.bf16 %v5029, %v5028
        %v5058 = vpack.c.bf16 %v5031, %v5030
        %v5059 = vpack.c.bf16 %v5033, %v5032
        %v5060 = vpack.c.bf16 %v5035, %v5034
        %v5061 = vpack.c.bf16 %v5037, %v5036
        %v5062 = vld [vmem:[%s21] sm:$0x1]
        %v5064 = vperm.slane %v5062, 0
        %v5082 = vunpack.c.l.b16 %v5038
        %v5083 = vunpack.c.l.b16 %v5039
        %v5084 = vunpack.c.l.b16 %v5040
        %v5085 = vunpack.c.l.b16 %v5041
        %v5086 = vunpack.c.l.b16 %v5042
        %v5087 = vunpack.c.l.b16 %v5043
        %v5088 = vunpack.c.l.b16 %v5044
        %v5089 = vunpack.c.l.b16 %v5045
        %v5090 = vunpack.c.l.b16 %v5046
        %v5091 = vunpack.c.l.b16 %v5047
        %v5092 = vunpack.c.l.b16 %v5048
        %v5093 = vunpack.c.l.b16 %v5049
        %v5094 = vunpack.c.l.b16 %v5050
        %v5095 = vunpack.c.l.b16 %v5051
        %v5096 = vunpack.c.l.b16 %v5052
        %v5097 = vunpack.c.l.b16 %v5053
        %v5098 = vpack.c.b16 %v5083, %v5082
        %v5099 = vpack.c.b16 %v5085, %v5084
        %v5100 = vpack.c.b16 %v5087, %v5086
        %v5101 = vpack.c.b16 %v5089, %v5088
        %v5102 = vpack.c.b16 %v5091, %v5090
        %v5103 = vpack.c.b16 %v5093, %v5092
        %v5104 = vpack.c.b16 %v5095, %v5094
        %v5105 = vpack.c.b16 %v5097, %v5096
        %5114 = vmatpush.bf16.msra.mxu0 %v5105
        %5115 = vmatpush.bf16.msra.mxu0 %v5104
        %5116 = vmatpush.bf16.msra.mxu0 %v5103
        %5117 = vmatpush.bf16.msra.mxu0 %v5102
        %5118 = vmatpush.bf16.msra.mxu0 %v5101
        %5119 = vmatpush.bf16.msra.mxu0 %v5100
        %5120 = vmatpush.bf16.msra.mxu0 %v5099
        %5121 = vmatpush.bf16.msra.mxu0 %v5098
        %5122 = vmatmul.bf16.gmra.mxu0 %v5054
        %v5123 = vpop.f32.mrf.mxu0
        %v5124 = vadd.f32 %v5064, %v5123
        %v5125 = vpop.f32.mrf.mxu0
        %v5126 = vadd.f32 %v5064, %v5125
        %5127 = vmatmul.bf16.gmra.mxu0 %v5055
        %v5128 = vpop.f32.mrf.mxu0
        %v5129 = vadd.f32 %v5064, %v5128
        %v5130 = vpop.f32.mrf.mxu0
        %v5131 = vadd.f32 %v5064, %v5130
        %5132 = vmatmul.bf16.gmra.mxu0 %v5056
        %v5133 = vpop.f32.mrf.mxu0
        %v5134 = vadd.f32 %v5064, %v5133
        %v5135 = vpop.f32.mrf.mxu0
        %v5136 = vadd.f32 %v5064, %v5135
        %5137 = vmatmul.bf16.gmra.mxu0 %v5057
        %v5138 = vpop.f32.mrf.mxu0
        %v5139 = vadd.f32 %v5064, %v5138
        %v5140 = vpop.f32.mrf.mxu0
        %v5141 = vadd.f32 %v5064, %v5140
        %5142 = vmatmul.bf16.gmra.mxu0 %v5058
        %v5143 = vpop.f32.mrf.mxu0
        %v5144 = vadd.f32 %v5064, %v5143
        %v5145 = vpop.f32.mrf.mxu0
        %v5146 = vadd.f32 %v5064, %v5145
        %5147 = vmatmul.bf16.gmra.mxu0 %v5059
        %v5148 = vpop.f32.mrf.mxu0
        %v5149 = vadd.f32 %v5064, %v5148
        %v5150 = vpop.f32.mrf.mxu0
        %v5151 = vadd.f32 %v5064, %v5150
        %5152 = vmatmul.bf16.gmra.mxu0 %v5060
        %v5153 = vpop.f32.mrf.mxu0
        %v5154 = vadd.f32 %v5064, %v5153
        %v5155 = vpop.f32.mrf.mxu0
        %v5156 = vadd.f32 %v5064, %v5155
        %5157 = vmatmul.bf16.gmra.mxu0 %v5061
        %v5158 = vpop.f32.mrf.mxu0
        %v5159 = vadd.f32 %v5064, %v5158
        %v5160 = vpop.f32.mrf.mxu0
        %v5161 = vadd.f32 %v5064, %v5160
        %5162 = vdwg.mxu0
        %v5163 = vmul.f32 %v4128, %v5124
        %v5164 = vmul.f32 %v4130, %v5126
        %v5165 = vmul.f32 %v4133, %v5129
        %v5166 = vmul.f32 %v4135, %v5131
        %v5167 = vmul.f32 %v4138, %v5134
        %v5168 = vmul.f32 %v4140, %v5136
        %v5169 = vmul.f32 %v4143, %v5139
        %v5170 = vmul.f32 %v4145, %v5141
        %v5171 = vmul.f32 %v4148, %v5144
        %v5172 = vmul.f32 %v4150, %v5146
        %v5173 = vmul.f32 %v4153, %v5149
        %v5174 = vmul.f32 %v4155, %v5151
        %v5175 = vmul.f32 %v4158, %v5154
        %v5176 = vmul.f32 %v4160, %v5156
        %v5177 = vmul.f32 %v4163, %v5159
        %v5178 = vmul.f32 %v4165, %v5161
        %v5179 = vadd.s32 %v3638, 8
        %vm5180 = vcmp.lt.s32.totalorder %v3638, 0
        %v5181 = vsub.s32 0, %v3638
        %v5182 = vsel %vm5180, %v5181, %v3638
        %v5183 = vshrl.u32 %v5182, 2
        %v5184 = vand.u32 %v5182, 3
        %v5185 = vsub.s32 0, %v5184
        %v5186 = vsel %vm5180, %v5185, %v5184
        %vm5187 = vcmp.lt.s32.totalorder %v5179, 0
        %v5188 = vsub.s32 0, %v5179
        %v5189 = vsel %vm5187, %v5188, %v5179
        %v5190 = vshrl.u32 %v5189, 2
        %v5191 = vand.u32 %v5189, 3
        %v5192 = vsub.s32 0, %v5191
        %v5193 = vsel %vm5187, %v5192, %v5191
        %vm5194 = vcmp.ne.s32.totalorder %v5186, 0
        %vm5195 = vcmp.ne.s32.totalorder %v5193, 0
        %vm5196 = vcmp.lt.s32.totalorder %v5186, 0
        %vm5197 = vcmp.lt.s32.totalorder %v5193, 0
        %vm5198 = vmand %vm5196, %vm5194
        %vm5199 = vmand %vm5197, %vm5195
        %v5200 = vadd.s32 %v5186, 4
        %v5201 = vadd.s32 %v5193, 4
        %v5202 = vsel %vm5198, %v5200, %v5186
        %v5203 = vsel %vm5199, %v5201, %v5193
        %vm5204 = vcmp.eq.s32.totalorder %v5202, 0
        %vm5205 = vcmp.eq.s32.totalorder %v5203, 0
        %vm5206 = vcmp.lt.s32.totalorder %v3638, 12
        %vm5207 = vcmp.lt.s32.totalorder %v5179, 12
        %vm5208 = vmand %vm5204, %vm5206
        %vm5209 = vmand %vm5205, %vm5207
        %v5210 = vsel %vm5208, %v5163, 0.0
        %v5211 = vsel %vm5209, %v5164, 0.0
        %v5212 = vsel %vm5208, %v5165, 0.0
        %v5213 = vsel %vm5209, %v5166, 0.0
        %v5214 = vsel %vm5208, %v5167, 0.0
        %v5215 = vsel %vm5209, %v5168, 0.0
        %v5216 = vsel %vm5208, %v5169, 0.0
        %v5217 = vsel %vm5209, %v5170, 0.0
        %v5218 = vsel %vm5208, %v5171, 0.0
        %v5219 = vsel %vm5209, %v5172, 0.0
        %v5220 = vsel %vm5208, %v5173, 0.0
        %v5221 = vsel %vm5209, %v5174, 0.0
        %v5222 = vsel %vm5208, %v5175, 0.0
        %v5223 = vsel %vm5209, %v5176, 0.0
        %v5224 = vsel %vm5208, %v5177, 0.0
        %v5225 = vsel %vm5209, %v5178, 0.0
        %vm5226 = vcmask 15360
        %v5227 = vsel %vm5226, %v5210, 0.0
        %v5228 = vsel %vm5226, %v5211, 0.0
        %v5229 = vadd.f32 %v5227, %v5228
        %v5230 = vrot.slane %v5229, 4
        %v5231 = vadd.f32 %v5229, %v5230
        %v5232 = vrot.slane %v5231, 2
        %v5233 = vadd.f32 %v5231, %v5232
        %v5234 = vrot.slane %v5233, 1
        %v5235 = vadd.f32 %v5233, %v5234
        %v5236 = vsel %vm5226, %v5212, 0.0
        %v5237 = vsel %vm5226, %v5213, 0.0
        %v5238 = vadd.f32 %v5236, %v5237
        %v5239 = vrot.slane %v5238, 4
        %v5240 = vadd.f32 %v5238, %v5239
        %v5241 = vrot.slane %v5240, 2
        %v5242 = vadd.f32 %v5240, %v5241
        %v5243 = vrot.slane %v5242, 1
        %v5244 = vadd.f32 %v5242, %v5243
        %v5245 = vsel %vm5226, %v5214, 0.0
        %v5246 = vsel %vm5226, %v5215, 0.0
        %v5247 = vadd.f32 %v5245, %v5246
        %v5248 = vrot.slane %v5247, 4
        %v5249 = vadd.f32 %v5247, %v5248
        %v5250 = vrot.slane %v5249, 2
        %v5251 = vadd.f32 %v5249, %v5250
        %v5252 = vrot.slane %v5251, 1
        %v5253 = vadd.f32 %v5251, %v5252
        %v5254 = vsel %vm5226, %v5216, 0.0
        %v5255 = vsel %vm5226, %v5217, 0.0
        %v5256 = vadd.f32 %v5254, %v5255
        %v5257 = vrot.slane %v5256, 4
        %v5258 = vadd.f32 %v5256, %v5257
        %v5259 = vrot.slane %v5258, 2
        %v5260 = vadd.f32 %v5258, %v5259
        %v5261 = vrot.slane %v5260, 1
        %v5262 = vadd.f32 %v5260, %v5261
        %v5263 = vsel %vm5226, %v5218, 0.0
        %v5264 = vsel %vm5226, %v5219, 0.0
        %v5265 = vadd.f32 %v5263, %v5264
        %v5266 = vrot.slane %v5265, 4
        %v5267 = vadd.f32 %v5265, %v5266
        %v5268 = vrot.slane %v5267, 2
        %v5269 = vadd.f32 %v5267, %v5268
        %v5270 = vrot.slane %v5269, 1
        %v5271 = vadd.f32 %v5269, %v5270
        %v5272 = vsel %vm5226, %v5220, 0.0
        %v5273 = vsel %vm5226, %v5221, 0.0
        %v5274 = vadd.f32 %v5272, %v5273
        %v5275 = vrot.slane %v5274, 4
        %v5276 = vadd.f32 %v5274, %v5275
        %v5277 = vrot.slane %v5276, 2
        %v5278 = vadd.f32 %v5276, %v5277
        %v5279 = vrot.slane %v5278, 1
        %v5280 = vadd.f32 %v5278, %v5279
        %v5281 = vsel %vm5226, %v5222, 0.0
        %v5282 = vsel %vm5226, %v5223, 0.0
        %v5283 = vadd.f32 %v5281, %v5282
        %v5284 = vrot.slane %v5283, 4
        %v5285 = vadd.f32 %v5283, %v5284
        %v5286 = vrot.slane %v5285, 2
        %v5287 = vadd.f32 %v5285, %v5286
        %v5288 = vrot.slane %v5287, 1
        %v5289 = vadd.f32 %v5287, %v5288
        %v5290 = vsel %vm5226, %v5224, 0.0
        %v5291 = vsel %vm5226, %v5225, 0.0
        %v5292 = vadd.f32 %v5290, %v5291
        %v5293 = vrot.slane %v5292, 4
        %v5294 = vadd.f32 %v5292, %v5293
        %v5295 = vrot.slane %v5294, 2
        %v5296 = vadd.f32 %v5294, %v5295
        %v5297 = vrot.slane %v5296, 1
        %v5298 = vadd.f32 %v5296, %v5297
        %v5299 = vmul.f32 %v5235, 0.33333334
        %v5300 = vmul.f32 %v5244, 0.33333334
        %v5301 = vmul.f32 %v5253, 0.33333334
        %v5302 = vmul.f32 %v5262, 0.33333334
        %v5303 = vmul.f32 %v5271, 0.33333334
        %v5304 = vmul.f32 %v5280, 0.33333334
        %v5305 = vmul.f32 %v5289, 0.33333334
        %v5306 = vmul.f32 %v5298, 0.33333334
        %v5307 = vxor.u32 %v5299, 2147483648
        %v5308 = vxor.u32 %v5300, 2147483648
        %v5309 = vxor.u32 %v5301, 2147483648
        %v5310 = vxor.u32 %v5302, 2147483648
        %v5311 = vxor.u32 %v5303, 2147483648
        %v5312 = vxor.u32 %v5304, 2147483648
        %v5313 = vxor.u32 %v5305, 2147483648
        %v5314 = vxor.u32 %v5306, 2147483648
        %v5315 = vmul.f32 %v5307, 1.442695
        %v5316 = vpow.pop %v5315
        %v5317 = vmul.f32 %v5308, 1.442695
        %v5318 = vpow.pop %v5317
        %v5319 = vmul.f32 %v5309, 1.442695
        %v5320 = vpow.pop %v5319
        %v5321 = vmul.f32 %v5310, 1.442695
        %v5322 = vpow.pop %v5321
        %v5323 = vmul.f32 %v5311, 1.442695
        %v5324 = vpow.pop %v5323
        %v5325 = vmul.f32 %v5312, 1.442695
        %v5326 = vpow.pop %v5325
        %v5327 = vmul.f32 %v5313, 1.442695
        %v5328 = vpow.pop %v5327
        %v5329 = vmul.f32 %v5314, 1.442695
        %v5330 = vpow.pop %v5329
        %v5331 = vadd.f32 %v5316, 1.0
        %v5332 = vadd.f32 %v5318, 1.0
        %v5333 = vadd.f32 %v5320, 1.0
        %v5334 = vadd.f32 %v5322, 1.0
        %v5335 = vadd.f32 %v5324, 1.0
        %v5336 = vadd.f32 %v5326, 1.0
        %v5337 = vadd.f32 %v5328, 1.0
        %v5338 = vadd.f32 %v5330, 1.0
        %v5339 = vrcp.pop %v5331
        %v5340 = vmul.f32 %v5331, %v5339
        %v5341 = vsub.f32 1.0, %v5340
        %v5342 = vmul.f32 %v5339, %v5341
        %v5343 = vadd.f32 %v5339, %v5342
        %vm5344 = vweird.f32 %v5331
        %vm5345 = vweird.f32 %v5339
        %vm5346 = vmor %vm5344, %vm5345
        %v5347 = vsel %vm5346, %v5339, %v5343
        %v5348 = vand.u32 2147483647, %v5331
        %vm5349 = vcmp.eq.f32.partialorder %v5348, 8.507059e+37
        %v5350 = vand.u32 %v5331, 2147483648
        %v5351 = vor.u32 1.1754944e-38, %v5350
        %v5352 = vsel %vm5349, %v5351, %v5347
        %v5353 = vmul.f32 1.0, %v5352
        %v5354 = vrcp.pop %v5332
        %v5355 = vmul.f32 %v5332, %v5354
        %v5356 = vsub.f32 1.0, %v5355
        %v5357 = vmul.f32 %v5354, %v5356
        %v5358 = vadd.f32 %v5354, %v5357
        %vm5359 = vweird.f32 %v5332
        %vm5360 = vweird.f32 %v5354
        %vm5361 = vmor %vm5359, %vm5360
        %v5362 = vsel %vm5361, %v5354, %v5358
        %v5363 = vand.u32 2147483647, %v5332
        %vm5364 = vcmp.eq.f32.partialorder %v5363, 8.507059e+37
        %v5365 = vand.u32 %v5332, 2147483648
        %v5366 = vor.u32 1.1754944e-38, %v5365
        %v5367 = vsel %vm5364, %v5366, %v5362
        %v5368 = vmul.f32 1.0, %v5367
        %v5369 = vrcp.pop %v5333
        %v5370 = vmul.f32 %v5333, %v5369
        %v5371 = vsub.f32 1.0, %v5370
        %v5372 = vmul.f32 %v5369, %v5371
        %v5373 = vadd.f32 %v5369, %v5372
        %vm5374 = vweird.f32 %v5333
        %vm5375 = vweird.f32 %v5369
        %vm5376 = vmor %vm5374, %vm5375
        %v5377 = vsel %vm5376, %v5369, %v5373
        %v5378 = vand.u32 2147483647, %v5333
        %vm5379 = vcmp.eq.f32.partialorder %v5378, 8.507059e+37
        %v5380 = vand.u32 %v5333, 2147483648
        %v5381 = vor.u32 1.1754944e-38, %v5380
        %v5382 = vsel %vm5379, %v5381, %v5377
        %v5383 = vmul.f32 1.0, %v5382
        %v5384 = vrcp.pop %v5334
        %v5385 = vmul.f32 %v5334, %v5384
        %v5386 = vsub.f32 1.0, %v5385
        %v5387 = vmul.f32 %v5384, %v5386
        %v5388 = vadd.f32 %v5384, %v5387
        %vm5389 = vweird.f32 %v5334
        %vm5390 = vweird.f32 %v5384
        %vm5391 = vmor %vm5389, %vm5390
        %v5392 = vsel %vm5391, %v5384, %v5388
        %v5393 = vand.u32 2147483647, %v5334
        %vm5394 = vcmp.eq.f32.partialorder %v5393, 8.507059e+37
        %v5395 = vand.u32 %v5334, 2147483648
        %v5396 = vor.u32 1.1754944e-38, %v5395
        %v5397 = vsel %vm5394, %v5396, %v5392
        %v5398 = vmul.f32 1.0, %v5397
        %v5399 = vrcp.pop %v5335
        %v5400 = vmul.f32 %v5335, %v5399
        %v5401 = vsub.f32 1.0, %v5400
        %v5402 = vmul.f32 %v5399, %v5401
        %v5403 = vadd.f32 %v5399, %v5402
        %vm5404 = vweird.f32 %v5335
        %vm5405 = vweird.f32 %v5399
        %vm5406 = vmor %vm5404, %vm5405
        %v5407 = vsel %vm5406, %v5399, %v5403
        %v5408 = vand.u32 2147483647, %v5335
        %vm5409 = vcmp.eq.f32.partialorder %v5408, 8.507059e+37
        %v5410 = vand.u32 %v5335, 2147483648
        %v5411 = vor.u32 1.1754944e-38, %v5410
        %v5412 = vsel %vm5409, %v5411, %v5407
        %v5413 = vmul.f32 1.0, %v5412
        %v5414 = vrcp.pop %v5336
        %v5415 = vmul.f32 %v5336, %v5414
        %v5416 = vsub.f32 1.0, %v5415
        %v5417 = vmul.f32 %v5414, %v5416
        %v5418 = vadd.f32 %v5414, %v5417
        %vm5419 = vweird.f32 %v5336
        %vm5420 = vweird.f32 %v5414
        %vm5421 = vmor %vm5419, %vm5420
        %v5422 = vsel %vm5421, %v5414, %v5418
        %v5423 = vand.u32 2147483647, %v5336
        %vm5424 = vcmp.eq.f32.partialorder %v5423, 8.507059e+37
        %v5425 = vand.u32 %v5336, 2147483648
        %v5426 = vor.u32 1.1754944e-38, %v5425
        %v5427 = vsel %vm5424, %v5426, %v5422
        %v5428 = vmul.f32 1.0, %v5427
        %v5429 = vrcp.pop %v5337
        %v5430 = vmul.f32 %v5337, %v5429
        %v5431 = vsub.f32 1.0, %v5430
        %v5432 = vmul.f32 %v5429, %v5431
        %v5433 = vadd.f32 %v5429, %v5432
        %vm5434 = vweird.f32 %v5337
        %vm5435 = vweird.f32 %v5429
        %vm5436 = vmor %vm5434, %vm5435
        %v5437 = vsel %vm5436, %v5429, %v5433
        %v5438 = vand.u32 2147483647, %v5337
        %vm5439 = vcmp.eq.f32.partialorder %v5438, 8.507059e+37
        %v5440 = vand.u32 %v5337, 2147483648
        %v5441 = vor.u32 1.1754944e-38, %v5440
        %v5442 = vsel %vm5439, %v5441, %v5437
        %v5443 = vmul.f32 1.0, %v5442
        %v5444 = vrcp.pop %v5338
        %v5445 = vmul.f32 %v5338, %v5444
        %v5446 = vsub.f32 1.0, %v5445
        %v5447 = vmul.f32 %v5444, %v5446
        %v5448 = vadd.f32 %v5444, %v5447
        %vm5449 = vweird.f32 %v5338
        %vm5450 = vweird.f32 %v5444
        %vm5451 = vmor %vm5449, %vm5450
        %v5452 = vsel %vm5451, %v5444, %v5448
        %v5453 = vand.u32 2147483647, %v5338
        %vm5454 = vcmp.eq.f32.partialorder %v5453, 8.507059e+37
        %v5455 = vand.u32 %v5338, 2147483648
        %v5456 = vor.u32 1.1754944e-38, %v5455
        %v5457 = vsel %vm5454, %v5456, %v5452
        %v5458 = vmul.f32 1.0, %v5457
        %vm5467 = vcmask 1041409
        %v5468 = vsel %vm5467, %v5368, %v5353
        %vm5469 = vcmask 1042434
        %v5470 = vsel %vm5469, %v5383, %v5468
        %vm5471 = vcmask 1043459
        %v5472 = vsel %vm5471, %v5398, %v5470
        %vm5473 = vcmask 1044484
        %v5474 = vsel %vm5473, %v5413, %v5472
        %vm5475 = vcmask 1045509
        %v5476 = vsel %vm5475, %v5428, %v5474
        %vm5477 = vcmask 1046534
        %v5478 = vsel %vm5477, %v5443, %v5476
        %vm5479 = vcmask 1047559
        %v5480 = vsel %vm5479, %v5458, %v5478
        %5482 = vst.msk [vmem:[%s819] sm:$0xff] %vm5226, %v5480
        %p5483 = scmp.lt.s32.totalorder %s36, 1
        %s5484 = scalar_select %p5483, %s36, 1
        %s5485 = smul.addr %s5484, 8
        %s5486 = scalar_lea.vmem %s22, %s5485
        // Predicated region
        $region129: #{tpu_custom_call.1} parent=107 // pred_check
          %p5487 = pneg %p531
        $region130: #{tpu_custom_call.1} parent=107 // pred_check_branch
          %5489 = sbr.rel (%p5487) target = $region132
        $region131: #{tpu_custom_call.1} parent=107 // pred_region
          _
        $region132: #{tpu_custom_call.1} parent=107 // pred_fallthru
          _
      $region108: #{tpu_custom_call.1} parent=5 // pred_fallthru
        _
      %p5490 = scmp.le.s32.totalorder 2, %s31
      // Predicated region
      $region133: #{tpu_custom_call.1} parent=5 // pred_check
        %p5491 = pneg %p5490
      $region134: #{tpu_custom_call.1} parent=5 // pred_check_branch
        %5493 = sbr.rel (%p5491) target = $region136
      $region135: #{tpu_custom_call.1} parent=5 // pred_region
        %s5494 = ssub.s32 %s31, 2
        // Predicated region
        $region137: #{tpu_custom_call.1} parent=135 // pred_check
          %p5495 = pneg %p537
        $region138: #{tpu_custom_call.1} parent=135 // pred_check_branch
          %5497 = sbr.rel (%p5495) target = $region140
        $region139: #{tpu_custom_call.1} parent=135 // pred_region
          %p5498 = scmp.lt.s32.totalorder %s37, 1
          %s5499 = scalar_select %p5498, %s37, 1
          %s5500 = smul.addr %s5499, 8
          %s5501 = scalar_lea.vmem %s22, %s5500
        $region140: #{tpu_custom_call.1} parent=135 // pred_fallthru
          _
      $region136: #{tpu_custom_call.1} parent=5 // pred_fallthru
        _
    $region6: #{tpu_custom_call.1} parent=1 // loop_footer
      %s35 = sadd.s32 1, %s31
    $region7: #{tpu_custom_call.1} parent=1 // loop_footer_branch
      %30 = sbr.rel target = $region3
    $region8: #{tpu_custom_call.1} parent=1 // loop_exit
      _
    %5502 = vsyncpa [#allocation3], 1
    %s5503 = scalar_lea.sflag [#allocation3], 1
    %5504 = vsyncpa %s5503, 1
    %5505 = vsyncpa [#allocation5], 1
    %5506 = vsyncpa [#allocation8], 1

</llo_original>
